<compile_context>
chip_gen: v7x
topology: tpu7x:2x2x1
jax: 0.10.0
libtpu: 0.0.40
codegen_flags: <defaults>
</compile_context>

<pallas_src>
import math

import numpy as np
import jax
import jax.numpy as jnp
from jax import lax
from jax.experimental import pallas as pl
from jax.experimental.pallas import tpu as pltpu

# ----------------------------- model config ---------------------------------
D_MODEL = 64
N_LAYER = 2
VOCAB = 128
D_STATE = 16
EXPAND = 2
D_INNER = EXPAND * D_MODEL                  # 128
DT_RANK = math.ceil(D_MODEL / 16)           # 4
D_CONV = 4
EPS = 1e-5

BATCH = 2
SEQ = 8

MM_DTYPE = jnp.bfloat16                     # MXU operand dtype (f32 accumulate)
N_PER_LAYER = 9                             # kernel refs per layer


# ----------------------------- shared math helpers --------------------------
def _softplus(x):
    # matches torch.nn.functional.softplus (threshold=20)
    return jnp.where(x > 20.0, x, jnp.log(1.0 + jnp.exp(x)))


def _rmsnorm(x, w):
    var = jnp.mean(x * x, axis=-1, keepdims=True)
    return x * lax.rsqrt(var + EPS) * w


def _silu_kernel(x):
    # sigmoid via EUP exp + approx reciprocal (divide off the VALU slot)
    return x * pl.reciprocal(1.0 + jnp.exp(-x), approx=True)


def _silu_ref(x):
    return x * (1.0 / (1.0 + jnp.exp(-x)))


# ----------------------------- fused Pallas kernel ---------------------------
def build_kernel(seqlen):
    L = seqlen

    def mm(a, b):                           # bf16 MXU matmul, f32 accumulation
        return jnp.dot(a.astype(MM_DTYPE), b.astype(MM_DTYPE),
                       preferred_element_type=jnp.float32)

    def kernel(*refs):
        n_in = 8 + N_LAYER * N_PER_LAYER
        (ids_ref, emb_ref, embT_ref, normf_ref,
         rep_ref, rept_ref, pick2_ref, sh_ref) = refs[:8]
        layer_refs = refs[8:n_in]
        o_ref = refs[n_in]
        dA_ref, dBu_ref, s_ref = refs[n_in + 1:]

        # ---- embedding gather as a one-hot MXU matmul (exact row pick) ------
        # TODO(synk): a realistic vocab needs a DMA row-copy gather; the
        # O(L*VOCAB) one-hot matmul is only viable because VOCAB == 128.
        ids = ids_ref[...]                                            # (L, 1) int32
        iota_v = lax.broadcasted_iota(jnp.int32, (L, VOCAB), 1)
        onehot = jnp.where(ids == iota_v, 1.0, 0.0)
        x = mm(onehot, emb_ref[...])                                  # (L, D)

        rep = rep_ref[...]                                            # (L*n, L)   row replication
        rept = rept_ref[...]                                          # (L, L*n)   block-diag reduce
        pick2 = pick2_ref[...]                                        # (L*n, 2n)  diag pick for [B|C]
        sh = sh_ref[...]                                              # (D_CONV*L, L) causal shifts

        for li in range(N_LAYER):
            (wn_ref, win_ref, wc_ref, bc_ref, wx_ref, bdt_ref,
             a_ref, dpar_ref, wout_ref) = layer_refs[li * N_PER_LAYER:
                                                     (li + 1) * N_PER_LAYER]
            x_res = x
            xn = _rmsnorm(x, wn_ref[...])

            # fused in_proj: (L, D) @ (D, 2*d_in) -> [xz | res]
            xz_res = mm(xn, win_ref[...])                             # (L, 256)
            xz = xz_res[:, :D_INNER]
            res = xz_res[:, D_INNER:]

            # depthwise causal conv1d: ONE fused shift matmul + VPU taps
            conv_all = mm(sh, xz)                                     # (D_CONV*L, d_in)
            wc = wc_ref[...]                                          # (D_CONV, d_in)
            conv = conv_all[0:L, :] * wc[0:1, :]
            for k in range(1, D_CONV):
                conv = conv + conv_all[k * L:(k + 1) * L, :] * wc[k:k + 1, :]
            u = _silu_kernel(conv + bc_ref[...])                      # (L, d_in)

            # fused x_proj + dt_proj: (L, d_in) @ (d_in, d_in + 2n)
            xall = mm(u, wx_ref[...])                                 # (L, 160)
            delta = _softplus(xall[:, :D_INNER] + bdt_ref[...])       # (L, d_in)

            # ---- hoisted scan prep: 2 replication matmuls, 1 batched exp ----
            du = delta * u
            dd_rep = mm(rep, jnp.concatenate([delta, du], axis=1))    # (L*n, 2*d_in)
            bc_rep = mm(rep, xall[:, D_INNER:])                       # (L*n, 2n) = [B|C] replicated
            bc_sel = bc_rep * pick2
            b_col = jnp.sum(bc_sel[:, :D_STATE], axis=1, keepdims=True)   # (L*n, 1)
            c_col = jnp.sum(bc_sel[:, D_STATE:], axis=1, keepdims=True)   # (L*n, 1)

            a_all = jnp.concatenate([a_ref[...]] * L, axis=0)         # (L*n, d_in)
            dA_ref[...] = jnp.exp(dd_rep[:, :D_INNER] * a_all)
            dBu_ref[...] = dd_rep[:, D_INNER:] * b_col

            # ---- recurrence: state in vregs, per-step states to VMEM scratch
            def scan_step(l, st):
                lo = pl.multiple_of(l * D_STATE, D_STATE)
                st = (dA_ref[pl.ds(lo, D_STATE), :] * st
                      + dBu_ref[pl.ds(lo, D_STATE), :])
                s_ref[pl.ds(lo, D_STATE), :] = st
                return st

            lax.fori_loop(0, L, scan_step,
                          jnp.zeros((D_STATE, D_INNER), jnp.float32),
                          unroll=True)

            # batched C-reduction as one (L, L*n) @ (L*n, d_in) matmul
            y = mm(rept, s_ref[...] * c_col)                          # (L, d_in)
            y = y + u * dpar_ref[...]
            y = y * _silu_kernel(res)

            x = mm(y, wout_ref[...]) + x_res                          # (L, D)

        # ---- final RMSNorm + tied lm_head (lane-dense (L, 128) output) ------
        xn = _rmsnorm(x, normf_ref[...])
        o_ref[...] = mm(xn, embT_ref[...])

    return kernel


# ----------------------------- host-side prep --------------------------------
def _scan_constants(seqlen):
    """Per-sequence 0/1 selector matrices (replication, diag pick, causal shifts)."""
    L = seqlen
    rows = np.arange(L * D_STATE)
    rep = (rows[:, None] // D_STATE == np.arange(L)[None, :]).astype(np.float32)
    pick = (rows[:, None] % D_STATE == np.arange(D_STATE)[None, :]).astype(np.float32)
    pick2 = np.concatenate([pick, pick], axis=1)            # for fused [B | C]
    sh = np.zeros((D_CONV * L, L), np.float32)
    for k in range(D_CONV):
        j = D_CONV - 1 - k
        for r in range(L):
            s = r - j
            if s >= 0:                                       # causal within sequence
                sh[k * L + r, s] = 1.0
    return (jnp.asarray(rep, MM_DTYPE),
            jnp.asarray(np.ascontiguousarray(rep.T), MM_DTYPE),
            jnp.asarray(pick2, jnp.float32),
            jnp.asarray(sh, MM_DTYPE))


def _layer_kernel_inputs(lp):
    """Torch-layout params -> kernel-friendly, pre-fused, pre-transposed tensors."""
    w_xp = lp['w_xproj']                                       # (dt_rank + 2n, d_in)
    # collapse x_proj(dt part) @ dt_proj into one (d_in, d_in) matrix
    w_delta = w_xp[:DT_RANK, :].T @ lp['w_dtproj'].T           # (d_in, d_in)
    w_xall = jnp.concatenate(
        [w_delta, w_xp[DT_RANK:DT_RANK + D_STATE, :].T, w_xp[DT_RANK + D_STATE:, :].T],
        axis=1)                                                # (d_in, d_in + 2n)
    a_neg = -jnp.exp(lp['a_log']).T                            # (n, d_in), A precomputed
    return [
        lp['w_norm'][None, :],                                 # (1, D)
        lp['w_in'].T.astype(MM_DTYPE),                         # (D, 2*d_in) [xz | res]
        lp['conv_w'][:, 0, :].T,                               # (D_CONV, d_in)
        lp['conv_b'][None, :],                                 # (1, d_in)
        w_xall.astype(MM_DTYPE),                               # (d_in, d_in + 2n)
        lp['b_dtproj'][None, :],                               # (1, d_in)
        a_neg,                                                 # (n, d_in)  (no pre-tiling)
        lp['d_par'][None, :],                                  # (1, d_in)
        lp['w_outproj'].T.astype(MM_DTYPE),                    # (d_in, D)
    ]


def _resident_spec(arr):
    """Full-array block with a constant index_map -> fetched once, VMEM-resident."""
    return pl.BlockSpec(arr.shape, lambda b: (0, 0),
                        memory_space=pltpu.MemorySpace.VMEM)


@jax.jit
def mamba_forward_pallas(input_ids, params):
    batch, seqlen = input_ids.shape
    L = seqlen
    rep, rep_t, pick2, sh = _scan_constants(seqlen)
    ids = input_ids.reshape(batch * L, 1).astype(jnp.int32)

    inputs = [ids,
              params['emb'].astype(MM_DTYPE),                  # (VOCAB, D)
              params['emb'].T.astype(MM_DTYPE),                # (D, VOCAB) tied lm_head
              params['norm_f'][None, :],
              rep, rep_t, pick2, sh]
    for lp in params['layers']:
        inputs += _layer_kernel_inputs(lp)

    in_specs = [pl.BlockSpec((L, 1), lambda b: (b, 0),
                             memory_space=pltpu.MemorySpace.VMEM)]
    in_specs += [_resident_spec(a) for a in inputs[1:]]
    out_spec = pl.BlockSpec((L, VOCAB), lambda b: (b, 0),
                            memory_space=pltpu.MemorySpace.VMEM)

    logits = pl.pallas_call(
        build_kernel(seqlen),
        grid=(batch,),                                         # batch rows independent
        in_specs=in_specs,
        out_specs=out_spec,
        out_shape=jax.ShapeDtypeStruct((batch * L, VOCAB), jnp.float32),
        scratch_shapes=[pltpu.VMEM((L * D_STATE, D_INNER), jnp.float32)
                        for _ in range(3)],                    # dA, dBu, states
        compiler_params=pltpu.CompilerParams(
            dimension_semantics=("parallel",)),
    )(*inputs)
    return logits.reshape(batch, seqlen, VOCAB)


# ----------------------------- pure-JAX reference (f32) ----------------------
def mamba_forward_ref(input_ids, params):
    def rmsnorm(x, w):
        return x * lax.rsqrt(jnp.mean(x * x, -1, keepdims=True) + EPS) * w

    x = params['emb'][input_ids]
    for lp in params['layers']:
        xin = x
        h = rmsnorm(xin, lp['w_norm'])
        xz_res = h @ lp['w_in'].T
        xz, res = xz_res[..., :D_INNER], xz_res[..., D_INNER:]

        wc = lp['conv_w'][:, 0, :]                             # (d_in, D_CONV)
        Bsz, L = xz.shape[:2]
        xp = jnp.pad(xz, ((0, 0), (D_CONV - 1, 0), (0, 0)))
        conv = jnp.zeros_like(xz)
        for k in range(D_CONV):
            conv = conv + xp[:, k:k + L, :] * wc[:, k][None, None, :]
        conv = conv + lp['conv_b'][None, None, :]
        u = _silu_ref(conv)

        x_dbl = u @ lp['w_xproj'].T
        dtr = x_dbl[..., :DT_RANK]
        Bm = x_dbl[..., DT_RANK:DT_RANK + D_STATE]
        Cm = x_dbl[..., DT_RANK + D_STATE:]
        delta = _softplus(dtr @ lp['w_dtproj'].T + lp['b_dtproj'])

        A = -jnp.exp(lp['a_log'])                              # (d_in, n)
        dA = jnp.exp(delta[..., None] * A[None, None])
        dBu = delta[..., None] * Bm[:, :, None, :] * u[..., None]

        def scan_fn(state, inp):
            dA_t, dBu_t, C_t = inp
            state = dA_t * state + dBu_t
            y_t = jnp.einsum('bdn,bn->bd', state, C_t)
            return state, y_t

        state0 = jnp.zeros((Bsz, D_INNER, D_STATE), jnp.float32)
        _, ys = jax.lax.scan(
            scan_fn, state0,
            (jnp.moveaxis(dA, 1, 0), jnp.moveaxis(dBu, 1, 0), jnp.moveaxis(Cm, 1, 0)))
        y = jnp.moveaxis(ys, 0, 1)
        y = y + u * lp['d_par']
        y = y * _silu_ref(res)
        x = y @ lp['w_outproj'].T + xin

    x = rmsnorm(x, params['norm_f'])
    return x @ params['emb'].T


# ----------------------------- parameter init --------------------------------
def init_params(key):
    keys = iter(jax.random.split(key, 128))

    def nrm(shape, scale):
        return jax.random.normal(next(keys), shape, jnp.float32) * scale

    emb = nrm((VOCAB, D_MODEL), 0.1)
    layers = []
    for _ in range(N_LAYER):
        layers.append(dict(
            w_norm=jnp.ones((D_MODEL,), jnp.float32),
            w_in=nrm((2 * D_INNER, D_MODEL), 1.0 / math.sqrt(D_MODEL)),
            conv_w=nrm((D_INNER, 1, D_CONV), 1.0 / math.sqrt(D_CONV)),
            conv_b=nrm((D_INNER,), 0.1),
            w_xproj=nrm((DT_RANK + 2 * D_STATE, D_INNER), 1.0 / math.sqrt(D_INNER)),
            w_dtproj=nrm((D_INNER, DT_RANK), 1.0 / math.sqrt(DT_RANK)),
            b_dtproj=nrm((D_INNER,), 0.1),
            a_log=jnp.log(jnp.tile(
                jnp.arange(1, D_STATE + 1, dtype=jnp.float32)[None, :], (D_INNER, 1))),
            d_par=jnp.ones((D_INNER,), jnp.float32),
            w_outproj=nrm((D_MODEL, D_INNER), 1.0 / math.sqrt(D_INNER)),
        ))
    norm_f = jnp.ones((D_MODEL,), jnp.float32)
    return dict(emb=emb, layers=layers, norm_f=norm_f)


# ----------------------------- main ------------------------------------------
if __name__ == "__main__":
    key = jax.random.PRNGKey(0)
    k_ids, k_par = jax.random.split(key)
    input_ids = jax.random.randint(k_ids, (BATCH, SEQ), 0, VOCAB, dtype=jnp.int32)
    params = init_params(k_par)

    logits = jax.block_until_ready(mamba_forward_pallas(input_ids, params))
    ref = jax.block_until_ready(mamba_forward_ref(input_ids, params))

    assert logits.shape == (BATCH, SEQ, VOCAB), logits.shape
    assert bool(jnp.all(jnp.isfinite(logits)))
    # bf16 MXU operands (f32 accumulation) -> tolerance relaxed vs. f32 reference.
    max_err = float(jnp.max(jnp.abs(logits - ref)))
    assert jnp.allclose(logits, ref, atol=1e-1, rtol=1e-1), max_err

    print("KERNEL_OK")
</pallas_src>

<mosaic_0001>
module attributes {stable_mosaic.version = 11 : i64} {
  func.func @kernel(%arg0: i32, %arg1: memref<8x1xi32, #tpu.memory_space<vmem>>, %arg2: memref<128x64xbf16, #tpu.memory_space<vmem>>, %arg3: memref<64x128xbf16, #tpu.memory_space<vmem>>, %arg4: memref<1x64xf32, #tpu.memory_space<vmem>>, %arg5: memref<128x8xbf16, #tpu.memory_space<vmem>>, %arg6: memref<8x128xbf16, #tpu.memory_space<vmem>>, %arg7: memref<128x32xf32, #tpu.memory_space<vmem>>, %arg8: memref<32x8xbf16, #tpu.memory_space<vmem>>, %arg9: memref<1x64xf32, #tpu.memory_space<vmem>>, %arg10: memref<64x256xbf16, #tpu.memory_space<vmem>>, %arg11: memref<4x128xf32, #tpu.memory_space<vmem>>, %arg12: memref<1x128xf32, #tpu.memory_space<vmem>>, %arg13: memref<128x160xbf16, #tpu.memory_space<vmem>>, %arg14: memref<1x128xf32, #tpu.memory_space<vmem>>, %arg15: memref<16x128xf32, #tpu.memory_space<vmem>>, %arg16: memref<1x128xf32, #tpu.memory_space<vmem>>, %arg17: memref<128x64xbf16, #tpu.memory_space<vmem>>, %arg18: memref<1x64xf32, #tpu.memory_space<vmem>>, %arg19: memref<64x256xbf16, #tpu.memory_space<vmem>>, %arg20: memref<4x128xf32, #tpu.memory_space<vmem>>, %arg21: memref<1x128xf32, #tpu.memory_space<vmem>>, %arg22: memref<128x160xbf16, #tpu.memory_space<vmem>>, %arg23: memref<1x128xf32, #tpu.memory_space<vmem>>, %arg24: memref<16x128xf32, #tpu.memory_space<vmem>>, %arg25: memref<1x128xf32, #tpu.memory_space<vmem>>, %arg26: memref<128x64xbf16, #tpu.memory_space<vmem>>, %arg27: memref<8x128xf32, #tpu.memory_space<vmem>>, %arg28: memref<128x128xf32, #tpu.memory_space<vmem>>, %arg29: memref<128x128xf32, #tpu.memory_space<vmem>>, %arg30: memref<128x128xf32, #tpu.memory_space<vmem>>) attributes {dimension_semantics = [#tpu.dimension_semantics<parallel>], iteration_bounds = array<i64: 2>, scalar_prefetch = 0 : i64, scratch_operands = 3 : i64, tpu.core_type = #tpu.core_type<tc>, window_params = [{transform_indices = @transform_0, window_bounds = array<i64: 8, 1>}, {pipeline_mode = #tpu.pipeline_mode<synchronous>, transform_indices = @transform_1, window_bounds = array<i64: 128, 64>}, {pipeline_mode = #tpu.pipeline_mode<synchronous>, transform_indices = @transform_2, window_bounds = array<i64: 64, 128>}, {pipeline_mode = #tpu.pipeline_mode<synchronous>, transform_indices = @transform_3, window_bounds = array<i64: 1, 64>}, {pipeline_mode = #tpu.pipeline_mode<synchronous>, transform_indices = @transform_4, window_bounds = array<i64: 128, 8>}, {pipeline_mode = #tpu.pipeline_mode<synchronous>, transform_indices = @transform_5, window_bounds = array<i64: 8, 128>}, {pipeline_mode = #tpu.pipeline_mode<synchronous>, transform_indices = @transform_6, window_bounds = array<i64: 128, 32>}, {pipeline_mode = #tpu.pipeline_mode<synchronous>, transform_indices = @transform_7, window_bounds = array<i64: 32, 8>}, {pipeline_mode = #tpu.pipeline_mode<synchronous>, transform_indices = @transform_8, window_bounds = array<i64: 1, 64>}, {pipeline_mode = #tpu.pipeline_mode<synchronous>, transform_indices = @transform_9, window_bounds = array<i64: 64, 256>}, {pipeline_mode = #tpu.pipeline_mode<synchronous>, transform_indices = @transform_10, window_bounds = array<i64: 4, 128>}, {pipeline_mode = #tpu.pipeline_mode<synchronous>, transform_indices = @transform_11, window_bounds = array<i64: 1, 128>}, {pipeline_mode = #tpu.pipeline_mode<synchronous>, transform_indices = @transform_12, window_bounds = array<i64: 128, 160>}, {pipeline_mode = #tpu.pipeline_mode<synchronous>, transform_indices = @transform_13, window_bounds = array<i64: 1, 128>}, {pipeline_mode = #tpu.pipeline_mode<synchronous>, transform_indices = @transform_14, window_bounds = array<i64: 16, 128>}, {pipeline_mode = #tpu.pipeline_mode<synchronous>, transform_indices = @transform_15, window_bounds = array<i64: 1, 128>}, {pipeline_mode = #tpu.pipeline_mode<synchronous>, transform_indices = @transform_16, window_bounds = array<i64: 128, 64>}, {pipeline_mode = #tpu.pipeline_mode<synchronous>, transform_indices = @transform_17, window_bounds = array<i64: 1, 64>}, {pipeline_mode = #tpu.pipeline_mode<synchronous>, transform_indices = @transform_18, window_bounds = array<i64: 64, 256>}, {pipeline_mode = #tpu.pipeline_mode<synchronous>, transform_indices = @transform_19, window_bounds = array<i64: 4, 128>}, {pipeline_mode = #tpu.pipeline_mode<synchronous>, transform_indices = @transform_20, window_bounds = array<i64: 1, 128>}, {pipeline_mode = #tpu.pipeline_mode<synchronous>, transform_indices = @transform_21, window_bounds = array<i64: 128, 160>}, {pipeline_mode = #tpu.pipeline_mode<synchronous>, transform_indices = @transform_22, window_bounds = array<i64: 1, 128>}, {pipeline_mode = #tpu.pipeline_mode<synchronous>, transform_indices = @transform_23, window_bounds = array<i64: 16, 128>}, {pipeline_mode = #tpu.pipeline_mode<synchronous>, transform_indices = @transform_24, window_bounds = array<i64: 1, 128>}, {pipeline_mode = #tpu.pipeline_mode<synchronous>, transform_indices = @transform_25, window_bounds = array<i64: 128, 64>}, {transform_indices = @transform_26, window_bounds = array<i64: 8, 128>}]} {
    %c0 = arith.constant 0 : index
    %c0_0 = arith.constant 0 : index
    %0 = vector.load %arg1[%c0, %c0_0] : memref<8x1xi32, #tpu.memory_space<vmem>>, vector<8x1xi32>
    %1 = tpu.iota {dimensions = array<i32: 1>} : vector<8x128xi32>
    %2 = vector.broadcast %0 : vector<8x1xi32> to vector<8x128xi32>
    %3 = arith.cmpi eq, %2, %1 : vector<8x128xi32>
    %cst = arith.constant 1.000000e+00 : f32
    %cst_1 = arith.constant 0.000000e+00 : f32
    %4 = vector.broadcast %cst : f32 to vector<8x128xf32>
    %5 = vector.broadcast %cst_1 : f32 to vector<8x128xf32>
    %6 = arith.select %3, %4, %5 : vector<8x128xi1>, vector<8x128xf32>
    %c0_2 = arith.constant 0 : index
    %c0_3 = arith.constant 0 : index
    %7 = vector.load %arg2[%c0_2, %c0_3] : memref<128x64xbf16, #tpu.memory_space<vmem>>, vector<128x64xbf16>
    %8 = arith.truncf %6 : vector<8x128xf32> to vector<8x128xbf16>
    %cst_4 = arith.constant dense<0.000000e+00> : vector<8x64xf32>
    %9 = tpu.matmul %8, %7, %cst_4 {dimension_numbers = #tpu.dot_dimension_numbers<[1], [0], [0], [1], [0, 0, 1, 1], [], []>} : vector<8x128xbf16>, vector<128x64xbf16>, vector<8x64xf32> -> vector<8x64xf32>
    %c0_5 = arith.constant 0 : index
    %c0_6 = arith.constant 0 : index
    %10 = vector.load %arg5[%c0_5, %c0_6] : memref<128x8xbf16, #tpu.memory_space<vmem>>, vector<128x8xbf16>
    %c0_7 = arith.constant 0 : index
    %c0_8 = arith.constant 0 : index
    %11 = vector.load %arg6[%c0_7, %c0_8] : memref<8x128xbf16, #tpu.memory_space<vmem>>, vector<8x128xbf16>
    %c0_9 = arith.constant 0 : index
    %c0_10 = arith.constant 0 : index
    %12 = vector.load %arg7[%c0_9, %c0_10] : memref<128x32xf32, #tpu.memory_space<vmem>>, vector<128x32xf32>
    %c0_11 = arith.constant 0 : index
    %c0_12 = arith.constant 0 : index
    %13 = vector.load %arg8[%c0_11, %c0_12] : memref<32x8xbf16, #tpu.memory_space<vmem>>, vector<32x8xbf16>
    %c0_13 = arith.constant 0 : index
    %c0_14 = arith.constant 0 : index
    %14 = vector.load %arg9[%c0_13, %c0_14] : memref<1x64xf32, #tpu.memory_space<vmem>>, vector<1x64xf32>
    %15 = arith.mulf %9, %9 : vector<8x64xf32>
    %cst_15 = arith.constant dense<0.000000e+00> : vector<8xf32>
    %16 = vector.multi_reduction <add>, %15, %cst_15 [1] : vector<8x64xf32> to vector<8xf32>
    %17 = vector.shape_cast %16 : vector<8xf32> to vector<8x1xf32>
    %cst_16 = arith.constant 6.400000e+01 : f32
    %18 = vector.broadcast %cst_16 : f32 to vector<8x1xf32>
    %19 = arith.divf %17, %18 : vector<8x1xf32>
    %cst_17 = arith.constant 9.99999974E-6 : f32
    %20 = vector.broadcast %cst_17 : f32 to vector<8x1xf32>
    %21 = arith.addf %19, %20 : vector<8x1xf32>
    %22 = math.rsqrt %21 : vector<8x1xf32>
    %23 = vector.broadcast %22 : vector<8x1xf32> to vector<8x64xf32>
    %24 = arith.mulf %9, %23 : vector<8x64xf32>
    %25 = vector.broadcast %14 : vector<1x64xf32> to vector<8x64xf32>
    %26 = arith.mulf %24, %25 : vector<8x64xf32>
    %c0_18 = arith.constant 0 : index
    %c0_19 = arith.constant 0 : index
    %27 = vector.load %arg10[%c0_18, %c0_19] : memref<64x256xbf16, #tpu.memory_space<vmem>>, vector<64x256xbf16>
    %28 = arith.truncf %26 : vector<8x64xf32> to vector<8x64xbf16>
    %cst_20 = arith.constant dense<0.000000e+00> : vector<8x256xf32>
    %29 = tpu.matmul %28, %27, %cst_20 {dimension_numbers = #tpu.dot_dimension_numbers<[1], [0], [0], [1], [0, 0, 1, 1], [], []>} : vector<8x64xbf16>, vector<64x256xbf16>, vector<8x256xf32> -> vector<8x256xf32>
    %30 = vector.extract_strided_slice %29 {offsets = [0, 0], sizes = [8, 128], strides = [1, 1]} : vector<8x256xf32> to vector<8x128xf32>
    %31 = vector.extract_strided_slice %29 {offsets = [0, 128], sizes = [8, 128], strides = [1, 1]} : vector<8x256xf32> to vector<8x128xf32>
    %32 = arith.truncf %30 : vector<8x128xf32> to vector<8x128xbf16>
    %cst_21 = arith.constant dense<0.000000e+00> : vector<32x128xf32>
    %33 = tpu.matmul %13, %32, %cst_21 {dimension_numbers = #tpu.dot_dimension_numbers<[1], [0], [0], [1], [0, 0, 1, 1], [], []>} : vector<32x8xbf16>, vector<8x128xbf16>, vector<32x128xf32> -> vector<32x128xf32>
    %c0_22 = arith.constant 0 : index
    %c0_23 = arith.constant 0 : index
    %34 = vector.load %arg11[%c0_22, %c0_23] : memref<4x128xf32, #tpu.memory_space<vmem>>, vector<4x128xf32>
    %35 = vector.extract_strided_slice %33 {offsets = [0, 0], sizes = [8, 128], strides = [1, 1]} : vector<32x128xf32> to vector<8x128xf32>
    %36 = vector.extract_strided_slice %34 {offsets = [0, 0], sizes = [1, 128], strides = [1, 1]} : vector<4x128xf32> to vector<1x128xf32>
    %37 = vector.broadcast %36 : vector<1x128xf32> to vector<8x128xf32>
    %38 = arith.mulf %35, %37 : vector<8x128xf32>
    %39 = vector.extract_strided_slice %33 {offsets = [8, 0], sizes = [8, 128], strides = [1, 1]} : vector<32x128xf32> to vector<8x128xf32>
    %40 = vector.extract_strided_slice %34 {offsets = [1, 0], sizes = [1, 128], strides = [1, 1]} : vector<4x128xf32> to vector<1x128xf32>
    %41 = vector.broadcast %40 : vector<1x128xf32> to vector<8x128xf32>
    %42 = arith.mulf %39, %41 : vector<8x128xf32>
    %43 = arith.addf %38, %42 : vector<8x128xf32>
    %44 = vector.extract_strided_slice %33 {offsets = [16, 0], sizes = [8, 128], strides = [1, 1]} : vector<32x128xf32> to vector<8x128xf32>
    %45 = vector.extract_strided_slice %34 {offsets = [2, 0], sizes = [1, 128], strides = [1, 1]} : vector<4x128xf32> to vector<1x128xf32>
    %46 = vector.broadcast %45 : vector<1x128xf32> to vector<8x128xf32>
    %47 = arith.mulf %44, %46 : vector<8x128xf32>
    %48 = arith.addf %43, %47 : vector<8x128xf32>
    %49 = vector.extract_strided_slice %33 {offsets = [24, 0], sizes = [8, 128], strides = [1, 1]} : vector<32x128xf32> to vector<8x128xf32>
    %50 = vector.extract_strided_slice %34 {offsets = [3, 0], sizes = [1, 128], strides = [1, 1]} : vector<4x128xf32> to vector<1x128xf32>
    %51 = vector.broadcast %50 : vector<1x128xf32> to vector<8x128xf32>
    %52 = arith.mulf %49, %51 : vector<8x128xf32>
    %53 = arith.addf %48, %52 : vector<8x128xf32>
    %c0_24 = arith.constant 0 : index
    %c0_25 = arith.constant 0 : index
    %54 = vector.load %arg12[%c0_24, %c0_25] : memref<1x128xf32, #tpu.memory_space<vmem>>, vector<1x128xf32>
    %55 = vector.broadcast %54 : vector<1x128xf32> to vector<8x128xf32>
    %56 = arith.addf %53, %55 : vector<8x128xf32>
    %cst_26 = arith.constant 0.000000e+00 : f32
    %57 = vector.broadcast %cst_26 : f32 to vector<8x128xf32>
    %58 = arith.subf %57, %56 : vector<8x128xf32>
    %59 = math.exp %58 : vector<8x128xf32>
    %cst_27 = arith.constant 1.000000e+00 : f32
    %60 = vector.broadcast %cst_27 : f32 to vector<8x128xf32>
    %61 = arith.addf %60, %59 : vector<8x128xf32>
    %62 = tpu.reciprocal %61 {approx = true} : vector<8x128xf32> -> vector<8x128xf32>
    %63 = arith.mulf %56, %62 : vector<8x128xf32>
    %c0_28 = arith.constant 0 : index
    %c0_29 = arith.constant 0 : index
    %64 = vector.load %arg13[%c0_28, %c0_29] : memref<128x160xbf16, #tpu.memory_space<vmem>>, vector<128x160xbf16>
    %65 = arith.truncf %63 : vector<8x128xf32> to vector<8x128xbf16>
    %cst_30 = arith.constant dense<0.000000e+00> : vector<8x160xf32>
    %66 = tpu.matmul %65, %64, %cst_30 {dimension_numbers = #tpu.dot_dimension_numbers<[1], [0], [0], [1], [0, 0, 1, 1], [], []>} : vector<8x128xbf16>, vector<128x160xbf16>, vector<8x160xf32> -> vector<8x160xf32>
    %67 = vector.extract_strided_slice %66 {offsets = [0, 0], sizes = [8, 128], strides = [1, 1]} : vector<8x160xf32> to vector<8x128xf32>
    %c0_31 = arith.constant 0 : index
    %c0_32 = arith.constant 0 : index
    %68 = vector.load %arg14[%c0_31, %c0_32] : memref<1x128xf32, #tpu.memory_space<vmem>>, vector<1x128xf32>
    %69 = vector.broadcast %68 : vector<1x128xf32> to vector<8x128xf32>
    %70 = arith.addf %67, %69 : vector<8x128xf32>
    %cst_33 = arith.constant 2.000000e+01 : f32
    %71 = vector.broadcast %cst_33 : f32 to vector<8x128xf32>
    %72 = arith.cmpf ogt, %70, %71 : vector<8x128xf32>
    %73 = math.exp %70 : vector<8x128xf32>
    %cst_34 = arith.constant 1.000000e+00 : f32
    %74 = vector.broadcast %cst_34 : f32 to vector<8x128xf32>
    %75 = arith.addf %74, %73 : vector<8x128xf32>
    %76 = math.log %75 : vector<8x128xf32>
    %77 = arith.select %72, %70, %76 : vector<8x128xi1>, vector<8x128xf32>
    %78 = arith.mulf %77, %63 : vector<8x128xf32>
    %79 = tpu.concatenate %77, %78 in 1 : vector<8x128xf32>, vector<8x128xf32> -> vector<8x256xf32>
    %80 = arith.truncf %79 : vector<8x256xf32> to vector<8x256xbf16>
    %cst_35 = arith.constant dense<0.000000e+00> : vector<128x256xf32>
    %81 = tpu.matmul %10, %80, %cst_35 {dimension_numbers = #tpu.dot_dimension_numbers<[1], [0], [0], [1], [0, 0, 1, 1], [], []>} : vector<128x8xbf16>, vector<8x256xbf16>, vector<128x256xf32> -> vector<128x256xf32>
    %82 = vector.extract_strided_slice %66 {offsets = [0, 128], sizes = [8, 32], strides = [1, 1]} : vector<8x160xf32> to vector<8x32xf32>
    %83 = arith.truncf %82 : vector<8x32xf32> to vector<8x32xbf16>
    %cst_36 = arith.constant dense<0.000000e+00> : vector<128x32xf32>
    %84 = tpu.matmul %10, %83, %cst_36 {dimension_numbers = #tpu.dot_dimension_numbers<[1], [0], [0], [1], [0, 0, 1, 1], [], []>} : vector<128x8xbf16>, vector<8x32xbf16>, vector<128x32xf32> -> vector<128x32xf32>
    %85 = arith.mulf %84, %12 : vector<128x32xf32>
    %86 = vector.extract_strided_slice %85 {offsets = [0, 0], sizes = [128, 16], strides = [1, 1]} : vector<128x32xf32> to vector<128x16xf32>
    %cst_37 = arith.constant dense<0.000000e+00> : vector<128xf32>
    %87 = vector.multi_reduction <add>, %86, %cst_37 [1] : vector<128x16xf32> to vector<128xf32>
    %88 = vector.shape_cast %87 : vector<128xf32> to vector<128x1xf32>
    %89 = vector.extract_strided_slice %85 {offsets = [0, 16], sizes = [128, 16], strides = [1, 1]} : vector<128x32xf32> to vector<128x16xf32>
    %cst_38 = arith.constant dense<0.000000e+00> : vector<128xf32>
    %90 = vector.multi_reduction <add>, %89, %cst_38 [1] : vector<128x16xf32> to vector<128xf32>
    %91 = vector.shape_cast %90 : vector<128xf32> to vector<128x1xf32>
    %c0_39 = arith.constant 0 : index
    %c0_40 = arith.constant 0 : index
    %92 = vector.load %arg15[%c0_39, %c0_40] : memref<16x128xf32, #tpu.memory_space<vmem>>, vector<16x128xf32>
    %93 = tpu.concatenate %92, %92, %92, %92, %92, %92, %92, %92 in 0 : vector<16x128xf32>, vector<16x128xf32>, vector<16x128xf32>, vector<16x128xf32>, vector<16x128xf32>, vector<16x128xf32>, vector<16x128xf32>, vector<16x128xf32> -> vector<128x128xf32>
    %94 = vector.extract_strided_slice %81 {offsets = [0, 0], sizes = [128, 128], strides = [1, 1]} : vector<128x256xf32> to vector<128x128xf32>
    %95 = arith.mulf %94, %93 : vector<128x128xf32>
    %96 = math.exp %95 : vector<128x128xf32>
    %c0_41 = arith.constant 0 : index
    %c0_42 = arith.constant 0 : index
    %97 = vector.load %arg28[%c0_41, %c0_42] : memref<128x128xf32, #tpu.memory_space<vmem>>, vector<128x128xf32>
    tpu.vector_store %arg28[%c0_41, %c0_42], %96 {strides = array<i32>} : memref<128x128xf32, #tpu.memory_space<vmem>>, vector<128x128xf32>,
    %98 = vector.extract_strided_slice %81 {offsets = [0, 128], sizes = [128, 128], strides = [1, 1]} : vector<128x256xf32> to vector<128x128xf32>
    %99 = vector.broadcast %88 : vector<128x1xf32> to vector<128x128xf32>
    %100 = arith.mulf %98, %99 : vector<128x128xf32>
    %c0_43 = arith.constant 0 : index
    %c0_44 = arith.constant 0 : index
    %101 = vector.load %arg29[%c0_43, %c0_44] : memref<128x128xf32, #tpu.memory_space<vmem>>, vector<128x128xf32>
    tpu.vector_store %arg29[%c0_43, %c0_44], %100 {strides = array<i32>} : memref<128x128xf32, #tpu.memory_space<vmem>>, vector<128x128xf32>,
    %cst_45 = arith.constant 0.000000e+00 : f32
    %102 = vector.broadcast %cst_45 : f32 to vector<16x128xf32>
    %c0_i32 = arith.constant 0 : i32
    %c16_i32 = arith.constant 16 : i32
    %103 = arith.muli %c0_i32, %c16_i32 : i32
    %104 = tpu.assume_multiple %103, 16 : i32
    %105 = arith.index_cast %104 : i32 to index
    %c0_46 = arith.constant 0 : index
    %106 = vector.load %arg28[%105, %c0_46] : memref<128x128xf32, #tpu.memory_space<vmem>>, vector<16x128xf32>
    %107 = arith.mulf %106, %102 : vector<16x128xf32>
    %108 = arith.index_cast %104 : i32 to index
    %c0_47 = arith.constant 0 : index
    %109 = vector.load %arg29[%108, %c0_47] : memref<128x128xf32, #tpu.memory_space<vmem>>, vector<16x128xf32>
    %110 = arith.addf %107, %109 : vector<16x128xf32>
    %111 = arith.index_cast %104 : i32 to index
    %c0_48 = arith.constant 0 : index
    %112 = vector.load %arg30[%111, %c0_48] : memref<128x128xf32, #tpu.memory_space<vmem>>, vector<16x128xf32>
    tpu.vector_store %arg30[%111, %c0_48], %110 {strides = array<i32>} : memref<128x128xf32, #tpu.memory_space<vmem>>, vector<16x128xf32>,
    %c1_i32 = arith.constant 1 : i32
    %c16_i32_49 = arith.constant 16 : i32
    %113 = arith.muli %c1_i32, %c16_i32_49 : i32
    %114 = tpu.assume_multiple %113, 16 : i32
    %115 = arith.index_cast %114 : i32 to index
    %c0_50 = arith.constant 0 : index
    %116 = vector.load %arg28[%115, %c0_50] : memref<128x128xf32, #tpu.memory_space<vmem>>, vector<16x128xf32>
    %117 = arith.mulf %116, %110 : vector<16x128xf32>
    %118 = arith.index_cast %114 : i32 to index
    %c0_51 = arith.constant 0 : index
    %119 = vector.load %arg29[%118, %c0_51] : memref<128x128xf32, #tpu.memory_space<vmem>>, vector<16x128xf32>
    %120 = arith.addf %117, %119 : vector<16x128xf32>
    %121 = arith.index_cast %114 : i32 to index
    %c0_52 = arith.constant 0 : index
    %122 = vector.load %arg30[%121, %c0_52] : memref<128x128xf32, #tpu.memory_space<vmem>>, vector<16x128xf32>
    tpu.vector_store %arg30[%121, %c0_52], %120 {strides = array<i32>} : memref<128x128xf32, #tpu.memory_space<vmem>>, vector<16x128xf32>,
    %c2_i32 = arith.constant 2 : i32
    %c16_i32_53 = arith.constant 16 : i32
    %123 = arith.muli %c2_i32, %c16_i32_53 : i32
    %124 = tpu.assume_multiple %123, 16 : i32
    %125 = arith.index_cast %124 : i32 to index
    %c0_54 = arith.constant 0 : index
    %126 = vector.load %arg28[%125, %c0_54] : memref<128x128xf32, #tpu.memory_space<vmem>>, vector<16x128xf32>
    %127 = arith.mulf %126, %120 : vector<16x128xf32>
    %128 = arith.index_cast %124 : i32 to index
    %c0_55 = arith.constant 0 : index
    %129 = vector.load %arg29[%128, %c0_55] : memref<128x128xf32, #tpu.memory_space<vmem>>, vector<16x128xf32>
    %130 = arith.addf %127, %129 : vector<16x128xf32>
    %131 = arith.index_cast %124 : i32 to index
    %c0_56 = arith.constant 0 : index
    %132 = vector.load %arg30[%131, %c0_56] : memref<128x128xf32, #tpu.memory_space<vmem>>, vector<16x128xf32>
    tpu.vector_store %arg30[%131, %c0_56], %130 {strides = array<i32>} : memref<128x128xf32, #tpu.memory_space<vmem>>, vector<16x128xf32>,
    %c3_i32 = arith.constant 3 : i32
    %c16_i32_57 = arith.constant 16 : i32
    %133 = arith.muli %c3_i32, %c16_i32_57 : i32
    %134 = tpu.assume_multiple %133, 16 : i32
    %135 = arith.index_cast %134 : i32 to index
    %c0_58 = arith.constant 0 : index
    %136 = vector.load %arg28[%135, %c0_58] : memref<128x128xf32, #tpu.memory_space<vmem>>, vector<16x128xf32>
    %137 = arith.mulf %136, %130 : vector<16x128xf32>
    %138 = arith.index_cast %134 : i32 to index
    %c0_59 = arith.constant 0 : index
    %139 = vector.load %arg29[%138, %c0_59] : memref<128x128xf32, #tpu.memory_space<vmem>>, vector<16x128xf32>
    %140 = arith.addf %137, %139 : vector<16x128xf32>
    %141 = arith.index_cast %134 : i32 to index
    %c0_60 = arith.constant 0 : index
    %142 = vector.load %arg30[%141, %c0_60] : memref<128x128xf32, #tpu.memory_space<vmem>>, vector<16x128xf32>
    tpu.vector_store %arg30[%141, %c0_60], %140 {strides = array<i32>} : memref<128x128xf32, #tpu.memory_space<vmem>>, vector<16x128xf32>,
    %c4_i32 = arith.constant 4 : i32
    %c16_i32_61 = arith.constant 16 : i32
    %143 = arith.muli %c4_i32, %c16_i32_61 : i32
    %144 = tpu.assume_multiple %143, 16 : i32
    %145 = arith.index_cast %144 : i32 to index
    %c0_62 = arith.constant 0 : index
    %146 = vector.load %arg28[%145, %c0_62] : memref<128x128xf32, #tpu.memory_space<vmem>>, vector<16x128xf32>
    %147 = arith.mulf %146, %140 : vector<16x128xf32>
    %148 = arith.index_cast %144 : i32 to index
    %c0_63 = arith.constant 0 : index
    %149 = vector.load %arg29[%148, %c0_63] : memref<128x128xf32, #tpu.memory_space<vmem>>, vector<16x128xf32>
    %150 = arith.addf %147, %149 : vector<16x128xf32>
    %151 = arith.index_cast %144 : i32 to index
    %c0_64 = arith.constant 0 : index
    %152 = vector.load %arg30[%151, %c0_64] : memref<128x128xf32, #tpu.memory_space<vmem>>, vector<16x128xf32>
    tpu.vector_store %arg30[%151, %c0_64], %150 {strides = array<i32>} : memref<128x128xf32, #tpu.memory_space<vmem>>, vector<16x128xf32>,
    %c5_i32 = arith.constant 5 : i32
    %c16_i32_65 = arith.constant 16 : i32
    %153 = arith.muli %c5_i32, %c16_i32_65 : i32
    %154 = tpu.assume_multiple %153, 16 : i32
    %155 = arith.index_cast %154 : i32 to index
    %c0_66 = arith.constant 0 : index
    %156 = vector.load %arg28[%155, %c0_66] : memref<128x128xf32, #tpu.memory_space<vmem>>, vector<16x128xf32>
    %157 = arith.mulf %156, %150 : vector<16x128xf32>
    %158 = arith.index_cast %154 : i32 to index
    %c0_67 = arith.constant 0 : index
    %159 = vector.load %arg29[%158, %c0_67] : memref<128x128xf32, #tpu.memory_space<vmem>>, vector<16x128xf32>
    %160 = arith.addf %157, %159 : vector<16x128xf32>
    %161 = arith.index_cast %154 : i32 to index
    %c0_68 = arith.constant 0 : index
    %162 = vector.load %arg30[%161, %c0_68] : memref<128x128xf32, #tpu.memory_space<vmem>>, vector<16x128xf32>
    tpu.vector_store %arg30[%161, %c0_68], %160 {strides = array<i32>} : memref<128x128xf32, #tpu.memory_space<vmem>>, vector<16x128xf32>,
    %c6_i32 = arith.constant 6 : i32
    %c16_i32_69 = arith.constant 16 : i32
    %163 = arith.muli %c6_i32, %c16_i32_69 : i32
    %164 = tpu.assume_multiple %163, 16 : i32
    %165 = arith.index_cast %164 : i32 to index
    %c0_70 = arith.constant 0 : index
    %166 = vector.load %arg28[%165, %c0_70] : memref<128x128xf32, #tpu.memory_space<vmem>>, vector<16x128xf32>
    %167 = arith.mulf %166, %160 : vector<16x128xf32>
    %168 = arith.index_cast %164 : i32 to index
    %c0_71 = arith.constant 0 : index
    %169 = vector.load %arg29[%168, %c0_71] : memref<128x128xf32, #tpu.memory_space<vmem>>, vector<16x128xf32>
    %170 = arith.addf %167, %169 : vector<16x128xf32>
    %171 = arith.index_cast %164 : i32 to index
    %c0_72 = arith.constant 0 : index
    %172 = vector.load %arg30[%171, %c0_72] : memref<128x128xf32, #tpu.memory_space<vmem>>, vector<16x128xf32>
    tpu.vector_store %arg30[%171, %c0_72], %170 {strides = array<i32>} : memref<128x128xf32, #tpu.memory_space<vmem>>, vector<16x128xf32>,
    %c7_i32 = arith.constant 7 : i32
    %c16_i32_73 = arith.constant 16 : i32
    %173 = arith.muli %c7_i32, %c16_i32_73 : i32
    %174 = tpu.assume_multiple %173, 16 : i32
    %175 = arith.index_cast %174 : i32 to index
    %c0_74 = arith.constant 0 : index
    %176 = vector.load %arg28[%175, %c0_74] : memref<128x128xf32, #tpu.memory_space<vmem>>, vector<16x128xf32>
    %177 = arith.mulf %176, %170 : vector<16x128xf32>
    %178 = arith.index_cast %174 : i32 to index
    %c0_75 = arith.constant 0 : index
    %179 = vector.load %arg29[%178, %c0_75] : memref<128x128xf32, #tpu.memory_space<vmem>>, vector<16x128xf32>
    %180 = arith.addf %177, %179 : vector<16x128xf32>
    %181 = arith.index_cast %174 : i32 to index
    %c0_76 = arith.constant 0 : index
    %182 = vector.load %arg30[%181, %c0_76] : memref<128x128xf32, #tpu.memory_space<vmem>>, vector<16x128xf32>
    tpu.vector_store %arg30[%181, %c0_76], %180 {strides = array<i32>} : memref<128x128xf32, #tpu.memory_space<vmem>>, vector<16x128xf32>,
    %c8_i32 = arith.constant 8 : i32
    %c0_77 = arith.constant 0 : index
    %c0_78 = arith.constant 0 : index
    %183 = vector.load %arg30[%c0_77, %c0_78] : memref<128x128xf32, #tpu.memory_space<vmem>>, vector<128x128xf32>
    %184 = vector.broadcast %91 : vector<128x1xf32> to vector<128x128xf32>
    %185 = arith.mulf %183, %184 : vector<128x128xf32>
    %186 = arith.truncf %185 : vector<128x128xf32> to vector<128x128xbf16>
    %cst_79 = arith.constant dense<0.000000e+00> : vector<8x128xf32>
    %187 = tpu.matmul %11, %186, %cst_79 {dimension_numbers = #tpu.dot_dimension_numbers<[1], [0], [0], [1], [0, 0, 1, 1], [], []>} : vector<8x128xbf16>, vector<128x128xbf16>, vector<8x128xf32> -> vector<8x128xf32>
    %c0_80 = arith.constant 0 : index
    %c0_81 = arith.constant 0 : index
    %188 = vector.load %arg16[%c0_80, %c0_81] : memref<1x128xf32, #tpu.memory_space<vmem>>, vector<1x128xf32>
    %189 = vector.broadcast %188 : vector<1x128xf32> to vector<8x128xf32>
    %190 = arith.mulf %63, %189 : vector<8x128xf32>
    %191 = arith.addf %187, %190 : vector<8x128xf32>
    %cst_82 = arith.constant 0.000000e+00 : f32
    %192 = vector.broadcast %cst_82 : f32 to vector<8x128xf32>
    %193 = arith.subf %192, %31 : vector<8x128xf32>
    %194 = math.exp %193 : vector<8x128xf32>
    %cst_83 = arith.constant 1.000000e+00 : f32
    %195 = vector.broadcast %cst_83 : f32 to vector<8x128xf32>
    %196 = arith.addf %195, %194 : vector<8x128xf32>
    %197 = tpu.reciprocal %196 {approx = true} : vector<8x128xf32> -> vector<8x128xf32>
    %198 = arith.mulf %31, %197 : vector<8x128xf32>
    %199 = arith.mulf %191, %198 : vector<8x128xf32>
    %c0_84 = arith.constant 0 : index
    %c0_85 = arith.constant 0 : index
    %200 = vector.load %arg17[%c0_84, %c0_85] : memref<128x64xbf16, #tpu.memory_space<vmem>>, vector<128x64xbf16>
    %201 = arith.truncf %199 : vector<8x128xf32> to vector<8x128xbf16>
    %cst_86 = arith.constant dense<0.000000e+00> : vector<8x64xf32>
    %202 = tpu.matmul %201, %200, %cst_86 {dimension_numbers = #tpu.dot_dimension_numbers<[1], [0], [0], [1], [0, 0, 1, 1], [], []>} : vector<8x128xbf16>, vector<128x64xbf16>, vector<8x64xf32> -> vector<8x64xf32>
    %203 = arith.addf %202, %9 : vector<8x64xf32>
    %c0_87 = arith.constant 0 : index
    %c0_88 = arith.constant 0 : index
    %204 = vector.load %arg18[%c0_87, %c0_88] : memref<1x64xf32, #tpu.memory_space<vmem>>, vector<1x64xf32>
    %205 = arith.mulf %203, %203 : vector<8x64xf32>
    %cst_89 = arith.constant dense<0.000000e+00> : vector<8xf32>
    %206 = vector.multi_reduction <add>, %205, %cst_89 [1] : vector<8x64xf32> to vector<8xf32>
    %207 = vector.shape_cast %206 : vector<8xf32> to vector<8x1xf32>
    %cst_90 = arith.constant 6.400000e+01 : f32
    %208 = vector.broadcast %cst_90 : f32 to vector<8x1xf32>
    %209 = arith.divf %207, %208 : vector<8x1xf32>
    %cst_91 = arith.constant 9.99999974E-6 : f32
    %210 = vector.broadcast %cst_91 : f32 to vector<8x1xf32>
    %211 = arith.addf %209, %210 : vector<8x1xf32>
    %212 = math.rsqrt %211 : vector<8x1xf32>
    %213 = vector.broadcast %212 : vector<8x1xf32> to vector<8x64xf32>
    %214 = arith.mulf %203, %213 : vector<8x64xf32>
    %215 = vector.broadcast %204 : vector<1x64xf32> to vector<8x64xf32>
    %216 = arith.mulf %214, %215 : vector<8x64xf32>
    %c0_92 = arith.constant 0 : index
    %c0_93 = arith.constant 0 : index
    %217 = vector.load %arg19[%c0_92, %c0_93] : memref<64x256xbf16, #tpu.memory_space<vmem>>, vector<64x256xbf16>
    %218 = arith.truncf %216 : vector<8x64xf32> to vector<8x64xbf16>
    %cst_94 = arith.constant dense<0.000000e+00> : vector<8x256xf32>
    %219 = tpu.matmul %218, %217, %cst_94 {dimension_numbers = #tpu.dot_dimension_numbers<[1], [0], [0], [1], [0, 0, 1, 1], [], []>} : vector<8x64xbf16>, vector<64x256xbf16>, vector<8x256xf32> -> vector<8x256xf32>
    %220 = vector.extract_strided_slice %219 {offsets = [0, 0], sizes = [8, 128], strides = [1, 1]} : vector<8x256xf32> to vector<8x128xf32>
    %221 = vector.extract_strided_slice %219 {offsets = [0, 128], sizes = [8, 128], strides = [1, 1]} : vector<8x256xf32> to vector<8x128xf32>
    %222 = arith.truncf %220 : vector<8x128xf32> to vector<8x128xbf16>
    %cst_95 = arith.constant dense<0.000000e+00> : vector<32x128xf32>
    %223 = tpu.matmul %13, %222, %cst_95 {dimension_numbers = #tpu.dot_dimension_numbers<[1], [0], [0], [1], [0, 0, 1, 1], [], []>} : vector<32x8xbf16>, vector<8x128xbf16>, vector<32x128xf32> -> vector<32x128xf32>
    %c0_96 = arith.constant 0 : index
    %c0_97 = arith.constant 0 : index
    %224 = vector.load %arg20[%c0_96, %c0_97] : memref<4x128xf32, #tpu.memory_space<vmem>>, vector<4x128xf32>
    %225 = vector.extract_strided_slice %223 {offsets = [0, 0], sizes = [8, 128], strides = [1, 1]} : vector<32x128xf32> to vector<8x128xf32>
    %226 = vector.extract_strided_slice %224 {offsets = [0, 0], sizes = [1, 128], strides = [1, 1]} : vector<4x128xf32> to vector<1x128xf32>
    %227 = vector.broadcast %226 : vector<1x128xf32> to vector<8x128xf32>
    %228 = arith.mulf %225, %227 : vector<8x128xf32>
    %229 = vector.extract_strided_slice %223 {offsets = [8, 0], sizes = [8, 128], strides = [1, 1]} : vector<32x128xf32> to vector<8x128xf32>
    %230 = vector.extract_strided_slice %224 {offsets = [1, 0], sizes = [1, 128], strides = [1, 1]} : vector<4x128xf32> to vector<1x128xf32>
    %231 = vector.broadcast %230 : vector<1x128xf32> to vector<8x128xf32>
    %232 = arith.mulf %229, %231 : vector<8x128xf32>
    %233 = arith.addf %228, %232 : vector<8x128xf32>
    %234 = vector.extract_strided_slice %223 {offsets = [16, 0], sizes = [8, 128], strides = [1, 1]} : vector<32x128xf32> to vector<8x128xf32>
    %235 = vector.extract_strided_slice %224 {offsets = [2, 0], sizes = [1, 128], strides = [1, 1]} : vector<4x128xf32> to vector<1x128xf32>
    %236 = vector.broadcast %235 : vector<1x128xf32> to vector<8x128xf32>
    %237 = arith.mulf %234, %236 : vector<8x128xf32>
    %238 = arith.addf %233, %237 : vector<8x128xf32>
    %239 = vector.extract_strided_slice %223 {offsets = [24, 0], sizes = [8, 128], strides = [1, 1]} : vector<32x128xf32> to vector<8x128xf32>
    %240 = vector.extract_strided_slice %224 {offsets = [3, 0], sizes = [1, 128], strides = [1, 1]} : vector<4x128xf32> to vector<1x128xf32>
    %241 = vector.broadcast %240 : vector<1x128xf32> to vector<8x128xf32>
    %242 = arith.mulf %239, %241 : vector<8x128xf32>
    %243 = arith.addf %238, %242 : vector<8x128xf32>
    %c0_98 = arith.constant 0 : index
    %c0_99 = arith.constant 0 : index
    %244 = vector.load %arg21[%c0_98, %c0_99] : memref<1x128xf32, #tpu.memory_space<vmem>>, vector<1x128xf32>
    %245 = vector.broadcast %244 : vector<1x128xf32> to vector<8x128xf32>
    %246 = arith.addf %243, %245 : vector<8x128xf32>
    %cst_100 = arith.constant 0.000000e+00 : f32
    %247 = vector.broadcast %cst_100 : f32 to vector<8x128xf32>
    %248 = arith.subf %247, %246 : vector<8x128xf32>
    %249 = math.exp %248 : vector<8x128xf32>
    %cst_101 = arith.constant 1.000000e+00 : f32
    %250 = vector.broadcast %cst_101 : f32 to vector<8x128xf32>
    %251 = arith.addf %250, %249 : vector<8x128xf32>
    %252 = tpu.reciprocal %251 {approx = true} : vector<8x128xf32> -> vector<8x128xf32>
    %253 = arith.mulf %246, %252 : vector<8x128xf32>
    %c0_102 = arith.constant 0 : index
    %c0_103 = arith.constant 0 : index
    %254 = vector.load %arg22[%c0_102, %c0_103] : memref<128x160xbf16, #tpu.memory_space<vmem>>, vector<128x160xbf16>
    %255 = arith.truncf %253 : vector<8x128xf32> to vector<8x128xbf16>
    %cst_104 = arith.constant dense<0.000000e+00> : vector<8x160xf32>
    %256 = tpu.matmul %255, %254, %cst_104 {dimension_numbers = #tpu.dot_dimension_numbers<[1], [0], [0], [1], [0, 0, 1, 1], [], []>} : vector<8x128xbf16>, vector<128x160xbf16>, vector<8x160xf32> -> vector<8x160xf32>
    %257 = vector.extract_strided_slice %256 {offsets = [0, 0], sizes = [8, 128], strides = [1, 1]} : vector<8x160xf32> to vector<8x128xf32>
    %c0_105 = arith.constant 0 : index
    %c0_106 = arith.constant 0 : index
    %258 = vector.load %arg23[%c0_105, %c0_106] : memref<1x128xf32, #tpu.memory_space<vmem>>, vector<1x128xf32>
    %259 = vector.broadcast %258 : vector<1x128xf32> to vector<8x128xf32>
    %260 = arith.addf %257, %259 : vector<8x128xf32>
    %cst_107 = arith.constant 2.000000e+01 : f32
    %261 = vector.broadcast %cst_107 : f32 to vector<8x128xf32>
    %262 = arith.cmpf ogt, %260, %261 : vector<8x128xf32>
    %263 = math.exp %260 : vector<8x128xf32>
    %cst_108 = arith.constant 1.000000e+00 : f32
    %264 = vector.broadcast %cst_108 : f32 to vector<8x128xf32>
    %265 = arith.addf %264, %263 : vector<8x128xf32>
    %266 = math.log %265 : vector<8x128xf32>
    %267 = arith.select %262, %260, %266 : vector<8x128xi1>, vector<8x128xf32>
    %268 = arith.mulf %267, %253 : vector<8x128xf32>
    %269 = tpu.concatenate %267, %268 in 1 : vector<8x128xf32>, vector<8x128xf32> -> vector<8x256xf32>
    %270 = arith.truncf %269 : vector<8x256xf32> to vector<8x256xbf16>
    %cst_109 = arith.constant dense<0.000000e+00> : vector<128x256xf32>
    %271 = tpu.matmul %10, %270, %cst_109 {dimension_numbers = #tpu.dot_dimension_numbers<[1], [0], [0], [1], [0, 0, 1, 1], [], []>} : vector<128x8xbf16>, vector<8x256xbf16>, vector<128x256xf32> -> vector<128x256xf32>
    %272 = vector.extract_strided_slice %256 {offsets = [0, 128], sizes = [8, 32], strides = [1, 1]} : vector<8x160xf32> to vector<8x32xf32>
    %273 = arith.truncf %272 : vector<8x32xf32> to vector<8x32xbf16>
    %cst_110 = arith.constant dense<0.000000e+00> : vector<128x32xf32>
    %274 = tpu.matmul %10, %273, %cst_110 {dimension_numbers = #tpu.dot_dimension_numbers<[1], [0], [0], [1], [0, 0, 1, 1], [], []>} : vector<128x8xbf16>, vector<8x32xbf16>, vector<128x32xf32> -> vector<128x32xf32>
    %275 = arith.mulf %274, %12 : vector<128x32xf32>
    %276 = vector.extract_strided_slice %275 {offsets = [0, 0], sizes = [128, 16], strides = [1, 1]} : vector<128x32xf32> to vector<128x16xf32>
    %cst_111 = arith.constant dense<0.000000e+00> : vector<128xf32>
    %277 = vector.multi_reduction <add>, %276, %cst_111 [1] : vector<128x16xf32> to vector<128xf32>
    %278 = vector.shape_cast %277 : vector<128xf32> to vector<128x1xf32>
    %279 = vector.extract_strided_slice %275 {offsets = [0, 16], sizes = [128, 16], strides = [1, 1]} : vector<128x32xf32> to vector<128x16xf32>
    %cst_112 = arith.constant dense<0.000000e+00> : vector<128xf32>
    %280 = vector.multi_reduction <add>, %279, %cst_112 [1] : vector<128x16xf32> to vector<128xf32>
    %281 = vector.shape_cast %280 : vector<128xf32> to vector<128x1xf32>
    %c0_113 = arith.constant 0 : index
    %c0_114 = arith.constant 0 : index
    %282 = vector.load %arg24[%c0_113, %c0_114] : memref<16x128xf32, #tpu.memory_space<vmem>>, vector<16x128xf32>
    %283 = tpu.concatenate %282, %282, %282, %282, %282, %282, %282, %282 in 0 : vector<16x128xf32>, vector<16x128xf32>, vector<16x128xf32>, vector<16x128xf32>, vector<16x128xf32>, vector<16x128xf32>, vector<16x128xf32>, vector<16x128xf32> -> vector<128x128xf32>
    %284 = vector.extract_strided_slice %271 {offsets = [0, 0], sizes = [128, 128], strides = [1, 1]} : vector<128x256xf32> to vector<128x128xf32>
    %285 = arith.mulf %284, %283 : vector<128x128xf32>
    %286 = math.exp %285 : vector<128x128xf32>
    %c0_115 = arith.constant 0 : index
    %c0_116 = arith.constant 0 : index
    %287 = vector.load %arg28[%c0_115, %c0_116] : memref<128x128xf32, #tpu.memory_space<vmem>>, vector<128x128xf32>
    tpu.vector_store %arg28[%c0_115, %c0_116], %286 {strides = array<i32>} : memref<128x128xf32, #tpu.memory_space<vmem>>, vector<128x128xf32>,
    %288 = vector.extract_strided_slice %271 {offsets = [0, 128], sizes = [128, 128], strides = [1, 1]} : vector<128x256xf32> to vector<128x128xf32>
    %289 = vector.broadcast %278 : vector<128x1xf32> to vector<128x128xf32>
    %290 = arith.mulf %288, %289 : vector<128x128xf32>
    %c0_117 = arith.constant 0 : index
    %c0_118 = arith.constant 0 : index
    %291 = vector.load %arg29[%c0_117, %c0_118] : memref<128x128xf32, #tpu.memory_space<vmem>>, vector<128x128xf32>
    tpu.vector_store %arg29[%c0_117, %c0_118], %290 {strides = array<i32>} : memref<128x128xf32, #tpu.memory_space<vmem>>, vector<128x128xf32>,
    %cst_119 = arith.constant 0.000000e+00 : f32
    %292 = vector.broadcast %cst_119 : f32 to vector<16x128xf32>
    %c0_i32_120 = arith.constant 0 : i32
    %c16_i32_121 = arith.constant 16 : i32
    %293 = arith.muli %c0_i32_120, %c16_i32_121 : i32
    %294 = tpu.assume_multiple %293, 16 : i32
    %295 = arith.index_cast %294 : i32 to index
    %c0_122 = arith.constant 0 : index
    %296 = vector.load %arg28[%295, %c0_122] : memref<128x128xf32, #tpu.memory_space<vmem>>, vector<16x128xf32>
    %297 = arith.mulf %296, %292 : vector<16x128xf32>
    %298 = arith.index_cast %294 : i32 to index
    %c0_123 = arith.constant 0 : index
    %299 = vector.load %arg29[%298, %c0_123] : memref<128x128xf32, #tpu.memory_space<vmem>>, vector<16x128xf32>
    %300 = arith.addf %297, %299 : vector<16x128xf32>
    %301 = arith.index_cast %294 : i32 to index
    %c0_124 = arith.constant 0 : index
    %302 = vector.load %arg30[%301, %c0_124] : memref<128x128xf32, #tpu.memory_space<vmem>>, vector<16x128xf32>
    tpu.vector_store %arg30[%301, %c0_124], %300 {strides = array<i32>} : memref<128x128xf32, #tpu.memory_space<vmem>>, vector<16x128xf32>,
    %c1_i32_125 = arith.constant 1 : i32
    %c16_i32_126 = arith.constant 16 : i32
    %303 = arith.muli %c1_i32_125, %c16_i32_126 : i32
    %304 = tpu.assume_multiple %303, 16 : i32
    %305 = arith.index_cast %304 : i32 to index
    %c0_127 = arith.constant 0 : index
    %306 = vector.load %arg28[%305, %c0_127] : memref<128x128xf32, #tpu.memory_space<vmem>>, vector<16x128xf32>
    %307 = arith.mulf %306, %300 : vector<16x128xf32>
    %308 = arith.index_cast %304 : i32 to index
    %c0_128 = arith.constant 0 : index
    %309 = vector.load %arg29[%308, %c0_128] : memref<128x128xf32, #tpu.memory_space<vmem>>, vector<16x128xf32>
    %310 = arith.addf %307, %309 : vector<16x128xf32>
    %311 = arith.index_cast %304 : i32 to index
    %c0_129 = arith.constant 0 : index
    %312 = vector.load %arg30[%311, %c0_129] : memref<128x128xf32, #tpu.memory_space<vmem>>, vector<16x128xf32>
    tpu.vector_store %arg30[%311, %c0_129], %310 {strides = array<i32>} : memref<128x128xf32, #tpu.memory_space<vmem>>, vector<16x128xf32>,
    %c2_i32_130 = arith.constant 2 : i32
    %c16_i32_131 = arith.constant 16 : i32
    %313 = arith.muli %c2_i32_130, %c16_i32_131 : i32
    %314 = tpu.assume_multiple %313, 16 : i32
    %315 = arith.index_cast %314 : i32 to index
    %c0_132 = arith.constant 0 : index
    %316 = vector.load %arg28[%315, %c0_132] : memref<128x128xf32, #tpu.memory_space<vmem>>, vector<16x128xf32>
    %317 = arith.mulf %316, %310 : vector<16x128xf32>
    %318 = arith.index_cast %314 : i32 to index
    %c0_133 = arith.constant 0 : index
    %319 = vector.load %arg29[%318, %c0_133] : memref<128x128xf32, #tpu.memory_space<vmem>>, vector<16x128xf32>
    %320 = arith.addf %317, %319 : vector<16x128xf32>
    %321 = arith.index_cast %314 : i32 to index
    %c0_134 = arith.constant 0 : index
    %322 = vector.load %arg30[%321, %c0_134] : memref<128x128xf32, #tpu.memory_space<vmem>>, vector<16x128xf32>
    tpu.vector_store %arg30[%321, %c0_134], %320 {strides = array<i32>} : memref<128x128xf32, #tpu.memory_space<vmem>>, vector<16x128xf32>,
    %c3_i32_135 = arith.constant 3 : i32
    %c16_i32_136 = arith.constant 16 : i32
    %323 = arith.muli %c3_i32_135, %c16_i32_136 : i32
    %324 = tpu.assume_multiple %323, 16 : i32
    %325 = arith.index_cast %324 : i32 to index
    %c0_137 = arith.constant 0 : index
    %326 = vector.load %arg28[%325, %c0_137] : memref<128x128xf32, #tpu.memory_space<vmem>>, vector<16x128xf32>
    %327 = arith.mulf %326, %320 : vector<16x128xf32>
    %328 = arith.index_cast %324 : i32 to index
    %c0_138 = arith.constant 0 : index
    %329 = vector.load %arg29[%328, %c0_138] : memref<128x128xf32, #tpu.memory_space<vmem>>, vector<16x128xf32>
    %330 = arith.addf %327, %329 : vector<16x128xf32>
    %331 = arith.index_cast %324 : i32 to index
    %c0_139 = arith.constant 0 : index
    %332 = vector.load %arg30[%331, %c0_139] : memref<128x128xf32, #tpu.memory_space<vmem>>, vector<16x128xf32>
    tpu.vector_store %arg30[%331, %c0_139], %330 {strides = array<i32>} : memref<128x128xf32, #tpu.memory_space<vmem>>, vector<16x128xf32>,
    %c4_i32_140 = arith.constant 4 : i32
    %c16_i32_141 = arith.constant 16 : i32
    %333 = arith.muli %c4_i32_140, %c16_i32_141 : i32
    %334 = tpu.assume_multiple %333, 16 : i32
    %335 = arith.index_cast %334 : i32 to index
    %c0_142 = arith.constant 0 : index
    %336 = vector.load %arg28[%335, %c0_142] : memref<128x128xf32, #tpu.memory_space<vmem>>, vector<16x128xf32>
    %337 = arith.mulf %336, %330 : vector<16x128xf32>
    %338 = arith.index_cast %334 : i32 to index
    %c0_143 = arith.constant 0 : index
    %339 = vector.load %arg29[%338, %c0_143] : memref<128x128xf32, #tpu.memory_space<vmem>>, vector<16x128xf32>
    %340 = arith.addf %337, %339 : vector<16x128xf32>
    %341 = arith.index_cast %334 : i32 to index
    %c0_144 = arith.constant 0 : index
    %342 = vector.load %arg30[%341, %c0_144] : memref<128x128xf32, #tpu.memory_space<vmem>>, vector<16x128xf32>
    tpu.vector_store %arg30[%341, %c0_144], %340 {strides = array<i32>} : memref<128x128xf32, #tpu.memory_space<vmem>>, vector<16x128xf32>,
    %c5_i32_145 = arith.constant 5 : i32
    %c16_i32_146 = arith.constant 16 : i32
    %343 = arith.muli %c5_i32_145, %c16_i32_146 : i32
    %344 = tpu.assume_multiple %343, 16 : i32
    %345 = arith.index_cast %344 : i32 to index
    %c0_147 = arith.constant 0 : index
    %346 = vector.load %arg28[%345, %c0_147] : memref<128x128xf32, #tpu.memory_space<vmem>>, vector<16x128xf32>
    %347 = arith.mulf %346, %340 : vector<16x128xf32>
    %348 = arith.index_cast %344 : i32 to index
    %c0_148 = arith.constant 0 : index
    %349 = vector.load %arg29[%348, %c0_148] : memref<128x128xf32, #tpu.memory_space<vmem>>, vector<16x128xf32>
    %350 = arith.addf %347, %349 : vector<16x128xf32>
    %351 = arith.index_cast %344 : i32 to index
    %c0_149 = arith.constant 0 : index
    %352 = vector.load %arg30[%351, %c0_149] : memref<128x128xf32, #tpu.memory_space<vmem>>, vector<16x128xf32>
    tpu.vector_store %arg30[%351, %c0_149], %350 {strides = array<i32>} : memref<128x128xf32, #tpu.memory_space<vmem>>, vector<16x128xf32>,
    %c6_i32_150 = arith.constant 6 : i32
    %c16_i32_151 = arith.constant 16 : i32
    %353 = arith.muli %c6_i32_150, %c16_i32_151 : i32
    %354 = tpu.assume_multiple %353, 16 : i32
    %355 = arith.index_cast %354 : i32 to index
    %c0_152 = arith.constant 0 : index
    %356 = vector.load %arg28[%355, %c0_152] : memref<128x128xf32, #tpu.memory_space<vmem>>, vector<16x128xf32>
    %357 = arith.mulf %356, %350 : vector<16x128xf32>
    %358 = arith.index_cast %354 : i32 to index
    %c0_153 = arith.constant 0 : index
    %359 = vector.load %arg29[%358, %c0_153] : memref<128x128xf32, #tpu.memory_space<vmem>>, vector<16x128xf32>
    %360 = arith.addf %357, %359 : vector<16x128xf32>
    %361 = arith.index_cast %354 : i32 to index
    %c0_154 = arith.constant 0 : index
    %362 = vector.load %arg30[%361, %c0_154] : memref<128x128xf32, #tpu.memory_space<vmem>>, vector<16x128xf32>
    tpu.vector_store %arg30[%361, %c0_154], %360 {strides = array<i32>} : memref<128x128xf32, #tpu.memory_space<vmem>>, vector<16x128xf32>,
    %c7_i32_155 = arith.constant 7 : i32
    %c16_i32_156 = arith.constant 16 : i32
    %363 = arith.muli %c7_i32_155, %c16_i32_156 : i32
    %364 = tpu.assume_multiple %363, 16 : i32
    %365 = arith.index_cast %364 : i32 to index
    %c0_157 = arith.constant 0 : index
    %366 = vector.load %arg28[%365, %c0_157] : memref<128x128xf32, #tpu.memory_space<vmem>>, vector<16x128xf32>
    %367 = arith.mulf %366, %360 : vector<16x128xf32>
    %368 = arith.index_cast %364 : i32 to index
    %c0_158 = arith.constant 0 : index
    %369 = vector.load %arg29[%368, %c0_158] : memref<128x128xf32, #tpu.memory_space<vmem>>, vector<16x128xf32>
    %370 = arith.addf %367, %369 : vector<16x128xf32>
    %371 = arith.index_cast %364 : i32 to index
    %c0_159 = arith.constant 0 : index
    %372 = vector.load %arg30[%371, %c0_159] : memref<128x128xf32, #tpu.memory_space<vmem>>, vector<16x128xf32>
    tpu.vector_store %arg30[%371, %c0_159], %370 {strides = array<i32>} : memref<128x128xf32, #tpu.memory_space<vmem>>, vector<16x128xf32>,
    %c8_i32_160 = arith.constant 8 : i32
    %c0_161 = arith.constant 0 : index
    %c0_162 = arith.constant 0 : index
    %373 = vector.load %arg30[%c0_161, %c0_162] : memref<128x128xf32, #tpu.memory_space<vmem>>, vector<128x128xf32>
    %374 = vector.broadcast %281 : vector<128x1xf32> to vector<128x128xf32>
    %375 = arith.mulf %373, %374 : vector<128x128xf32>
    %376 = arith.truncf %375 : vector<128x128xf32> to vector<128x128xbf16>
    %cst_163 = arith.constant dense<0.000000e+00> : vector<8x128xf32>
    %377 = tpu.matmul %11, %376, %cst_163 {dimension_numbers = #tpu.dot_dimension_numbers<[1], [0], [0], [1], [0, 0, 1, 1], [], []>} : vector<8x128xbf16>, vector<128x128xbf16>, vector<8x128xf32> -> vector<8x128xf32>
    %c0_164 = arith.constant 0 : index
    %c0_165 = arith.constant 0 : index
    %378 = vector.load %arg25[%c0_164, %c0_165] : memref<1x128xf32, #tpu.memory_space<vmem>>, vector<1x128xf32>
    %379 = vector.broadcast %378 : vector<1x128xf32> to vector<8x128xf32>
    %380 = arith.mulf %253, %379 : vector<8x128xf32>
    %381 = arith.addf %377, %380 : vector<8x128xf32>
    %cst_166 = arith.constant 0.000000e+00 : f32
    %382 = vector.broadcast %cst_166 : f32 to vector<8x128xf32>
    %383 = arith.subf %382, %221 : vector<8x128xf32>
    %384 = math.exp %383 : vector<8x128xf32>
    %cst_167 = arith.constant 1.000000e+00 : f32
    %385 = vector.broadcast %cst_167 : f32 to vector<8x128xf32>
    %386 = arith.addf %385, %384 : vector<8x128xf32>
    %387 = tpu.reciprocal %386 {approx = true} : vector<8x128xf32> -> vector<8x128xf32>
    %388 = arith.mulf %221, %387 : vector<8x128xf32>
    %389 = arith.mulf %381, %388 : vector<8x128xf32>
    %c0_168 = arith.constant 0 : index
    %c0_169 = arith.constant 0 : index
    %390 = vector.load %arg26[%c0_168, %c0_169] : memref<128x64xbf16, #tpu.memory_space<vmem>>, vector<128x64xbf16>
    %391 = arith.truncf %389 : vector<8x128xf32> to vector<8x128xbf16>
    %cst_170 = arith.constant dense<0.000000e+00> : vector<8x64xf32>
    %392 = tpu.matmul %391, %390, %cst_170 {dimension_numbers = #tpu.dot_dimension_numbers<[1], [0], [0], [1], [0, 0, 1, 1], [], []>} : vector<8x128xbf16>, vector<128x64xbf16>, vector<8x64xf32> -> vector<8x64xf32>
    %393 = arith.addf %392, %203 : vector<8x64xf32>
    %c0_171 = arith.constant 0 : index
    %c0_172 = arith.constant 0 : index
    %394 = vector.load %arg4[%c0_171, %c0_172] : memref<1x64xf32, #tpu.memory_space<vmem>>, vector<1x64xf32>
    %395 = arith.mulf %393, %393 : vector<8x64xf32>
    %cst_173 = arith.constant dense<0.000000e+00> : vector<8xf32>
    %396 = vector.multi_reduction <add>, %395, %cst_173 [1] : vector<8x64xf32> to vector<8xf32>
    %397 = vector.shape_cast %396 : vector<8xf32> to vector<8x1xf32>
    %cst_174 = arith.constant 6.400000e+01 : f32
    %398 = vector.broadcast %cst_174 : f32 to vector<8x1xf32>
    %399 = arith.divf %397, %398 : vector<8x1xf32>
    %cst_175 = arith.constant 9.99999974E-6 : f32
    %400 = vector.broadcast %cst_175 : f32 to vector<8x1xf32>
    %401 = arith.addf %399, %400 : vector<8x1xf32>
    %402 = math.rsqrt %401 : vector<8x1xf32>
    %403 = vector.broadcast %402 : vector<8x1xf32> to vector<8x64xf32>
    %404 = arith.mulf %393, %403 : vector<8x64xf32>
    %405 = vector.broadcast %394 : vector<1x64xf32> to vector<8x64xf32>
    %406 = arith.mulf %404, %405 : vector<8x64xf32>
    %c0_176 = arith.constant 0 : index
    %c0_177 = arith.constant 0 : index
    %407 = vector.load %arg3[%c0_176, %c0_177] : memref<64x128xbf16, #tpu.memory_space<vmem>>, vector<64x128xbf16>
    %408 = arith.truncf %406 : vector<8x64xf32> to vector<8x64xbf16>
    %cst_178 = arith.constant dense<0.000000e+00> : vector<8x128xf32>
    %409 = tpu.matmul %408, %407, %cst_178 {dimension_numbers = #tpu.dot_dimension_numbers<[1], [0], [0], [1], [0, 0, 1, 1], [], []>} : vector<8x64xbf16>, vector<64x128xbf16>, vector<8x128xf32> -> vector<8x128xf32>
    %c0_179 = arith.constant 0 : index
    %c0_180 = arith.constant 0 : index
    %410 = vector.load %arg27[%c0_179, %c0_180] : memref<8x128xf32, #tpu.memory_space<vmem>>, vector<8x128xf32>
    tpu.vector_store %arg27[%c0_179, %c0_180], %409 {strides = array<i32>} : memref<8x128xf32, #tpu.memory_space<vmem>>, vector<8x128xf32>,
    return
  }
  func.func @transform_0(%arg0: i32) -> (i32, i32) {
    %c0_i32 = arith.constant 0 : i32
    %c0_i32_0 = arith.constant 0 : i32
    return %arg0, %c0_i32 : i32, i32
  }
  func.func @transform_1(%arg0: i32) -> (i32, i32) {
    %c0_i32 = arith.constant 0 : i32
    %c0_i32_0 = arith.constant 0 : i32
    %c0_i32_1 = arith.constant 0 : i32
    return %c0_i32, %c0_i32_0 : i32, i32
  }
  func.func @transform_2(%arg0: i32) -> (i32, i32) {
    %c0_i32 = arith.constant 0 : i32
    %c0_i32_0 = arith.constant 0 : i32
    %c0_i32_1 = arith.constant 0 : i32
    return %c0_i32, %c0_i32_0 : i32, i32
  }
  func.func @transform_3(%arg0: i32) -> (i32, i32) {
    %c0_i32 = arith.constant 0 : i32
    %c0_i32_0 = arith.constant 0 : i32
    %c0_i32_1 = arith.constant 0 : i32
    return %c0_i32, %c0_i32_0 : i32, i32
  }
  func.func @transform_4(%arg0: i32) -> (i32, i32) {
    %c0_i32 = arith.constant 0 : i32
    %c0_i32_0 = arith.constant 0 : i32
    %c0_i32_1 = arith.constant 0 : i32
    return %c0_i32, %c0_i32_0 : i32, i32
  }
  func.func @transform_5(%arg0: i32) -> (i32, i32) {
    %c0_i32 = arith.constant 0 : i32
    %c0_i32_0 = arith.constant 0 : i32
    %c0_i32_1 = arith.constant 0 : i32
    return %c0_i32, %c0_i32_0 : i32, i32
  }
  func.func @transform_6(%arg0: i32) -> (i32, i32) {
    %c0_i32 = arith.constant 0 : i32
    %c0_i32_0 = arith.constant 0 : i32
    %c0_i32_1 = arith.constant 0 : i32
    return %c0_i32, %c0_i32_0 : i32, i32
  }
  func.func @transform_7(%arg0: i32) -> (i32, i32) {
    %c0_i32 = arith.constant 0 : i32
    %c0_i32_0 = arith.constant 0 : i32
    %c0_i32_1 = arith.constant 0 : i32
    return %c0_i32, %c0_i32_0 : i32, i32
  }
  func.func @transform_8(%arg0: i32) -> (i32, i32) {
    %c0_i32 = arith.constant 0 : i32
    %c0_i32_0 = arith.constant 0 : i32
    %c0_i32_1 = arith.constant 0 : i32
    return %c0_i32, %c0_i32_0 : i32, i32
  }
  func.func @transform_9(%arg0: i32) -> (i32, i32) {
    %c0_i32 = arith.constant 0 : i32
    %c0_i32_0 = arith.constant 0 : i32
    %c0_i32_1 = arith.constant 0 : i32
    return %c0_i32, %c0_i32_0 : i32, i32
  }
  func.func @transform_10(%arg0: i32) -> (i32, i32) {
    %c0_i32 = arith.constant 0 : i32
    %c0_i32_0 = arith.constant 0 : i32
    %c0_i32_1 = arith.constant 0 : i32
    return %c0_i32, %c0_i32_0 : i32, i32
  }
  func.func @transform_11(%arg0: i32) -> (i32, i32) {
    %c0_i32 = arith.constant 0 : i32
    %c0_i32_0 = arith.constant 0 : i32
    %c0_i32_1 = arith.constant 0 : i32
    return %c0_i32, %c0_i32_0 : i32, i32
  }
  func.func @transform_12(%arg0: i32) -> (i32, i32) {
    %c0_i32 = arith.constant 0 : i32
    %c0_i32_0 = arith.constant 0 : i32
    %c0_i32_1 = arith.constant 0 : i32
    return %c0_i32, %c0_i32_0 : i32, i32
  }
  func.func @transform_13(%arg0: i32) -> (i32, i32) {
    %c0_i32 = arith.constant 0 : i32
    %c0_i32_0 = arith.constant 0 : i32
    %c0_i32_1 = arith.constant 0 : i32
    return %c0_i32, %c0_i32_0 : i32, i32
  }
  func.func @transform_14(%arg0: i32) -> (i32, i32) {
    %c0_i32 = arith.constant 0 : i32
    %c0_i32_0 = arith.constant 0 : i32
    %c0_i32_1 = arith.constant 0 : i32
    return %c0_i32, %c0_i32_0 : i32, i32
  }
  func.func @transform_15(%arg0: i32) -> (i32, i32) {
    %c0_i32 = arith.constant 0 : i32
    %c0_i32_0 = arith.constant 0 : i32
    %c0_i32_1 = arith.constant 0 : i32
    return %c0_i32, %c0_i32_0 : i32, i32
  }
  func.func @transform_16(%arg0: i32) -> (i32, i32) {
    %c0_i32 = arith.constant 0 : i32
    %c0_i32_0 = arith.constant 0 : i32
    %c0_i32_1 = arith.constant 0 : i32
    return %c0_i32, %c0_i32_0 : i32, i32
  }
  func.func @transform_17(%arg0: i32) -> (i32, i32) {
    %c0_i32 = arith.constant 0 : i32
    %c0_i32_0 = arith.constant 0 : i32
    %c0_i32_1 = arith.constant 0 : i32
    return %c0_i32, %c0_i32_0 : i32, i32
  }
  func.func @transform_18(%arg0: i32) -> (i32, i32) {
    %c0_i32 = arith.constant 0 : i32
    %c0_i32_0 = arith.constant 0 : i32
    %c0_i32_1 = arith.constant 0 : i32
    return %c0_i32, %c0_i32_0 : i32, i32
  }
  func.func @transform_19(%arg0: i32) -> (i32, i32) {
    %c0_i32 = arith.constant 0 : i32
    %c0_i32_0 = arith.constant 0 : i32
    %c0_i32_1 = arith.constant 0 : i32
    return %c0_i32, %c0_i32_0 : i32, i32
  }
  func.func @transform_20(%arg0: i32) -> (i32, i32) {
    %c0_i32 = arith.constant 0 : i32
    %c0_i32_0 = arith.constant 0 : i32
    %c0_i32_1 = arith.constant 0 : i32
    return %c0_i32, %c0_i32_0 : i32, i32
  }
  func.func @transform_21(%arg0: i32) -> (i32, i32) {
    %c0_i32 = arith.constant 0 : i32
    %c0_i32_0 = arith.constant 0 : i32
    %c0_i32_1 = arith.constant 0 : i32
    return %c0_i32, %c0_i32_0 : i32, i32
  }
  func.func @transform_22(%arg0: i32) -> (i32, i32) {
    %c0_i32 = arith.constant 0 : i32
    %c0_i32_0 = arith.constant 0 : i32
    %c0_i32_1 = arith.constant 0 : i32
    return %c0_i32, %c0_i32_0 : i32, i32
  }
  func.func @transform_23(%arg0: i32) -> (i32, i32) {
    %c0_i32 = arith.constant 0 : i32
    %c0_i32_0 = arith.constant 0 : i32
    %c0_i32_1 = arith.constant 0 : i32
    return %c0_i32, %c0_i32_0 : i32, i32
  }
  func.func @transform_24(%arg0: i32) -> (i32, i32) {
    %c0_i32 = arith.constant 0 : i32
    %c0_i32_0 = arith.constant 0 : i32
    %c0_i32_1 = arith.constant 0 : i32
    return %c0_i32, %c0_i32_0 : i32, i32
  }
  func.func @transform_25(%arg0: i32) -> (i32, i32) {
    %c0_i32 = arith.constant 0 : i32
    %c0_i32_0 = arith.constant 0 : i32
    %c0_i32_1 = arith.constant 0 : i32
    return %c0_i32, %c0_i32_0 : i32, i32
  }
  func.func @transform_26(%arg0: i32) -> (i32, i32) {
    %c0_i32 = arith.constant 0 : i32
    %c0_i32_0 = arith.constant 0 : i32
    return %arg0, %c0_i32 : i32, i32
  }
}

</mosaic_0001>

<llo_original>
// kernel: mamba_forward_pallas.1
$region0: #{mamba_forward_pallas.1}
  #allocation0 [shape = 'u32[]', space=smem, size = 0x4, offset = 0x4, fixed_abs, tag = 'smem constant byte address 0x4 - core index']
  #allocation1 [shape = 'u32[144,128]{1,0:T(1,128)}', space=vmem, size = 0x12000, scoped, tag = 'internal scratch']
  #allocation2 [shape = 'f32[128,128]{1,0:T(8,128)}', space=vmem, size = 0x10000, scoped, tag = 'scratch operand']
  #allocation3 [shape = 'f32[128,128]{1,0:T(8,128)}', space=vmem, size = 0x10000, scoped, tag = 'scratch operand']
  #allocation4 [shape = 'f32[128,128]{1,0:T(8,128)}', space=vmem, size = 0x10000, scoped, tag = 'scratch operand']
  %s0 = inlined_call_operand.vmem [shape: s32[16,1], index: 0, kind: input, shape index: {}]
  %s1 = inlined_call_operand.vmem [shape: bf16[128,64], index: 1, kind: input, shape index: {}]
  %s2 = inlined_call_operand.vmem [shape: bf16[64,128], index: 2, kind: input, shape index: {}]
  %s3 = inlined_call_operand.vmem [shape: f32[1,64], index: 3, kind: input, shape index: {}]
  %s4 = inlined_call_operand.vmem [shape: bf16[128,8], index: 4, kind: input, shape index: {}]
  %s5 = inlined_call_operand.vmem [shape: bf16[8,128], index: 5, kind: input, shape index: {}]
  %s6 = inlined_call_operand.vmem [shape: f32[128,32], index: 6, kind: input, shape index: {}]
  %s7 = inlined_call_operand.vmem [shape: bf16[32,8], index: 7, kind: input, shape index: {}]
  %s8 = inlined_call_operand.vmem [shape: f32[1,64], index: 8, kind: input, shape index: {}]
  %s9 = inlined_call_operand.vmem [shape: bf16[64,256], index: 9, kind: input, shape index: {}]
  %s10 = inlined_call_operand.vmem [shape: f32[4,128], index: 10, kind: input, shape index: {}]
  %s11 = inlined_call_operand.vmem [shape: f32[1,128], index: 11, kind: input, shape index: {}]
  %s12 = inlined_call_operand.vmem [shape: bf16[128,160], index: 12, kind: input, shape index: {}]
  %s13 = inlined_call_operand.vmem [shape: f32[1,128], index: 13, kind: input, shape index: {}]
  %s14 = inlined_call_operand.vmem [shape: f32[16,128], index: 14, kind: input, shape index: {}]
  %s15 = inlined_call_operand.vmem [shape: f32[1,128], index: 15, kind: input, shape index: {}]
  %s16 = inlined_call_operand.vmem [shape: bf16[128,64], index: 16, kind: input, shape index: {}]
  %s17 = inlined_call_operand.vmem [shape: f32[1,64], index: 17, kind: input, shape index: {}]
  %s18 = inlined_call_operand.vmem [shape: bf16[64,256], index: 18, kind: input, shape index: {}]
  %s19 = inlined_call_operand.vmem [shape: f32[4,128], index: 19, kind: input, shape index: {}]
  %s20 = inlined_call_operand.vmem [shape: f32[1,128], index: 20, kind: input, shape index: {}]
  %s21 = inlined_call_operand.vmem [shape: bf16[128,160], index: 21, kind: input, shape index: {}]
  %s22 = inlined_call_operand.vmem [shape: f32[1,128], index: 22, kind: input, shape index: {}]
  %s23 = inlined_call_operand.vmem [shape: f32[16,128], index: 23, kind: input, shape index: {}]
  %s24 = inlined_call_operand.vmem [shape: f32[1,128], index: 24, kind: input, shape index: {}]
  %s25 = inlined_call_operand.vmem [shape: bf16[128,64], index: 25, kind: input, shape index: {}]
  %s26 = inlined_call_operand.hbm [shape: f32[16,128], index: 26, kind: output, shape index: {}]
  %s27 = sld [smem:[#allocation0]]
  $region137: #{mamba_forward_pallas.1} parent=0
    _
  %s29 = ssub.s32 1, %s27
  %s30 = scalar_select 0, %s29, %s27
  $region1: #{mamba_forward_pallas.1} parent=0
    #allocation5 [shape = 'u8[8192]{0}', space=vmem, size = 0x2000, scoped, tag = 'output window, operand 0']
    #allocation6 [shape = 's32[2]{0}', space=sflag, size = 0x8, scoped, tag = 'scoped memory for mamba_forward_pallas.1']
    %31 = vsyncpa [#allocation6], 0
    %s32 = scalar_lea.sflag [#allocation6], 1
    %33 = vsyncpa %s32, 0
    loop: start=0, step=1, limit=4
    $region2: #{mamba_forward_pallas.1} parent=1 // loop_pre_header
      _
    $region3: #{mamba_forward_pallas.1} parent=1 // loop_header
      %s35 = sphi 0, %s39
      %p36 = scmp.ge.s32.totalorder %s35, 4
      %s45 = sphi 0, %s47
      %s48 = sphi 0, %s45
      %s49 = sphi 0, %s48
      %s65 = sphi 0, %s49
      %s69 = sphi 0, %s69
      %s71 = sphi 0, %s69
      %s72 = sphi 0, %s71
      %s86 = sphi 0, %s72
      %s90 = sphi 0, %s90
      %s92 = sphi 0, %s90
      %s93 = sphi 0, %s92
      %s107 = sphi 0, %s93
      %s111 = sphi 0, %s111
      %s113 = sphi 0, %s111
      %s114 = sphi 0, %s113
      %s128 = sphi 0, %s114
      %s132 = sphi 0, %s132
      %s134 = sphi 0, %s132
      %s135 = sphi 0, %s134
      %s149 = sphi 0, %s135
      %s153 = sphi 0, %s153
      %s155 = sphi 0, %s153
      %s156 = sphi 0, %s155
      %s170 = sphi 0, %s156
      %s174 = sphi 0, %s174
      %s176 = sphi 0, %s174
      %s177 = sphi 0, %s176
      %s191 = sphi 0, %s177
      %s195 = sphi 0, %s195
      %s197 = sphi 0, %s195
      %s198 = sphi 0, %s197
      %s212 = sphi 0, %s198
      %s216 = sphi 0, %s216
      %s218 = sphi 0, %s216
      %s219 = sphi 0, %s218
      %s233 = sphi 0, %s219
      %s237 = sphi 0, %s237
      %s239 = sphi 0, %s237
      %s240 = sphi 0, %s239
      %s254 = sphi 0, %s240
      %s258 = sphi 0, %s258
      %s260 = sphi 0, %s258
      %s261 = sphi 0, %s260
      %s275 = sphi 0, %s261
      %s279 = sphi 0, %s279
      %s281 = sphi 0, %s279
      %s282 = sphi 0, %s281
      %s296 = sphi 0, %s282
      %s300 = sphi 0, %s300
      %s302 = sphi 0, %s300
      %s303 = sphi 0, %s302
      %s317 = sphi 0, %s303
      %s321 = sphi 0, %s321
      %s323 = sphi 0, %s321
      %s324 = sphi 0, %s323
      %s338 = sphi 0, %s324
      %s342 = sphi 0, %s342
      %s344 = sphi 0, %s342
      %s345 = sphi 0, %s344
      %s359 = sphi 0, %s345
      %s363 = sphi 0, %s363
      %s365 = sphi 0, %s363
      %s366 = sphi 0, %s365
      %s380 = sphi 0, %s366
      %s384 = sphi 0, %s384
      %s386 = sphi 0, %s384
      %s387 = sphi 0, %s386
      %s401 = sphi 0, %s387
      %s405 = sphi 0, %s405
      %s407 = sphi 0, %s405
      %s408 = sphi 0, %s407
      %s422 = sphi 0, %s408
      %s426 = sphi 0, %s426
      %s428 = sphi 0, %s426
      %s429 = sphi 0, %s428
      %s443 = sphi 0, %s429
      %s447 = sphi 0, %s447
      %s449 = sphi 0, %s447
      %s450 = sphi 0, %s449
      %s464 = sphi 0, %s450
      %s468 = sphi 0, %s468
      %s470 = sphi 0, %s468
      %s471 = sphi 0, %s470
      %s485 = sphi 0, %s471
      %s489 = sphi 0, %s489
      %s491 = sphi 0, %s489
      %s492 = sphi 0, %s491
      %s506 = sphi 0, %s492
      %s510 = sphi 0, %s510
      %s512 = sphi 0, %s510
      %s513 = sphi 0, %s512
      %s527 = sphi 0, %s513
      %s531 = sphi 0, %s531
      %s533 = sphi 0, %s531
      %s534 = sphi 0, %s533
      %s548 = sphi 0, %s534
      %s552 = sphi 0, %s552
      %s554 = sphi 0, %s552
      %s555 = sphi 0, %s554
      %s569 = sphi 0, %s555
      %s573 = sphi 0, %s573
      %s575 = sphi 0, %s573
      %s576 = sphi 0, %s575
      %s590 = sphi 0, %s576
      %s596 = sphi 0, %s598
      %s599 = sphi 0, %s596
      %s600 = sphi 0, %s599
      %s616 = sphi 0, %s600
    $region4: #{mamba_forward_pallas.1} parent=1 // loop_header_branch
      %38 = sbr.rel (%p36) target = $region8
    $region5: #{mamba_forward_pallas.1} parent=1 // loop_body
      %s40 = ssub.s32 %s35, 1
      %s41 = ssub.s32 %s35, 2
      %s42 = sadd.s32 %s35, 1
      %s43 = ssub.s32 %s35, %s42
      %p44 = scmp.eq.s32.totalorder %s43, 0
      %s46 = sadd.s32 %s45, 1
      %s47 = scalar_select %p44, %s45, %s46
      %p50 = pneg %p44
      %p51 = scmp.eq.s32.totalorder %s35, 1
      %p52 = por %p50, %p51
      %p53 = scmp.ne.s32.totalorder %s45, %s48
      %p54 = scmp.eq.s32.totalorder %s35, 0
      %p55 = por %p53, %p54
      %p56 = scmp.ne.s32.totalorder %s45, %s48
      %p57 = scmp.eq.s32.totalorder %s40, 1
      %p58 = por %p56, %p57
      %p59 = scmp.ne.s32.totalorder %s48, %s49
      %p60 = scmp.eq.s32.totalorder %s40, 0
      %p61 = por %p59, %p60
      %p62 = scmp.ne.s32.totalorder %s48, %s49
      %p63 = scmp.eq.s32.totalorder %s41, 1
      %p64 = por %p62, %p63
      %p66 = scmp.ne.s32.totalorder %s49, %s65
      %p67 = scmp.eq.s32.totalorder %s41, 0
      %p68 = por %p66, %p67
      %s70 = sadd.s32 %s69, 1
      %p73 = scmp.eq.s32.totalorder %s35, 1
      %p74 = scmp.ne.s32.totalorder %s69, %s71
      %p75 = scmp.eq.s32.totalorder %s35, 0
      %p76 = por %p74, %p75
      %p77 = scmp.ne.s32.totalorder %s69, %s71
      %p78 = scmp.eq.s32.totalorder %s40, 1
      %p79 = por %p77, %p78
      %p80 = scmp.ne.s32.totalorder %s71, %s72
      %p81 = scmp.eq.s32.totalorder %s40, 0
      %p82 = por %p80, %p81
      %p83 = scmp.ne.s32.totalorder %s71, %s72
      %p84 = scmp.eq.s32.totalorder %s41, 1
      %p85 = por %p83, %p84
      %p87 = scmp.ne.s32.totalorder %s72, %s86
      %p88 = scmp.eq.s32.totalorder %s41, 0
      %p89 = por %p87, %p88
      %s91 = sadd.s32 %s90, 1
      %p94 = scmp.eq.s32.totalorder %s35, 1
      %p95 = scmp.ne.s32.totalorder %s90, %s92
      %p96 = scmp.eq.s32.totalorder %s35, 0
      %p97 = por %p95, %p96
      %p98 = scmp.ne.s32.totalorder %s90, %s92
      %p99 = scmp.eq.s32.totalorder %s40, 1
      %p100 = por %p98, %p99
      %p101 = scmp.ne.s32.totalorder %s92, %s93
      %p102 = scmp.eq.s32.totalorder %s40, 0
      %p103 = por %p101, %p102
      %p104 = scmp.ne.s32.totalorder %s92, %s93
      %p105 = scmp.eq.s32.totalorder %s41, 1
      %p106 = por %p104, %p105
      %p108 = scmp.ne.s32.totalorder %s93, %s107
      %p109 = scmp.eq.s32.totalorder %s41, 0
      %p110 = por %p108, %p109
      %s112 = sadd.s32 %s111, 1
      %p115 = scmp.eq.s32.totalorder %s35, 1
      %p116 = scmp.ne.s32.totalorder %s111, %s113
      %p117 = scmp.eq.s32.totalorder %s35, 0
      %p118 = por %p116, %p117
      %p119 = scmp.ne.s32.totalorder %s111, %s113
      %p120 = scmp.eq.s32.totalorder %s40, 1
      %p121 = por %p119, %p120
      %p122 = scmp.ne.s32.totalorder %s113, %s114
      %p123 = scmp.eq.s32.totalorder %s40, 0
      %p124 = por %p122, %p123
      %p125 = scmp.ne.s32.totalorder %s113, %s114
      %p126 = scmp.eq.s32.totalorder %s41, 1
      %p127 = por %p125, %p126
      %p129 = scmp.ne.s32.totalorder %s114, %s128
      %p130 = scmp.eq.s32.totalorder %s41, 0
      %p131 = por %p129, %p130
      %s133 = sadd.s32 %s132, 1
      %p136 = scmp.eq.s32.totalorder %s35, 1
      %p137 = scmp.ne.s32.totalorder %s132, %s134
      %p138 = scmp.eq.s32.totalorder %s35, 0
      %p139 = por %p137, %p138
      %p140 = scmp.ne.s32.totalorder %s132, %s134
      %p141 = scmp.eq.s32.totalorder %s40, 1
      %p142 = por %p140, %p141
      %p143 = scmp.ne.s32.totalorder %s134, %s135
      %p144 = scmp.eq.s32.totalorder %s40, 0
      %p145 = por %p143, %p144
      %p146 = scmp.ne.s32.totalorder %s134, %s135
      %p147 = scmp.eq.s32.totalorder %s41, 1
      %p148 = por %p146, %p147
      %p150 = scmp.ne.s32.totalorder %s135, %s149
      %p151 = scmp.eq.s32.totalorder %s41, 0
      %p152 = por %p150, %p151
      %s154 = sadd.s32 %s153, 1
      %p157 = scmp.eq.s32.totalorder %s35, 1
      %p158 = scmp.ne.s32.totalorder %s153, %s155
      %p159 = scmp.eq.s32.totalorder %s35, 0
      %p160 = por %p158, %p159
      %p161 = scmp.ne.s32.totalorder %s153, %s155
      %p162 = scmp.eq.s32.totalorder %s40, 1
      %p163 = por %p161, %p162
      %p164 = scmp.ne.s32.totalorder %s155, %s156
      %p165 = scmp.eq.s32.totalorder %s40, 0
      %p166 = por %p164, %p165
      %p167 = scmp.ne.s32.totalorder %s155, %s156
      %p168 = scmp.eq.s32.totalorder %s41, 1
      %p169 = por %p167, %p168
      %p171 = scmp.ne.s32.totalorder %s156, %s170
      %p172 = scmp.eq.s32.totalorder %s41, 0
      %p173 = por %p171, %p172
      %s175 = sadd.s32 %s174, 1
      %p178 = scmp.eq.s32.totalorder %s35, 1
      %p179 = scmp.ne.s32.totalorder %s174, %s176
      %p180 = scmp.eq.s32.totalorder %s35, 0
      %p181 = por %p179, %p180
      %p182 = scmp.ne.s32.totalorder %s174, %s176
      %p183 = scmp.eq.s32.totalorder %s40, 1
      %p184 = por %p182, %p183
      %p185 = scmp.ne.s32.totalorder %s176, %s177
      %p186 = scmp.eq.s32.totalorder %s40, 0
      %p187 = por %p185, %p186
      %p188 = scmp.ne.s32.totalorder %s176, %s177
      %p189 = scmp.eq.s32.totalorder %s41, 1
      %p190 = por %p188, %p189
      %p192 = scmp.ne.s32.totalorder %s177, %s191
      %p193 = scmp.eq.s32.totalorder %s41, 0
      %p194 = por %p192, %p193
      %s196 = sadd.s32 %s195, 1
      %p199 = scmp.eq.s32.totalorder %s35, 1
      %p200 = scmp.ne.s32.totalorder %s195, %s197
      %p201 = scmp.eq.s32.totalorder %s35, 0
      %p202 = por %p200, %p201
      %p203 = scmp.ne.s32.totalorder %s195, %s197
      %p204 = scmp.eq.s32.totalorder %s40, 1
      %p205 = por %p203, %p204
      %p206 = scmp.ne.s32.totalorder %s197, %s198
      %p207 = scmp.eq.s32.totalorder %s40, 0
      %p208 = por %p206, %p207
      %p209 = scmp.ne.s32.totalorder %s197, %s198
      %p210 = scmp.eq.s32.totalorder %s41, 1
      %p211 = por %p209, %p210
      %p213 = scmp.ne.s32.totalorder %s198, %s212
      %p214 = scmp.eq.s32.totalorder %s41, 0
      %p215 = por %p213, %p214
      %s217 = sadd.s32 %s216, 1
      %p220 = scmp.eq.s32.totalorder %s35, 1
      %p221 = scmp.ne.s32.totalorder %s216, %s218
      %p222 = scmp.eq.s32.totalorder %s35, 0
      %p223 = por %p221, %p222
      %p224 = scmp.ne.s32.totalorder %s216, %s218
      %p225 = scmp.eq.s32.totalorder %s40, 1
      %p226 = por %p224, %p225
      %p227 = scmp.ne.s32.totalorder %s218, %s219
      %p228 = scmp.eq.s32.totalorder %s40, 0
      %p229 = por %p227, %p228
      %p230 = scmp.ne.s32.totalorder %s218, %s219
      %p231 = scmp.eq.s32.totalorder %s41, 1
      %p232 = por %p230, %p231
      %p234 = scmp.ne.s32.totalorder %s219, %s233
      %p235 = scmp.eq.s32.totalorder %s41, 0
      %p236 = por %p234, %p235
      %s238 = sadd.s32 %s237, 1
      %p241 = scmp.eq.s32.totalorder %s35, 1
      %p242 = scmp.ne.s32.totalorder %s237, %s239
      %p243 = scmp.eq.s32.totalorder %s35, 0
      %p244 = por %p242, %p243
      %p245 = scmp.ne.s32.totalorder %s237, %s239
      %p246 = scmp.eq.s32.totalorder %s40, 1
      %p247 = por %p245, %p246
      %p248 = scmp.ne.s32.totalorder %s239, %s240
      %p249 = scmp.eq.s32.totalorder %s40, 0
      %p250 = por %p248, %p249
      %p251 = scmp.ne.s32.totalorder %s239, %s240
      %p252 = scmp.eq.s32.totalorder %s41, 1
      %p253 = por %p251, %p252
      %p255 = scmp.ne.s32.totalorder %s240, %s254
      %p256 = scmp.eq.s32.totalorder %s41, 0
      %p257 = por %p255, %p256
      %s259 = sadd.s32 %s258, 1
      %p262 = scmp.eq.s32.totalorder %s35, 1
      %p263 = scmp.ne.s32.totalorder %s258, %s260
      %p264 = scmp.eq.s32.totalorder %s35, 0
      %p265 = por %p263, %p264
      %p266 = scmp.ne.s32.totalorder %s258, %s260
      %p267 = scmp.eq.s32.totalorder %s40, 1
      %p268 = por %p266, %p267
      %p269 = scmp.ne.s32.totalorder %s260, %s261
      %p270 = scmp.eq.s32.totalorder %s40, 0
      %p271 = por %p269, %p270
      %p272 = scmp.ne.s32.totalorder %s260, %s261
      %p273 = scmp.eq.s32.totalorder %s41, 1
      %p274 = por %p272, %p273
      %p276 = scmp.ne.s32.totalorder %s261, %s275
      %p277 = scmp.eq.s32.totalorder %s41, 0
      %p278 = por %p276, %p277
      %s280 = sadd.s32 %s279, 1
      %p283 = scmp.eq.s32.totalorder %s35, 1
      %p284 = scmp.ne.s32.totalorder %s279, %s281
      %p285 = scmp.eq.s32.totalorder %s35, 0
      %p286 = por %p284, %p285
      %p287 = scmp.ne.s32.totalorder %s279, %s281
      %p288 = scmp.eq.s32.totalorder %s40, 1
      %p289 = por %p287, %p288
      %p290 = scmp.ne.s32.totalorder %s281, %s282
      %p291 = scmp.eq.s32.totalorder %s40, 0
      %p292 = por %p290, %p291
      %p293 = scmp.ne.s32.totalorder %s281, %s282
      %p294 = scmp.eq.s32.totalorder %s41, 1
      %p295 = por %p293, %p294
      %p297 = scmp.ne.s32.totalorder %s282, %s296
      %p298 = scmp.eq.s32.totalorder %s41, 0
      %p299 = por %p297, %p298
      %s301 = sadd.s32 %s300, 1
      %p304 = scmp.eq.s32.totalorder %s35, 1
      %p305 = scmp.ne.s32.totalorder %s300, %s302
      %p306 = scmp.eq.s32.totalorder %s35, 0
      %p307 = por %p305, %p306
      %p308 = scmp.ne.s32.totalorder %s300, %s302
      %p309 = scmp.eq.s32.totalorder %s40, 1
      %p310 = por %p308, %p309
      %p311 = scmp.ne.s32.totalorder %s302, %s303
      %p312 = scmp.eq.s32.totalorder %s40, 0
      %p313 = por %p311, %p312
      %p314 = scmp.ne.s32.totalorder %s302, %s303
      %p315 = scmp.eq.s32.totalorder %s41, 1
      %p316 = por %p314, %p315
      %p318 = scmp.ne.s32.totalorder %s303, %s317
      %p319 = scmp.eq.s32.totalorder %s41, 0
      %p320 = por %p318, %p319
      %s322 = sadd.s32 %s321, 1
      %p325 = scmp.eq.s32.totalorder %s35, 1
      %p326 = scmp.ne.s32.totalorder %s321, %s323
      %p327 = scmp.eq.s32.totalorder %s35, 0
      %p328 = por %p326, %p327
      %p329 = scmp.ne.s32.totalorder %s321, %s323
      %p330 = scmp.eq.s32.totalorder %s40, 1
      %p331 = por %p329, %p330
      %p332 = scmp.ne.s32.totalorder %s323, %s324
      %p333 = scmp.eq.s32.totalorder %s40, 0
      %p334 = por %p332, %p333
      %p335 = scmp.ne.s32.totalorder %s323, %s324
      %p336 = scmp.eq.s32.totalorder %s41, 1
      %p337 = por %p335, %p336
      %p339 = scmp.ne.s32.totalorder %s324, %s338
      %p340 = scmp.eq.s32.totalorder %s41, 0
      %p341 = por %p339, %p340
      %s343 = sadd.s32 %s342, 1
      %p346 = scmp.eq.s32.totalorder %s35, 1
      %p347 = scmp.ne.s32.totalorder %s342, %s344
      %p348 = scmp.eq.s32.totalorder %s35, 0
      %p349 = por %p347, %p348
      %p350 = scmp.ne.s32.totalorder %s342, %s344
      %p351 = scmp.eq.s32.totalorder %s40, 1
      %p352 = por %p350, %p351
      %p353 = scmp.ne.s32.totalorder %s344, %s345
      %p354 = scmp.eq.s32.totalorder %s40, 0
      %p355 = por %p353, %p354
      %p356 = scmp.ne.s32.totalorder %s344, %s345
      %p357 = scmp.eq.s32.totalorder %s41, 1
      %p358 = por %p356, %p357
      %p360 = scmp.ne.s32.totalorder %s345, %s359
      %p361 = scmp.eq.s32.totalorder %s41, 0
      %p362 = por %p360, %p361
      %s364 = sadd.s32 %s363, 1
      %p367 = scmp.eq.s32.totalorder %s35, 1
      %p368 = scmp.ne.s32.totalorder %s363, %s365
      %p369 = scmp.eq.s32.totalorder %s35, 0
      %p370 = por %p368, %p369
      %p371 = scmp.ne.s32.totalorder %s363, %s365
      %p372 = scmp.eq.s32.totalorder %s40, 1
      %p373 = por %p371, %p372
      %p374 = scmp.ne.s32.totalorder %s365, %s366
      %p375 = scmp.eq.s32.totalorder %s40, 0
      %p376 = por %p374, %p375
      %p377 = scmp.ne.s32.totalorder %s365, %s366
      %p378 = scmp.eq.s32.totalorder %s41, 1
      %p379 = por %p377, %p378
      %p381 = scmp.ne.s32.totalorder %s366, %s380
      %p382 = scmp.eq.s32.totalorder %s41, 0
      %p383 = por %p381, %p382
      %s385 = sadd.s32 %s384, 1
      %p388 = scmp.eq.s32.totalorder %s35, 1
      %p389 = scmp.ne.s32.totalorder %s384, %s386
      %p390 = scmp.eq.s32.totalorder %s35, 0
      %p391 = por %p389, %p390
      %p392 = scmp.ne.s32.totalorder %s384, %s386
      %p393 = scmp.eq.s32.totalorder %s40, 1
      %p394 = por %p392, %p393
      %p395 = scmp.ne.s32.totalorder %s386, %s387
      %p396 = scmp.eq.s32.totalorder %s40, 0
      %p397 = por %p395, %p396
      %p398 = scmp.ne.s32.totalorder %s386, %s387
      %p399 = scmp.eq.s32.totalorder %s41, 1
      %p400 = por %p398, %p399
      %p402 = scmp.ne.s32.totalorder %s387, %s401
      %p403 = scmp.eq.s32.totalorder %s41, 0
      %p404 = por %p402, %p403
      %s406 = sadd.s32 %s405, 1
      %p409 = scmp.eq.s32.totalorder %s35, 1
      %p410 = scmp.ne.s32.totalorder %s405, %s407
      %p411 = scmp.eq.s32.totalorder %s35, 0
      %p412 = por %p410, %p411
      %p413 = scmp.ne.s32.totalorder %s405, %s407
      %p414 = scmp.eq.s32.totalorder %s40, 1
      %p415 = por %p413, %p414
      %p416 = scmp.ne.s32.totalorder %s407, %s408
      %p417 = scmp.eq.s32.totalorder %s40, 0
      %p418 = por %p416, %p417
      %p419 = scmp.ne.s32.totalorder %s407, %s408
      %p420 = scmp.eq.s32.totalorder %s41, 1
      %p421 = por %p419, %p420
      %p423 = scmp.ne.s32.totalorder %s408, %s422
      %p424 = scmp.eq.s32.totalorder %s41, 0
      %p425 = por %p423, %p424
      %s427 = sadd.s32 %s426, 1
      %p430 = scmp.eq.s32.totalorder %s35, 1
      %p431 = scmp.ne.s32.totalorder %s426, %s428
      %p432 = scmp.eq.s32.totalorder %s35, 0
      %p433 = por %p431, %p432
      %p434 = scmp.ne.s32.totalorder %s426, %s428
      %p435 = scmp.eq.s32.totalorder %s40, 1
      %p436 = por %p434, %p435
      %p437 = scmp.ne.s32.totalorder %s428, %s429
      %p438 = scmp.eq.s32.totalorder %s40, 0
      %p439 = por %p437, %p438
      %p440 = scmp.ne.s32.totalorder %s428, %s429
      %p441 = scmp.eq.s32.totalorder %s41, 1
      %p442 = por %p440, %p441
      %p444 = scmp.ne.s32.totalorder %s429, %s443
      %p445 = scmp.eq.s32.totalorder %s41, 0
      %p446 = por %p444, %p445
      %s448 = sadd.s32 %s447, 1
      %p451 = scmp.eq.s32.totalorder %s35, 1
      %p452 = scmp.ne.s32.totalorder %s447, %s449
      %p453 = scmp.eq.s32.totalorder %s35, 0
      %p454 = por %p452, %p453
      %p455 = scmp.ne.s32.totalorder %s447, %s449
      %p456 = scmp.eq.s32.totalorder %s40, 1
      %p457 = por %p455, %p456
      %p458 = scmp.ne.s32.totalorder %s449, %s450
      %p459 = scmp.eq.s32.totalorder %s40, 0
      %p460 = por %p458, %p459
      %p461 = scmp.ne.s32.totalorder %s449, %s450
      %p462 = scmp.eq.s32.totalorder %s41, 1
      %p463 = por %p461, %p462
      %p465 = scmp.ne.s32.totalorder %s450, %s464
      %p466 = scmp.eq.s32.totalorder %s41, 0
      %p467 = por %p465, %p466
      %s469 = sadd.s32 %s468, 1
      %p472 = scmp.eq.s32.totalorder %s35, 1
      %p473 = scmp.ne.s32.totalorder %s468, %s470
      %p474 = scmp.eq.s32.totalorder %s35, 0
      %p475 = por %p473, %p474
      %p476 = scmp.ne.s32.totalorder %s468, %s470
      %p477 = scmp.eq.s32.totalorder %s40, 1
      %p478 = por %p476, %p477
      %p479 = scmp.ne.s32.totalorder %s470, %s471
      %p480 = scmp.eq.s32.totalorder %s40, 0
      %p481 = por %p479, %p480
      %p482 = scmp.ne.s32.totalorder %s470, %s471
      %p483 = scmp.eq.s32.totalorder %s41, 1
      %p484 = por %p482, %p483
      %p486 = scmp.ne.s32.totalorder %s471, %s485
      %p487 = scmp.eq.s32.totalorder %s41, 0
      %p488 = por %p486, %p487
      %s490 = sadd.s32 %s489, 1
      %p493 = scmp.eq.s32.totalorder %s35, 1
      %p494 = scmp.ne.s32.totalorder %s489, %s491
      %p495 = scmp.eq.s32.totalorder %s35, 0
      %p496 = por %p494, %p495
      %p497 = scmp.ne.s32.totalorder %s489, %s491
      %p498 = scmp.eq.s32.totalorder %s40, 1
      %p499 = por %p497, %p498
      %p500 = scmp.ne.s32.totalorder %s491, %s492
      %p501 = scmp.eq.s32.totalorder %s40, 0
      %p502 = por %p500, %p501
      %p503 = scmp.ne.s32.totalorder %s491, %s492
      %p504 = scmp.eq.s32.totalorder %s41, 1
      %p505 = por %p503, %p504
      %p507 = scmp.ne.s32.totalorder %s492, %s506
      %p508 = scmp.eq.s32.totalorder %s41, 0
      %p509 = por %p507, %p508
      %s511 = sadd.s32 %s510, 1
      %p514 = scmp.eq.s32.totalorder %s35, 1
      %p515 = scmp.ne.s32.totalorder %s510, %s512
      %p516 = scmp.eq.s32.totalorder %s35, 0
      %p517 = por %p515, %p516
      %p518 = scmp.ne.s32.totalorder %s510, %s512
      %p519 = scmp.eq.s32.totalorder %s40, 1
      %p520 = por %p518, %p519
      %p521 = scmp.ne.s32.totalorder %s512, %s513
      %p522 = scmp.eq.s32.totalorder %s40, 0
      %p523 = por %p521, %p522
      %p524 = scmp.ne.s32.totalorder %s512, %s513
      %p525 = scmp.eq.s32.totalorder %s41, 1
      %p526 = por %p524, %p525
      %p528 = scmp.ne.s32.totalorder %s513, %s527
      %p529 = scmp.eq.s32.totalorder %s41, 0
      %p530 = por %p528, %p529
      %s532 = sadd.s32 %s531, 1
      %p535 = scmp.eq.s32.totalorder %s35, 1
      %p536 = scmp.ne.s32.totalorder %s531, %s533
      %p537 = scmp.eq.s32.totalorder %s35, 0
      %p538 = por %p536, %p537
      %p539 = scmp.ne.s32.totalorder %s531, %s533
      %p540 = scmp.eq.s32.totalorder %s40, 1
      %p541 = por %p539, %p540
      %p542 = scmp.ne.s32.totalorder %s533, %s534
      %p543 = scmp.eq.s32.totalorder %s40, 0
      %p544 = por %p542, %p543
      %p545 = scmp.ne.s32.totalorder %s533, %s534
      %p546 = scmp.eq.s32.totalorder %s41, 1
      %p547 = por %p545, %p546
      %p549 = scmp.ne.s32.totalorder %s534, %s548
      %p550 = scmp.eq.s32.totalorder %s41, 0
      %p551 = por %p549, %p550
      %s553 = sadd.s32 %s552, 1
      %p556 = scmp.eq.s32.totalorder %s35, 1
      %p557 = scmp.ne.s32.totalorder %s552, %s554
      %p558 = scmp.eq.s32.totalorder %s35, 0
      %p559 = por %p557, %p558
      %p560 = scmp.ne.s32.totalorder %s552, %s554
      %p561 = scmp.eq.s32.totalorder %s40, 1
      %p562 = por %p560, %p561
      %p563 = scmp.ne.s32.totalorder %s554, %s555
      %p564 = scmp.eq.s32.totalorder %s40, 0
      %p565 = por %p563, %p564
      %p566 = scmp.ne.s32.totalorder %s554, %s555
      %p567 = scmp.eq.s32.totalorder %s41, 1
      %p568 = por %p566, %p567
      %p570 = scmp.ne.s32.totalorder %s555, %s569
      %p571 = scmp.eq.s32.totalorder %s41, 0
      %p572 = por %p570, %p571
      %s574 = sadd.s32 %s573, 1
      %p577 = scmp.eq.s32.totalorder %s35, 1
      %p578 = scmp.ne.s32.totalorder %s573, %s575
      %p579 = scmp.eq.s32.totalorder %s35, 0
      %p580 = por %p578, %p579
      %p581 = scmp.ne.s32.totalorder %s573, %s575
      %p582 = scmp.eq.s32.totalorder %s40, 1
      %p583 = por %p581, %p582
      %p584 = scmp.ne.s32.totalorder %s575, %s576
      %p585 = scmp.eq.s32.totalorder %s40, 0
      %p586 = por %p584, %p585
      %p587 = scmp.ne.s32.totalorder %s575, %s576
      %p588 = scmp.eq.s32.totalorder %s41, 1
      %p589 = por %p587, %p588
      %p591 = scmp.ne.s32.totalorder %s576, %s590
      %p592 = scmp.eq.s32.totalorder %s41, 0
      %p593 = por %p591, %p592
      %s594 = ssub.s32 %s35, %s42
      %p595 = scmp.eq.s32.totalorder %s594, 0
      %s597 = sadd.s32 %s596, 1
      %s598 = scalar_select %p595, %s596, %s597
      %p601 = pneg %p595
      %p602 = scmp.eq.s32.totalorder %s35, 1
      %p603 = por %p601, %p602
      %p604 = scmp.ne.s32.totalorder %s596, %s599
      %p605 = scmp.eq.s32.totalorder %s35, 0
      %p606 = por %p604, %p605
      %p607 = scmp.ne.s32.totalorder %s596, %s599
      %p608 = scmp.eq.s32.totalorder %s40, 1
      %p609 = por %p607, %p608
      %p610 = scmp.ne.s32.totalorder %s599, %s600
      %p611 = scmp.eq.s32.totalorder %s40, 0
      %p612 = por %p610, %p611
      %p613 = scmp.ne.s32.totalorder %s599, %s600
      %p614 = scmp.eq.s32.totalorder %s41, 1
      %p615 = por %p613, %p614
      %p617 = scmp.ne.s32.totalorder %s600, %s616
      %p618 = scmp.eq.s32.totalorder %s41, 0
      %p619 = por %p617, %p618
      %p620 = scmp.le.s32.totalorder 1, %s35
      %p621 = scmp.lt.s32.totalorder %s35, 3
      %p622 = pnand %p620, %p621
      %p623 = pneg %p622
      // Predicated region
      $region9: #{mamba_forward_pallas.1} parent=5 // pred_check
        _
      $region10: #{mamba_forward_pallas.1} parent=5 // pred_check_branch
        %625 = sbr.rel (%p622) target = $region12
      $region11: #{mamba_forward_pallas.1} parent=5 // pred_region
        %s626 = ssub.s32 %s35, 1
        // Predicated region
        $region13: #{mamba_forward_pallas.1} parent=11 // pred_check
          %p627 = pneg %p82
        $region14: #{mamba_forward_pallas.1} parent=11 // pred_check_branch
          %629 = sbr.rel (%p627) target = $region16
        $region15: #{mamba_forward_pallas.1} parent=11 // pred_region
          _
        $region16: #{mamba_forward_pallas.1} parent=11 // pred_fallthru
          _
        // Predicated region
        $region17: #{mamba_forward_pallas.1} parent=11 // pred_check
          %p630 = pneg %p103
        $region18: #{mamba_forward_pallas.1} parent=11 // pred_check_branch
          %632 = sbr.rel (%p630) target = $region20
        $region19: #{mamba_forward_pallas.1} parent=11 // pred_region
          _
        $region20: #{mamba_forward_pallas.1} parent=11 // pred_fallthru
          _
        // Predicated region
        $region21: #{mamba_forward_pallas.1} parent=11 // pred_check
          %p633 = pneg %p124
        $region22: #{mamba_forward_pallas.1} parent=11 // pred_check_branch
          %635 = sbr.rel (%p633) target = $region24
        $region23: #{mamba_forward_pallas.1} parent=11 // pred_region
          _
        $region24: #{mamba_forward_pallas.1} parent=11 // pred_fallthru
          _
        // Predicated region
        $region25: #{mamba_forward_pallas.1} parent=11 // pred_check
          %p636 = pneg %p145
        $region26: #{mamba_forward_pallas.1} parent=11 // pred_check_branch
          %638 = sbr.rel (%p636) target = $region28
        $region27: #{mamba_forward_pallas.1} parent=11 // pred_region
          _
        $region28: #{mamba_forward_pallas.1} parent=11 // pred_fallthru
          _
        // Predicated region
        $region29: #{mamba_forward_pallas.1} parent=11 // pred_check
          %p639 = pneg %p166
        $region30: #{mamba_forward_pallas.1} parent=11 // pred_check_branch
          %641 = sbr.rel (%p639) target = $region32
        $region31: #{mamba_forward_pallas.1} parent=11 // pred_region
          _
        $region32: #{mamba_forward_pallas.1} parent=11 // pred_fallthru
          _
        // Predicated region
        $region33: #{mamba_forward_pallas.1} parent=11 // pred_check
          %p642 = pneg %p187
        $region34: #{mamba_forward_pallas.1} parent=11 // pred_check_branch
          %644 = sbr.rel (%p642) target = $region36
        $region35: #{mamba_forward_pallas.1} parent=11 // pred_region
          _
        $region36: #{mamba_forward_pallas.1} parent=11 // pred_fallthru
          _
        // Predicated region
        $region37: #{mamba_forward_pallas.1} parent=11 // pred_check
          %p645 = pneg %p208
        $region38: #{mamba_forward_pallas.1} parent=11 // pred_check_branch
          %647 = sbr.rel (%p645) target = $region40
        $region39: #{mamba_forward_pallas.1} parent=11 // pred_region
          _
        $region40: #{mamba_forward_pallas.1} parent=11 // pred_fallthru
          _
        // Predicated region
        $region41: #{mamba_forward_pallas.1} parent=11 // pred_check
          %p648 = pneg %p229
        $region42: #{mamba_forward_pallas.1} parent=11 // pred_check_branch
          %650 = sbr.rel (%p648) target = $region44
        $region43: #{mamba_forward_pallas.1} parent=11 // pred_region
          _
        $region44: #{mamba_forward_pallas.1} parent=11 // pred_fallthru
          _
        // Predicated region
        $region45: #{mamba_forward_pallas.1} parent=11 // pred_check
          %p651 = pneg %p250
        $region46: #{mamba_forward_pallas.1} parent=11 // pred_check_branch
          %653 = sbr.rel (%p651) target = $region48
        $region47: #{mamba_forward_pallas.1} parent=11 // pred_region
          _
        $region48: #{mamba_forward_pallas.1} parent=11 // pred_fallthru
          _
        // Predicated region
        $region49: #{mamba_forward_pallas.1} parent=11 // pred_check
          %p654 = pneg %p271
        $region50: #{mamba_forward_pallas.1} parent=11 // pred_check_branch
          %656 = sbr.rel (%p654) target = $region52
        $region51: #{mamba_forward_pallas.1} parent=11 // pred_region
          _
        $region52: #{mamba_forward_pallas.1} parent=11 // pred_fallthru
          _
        // Predicated region
        $region53: #{mamba_forward_pallas.1} parent=11 // pred_check
          %p657 = pneg %p292
        $region54: #{mamba_forward_pallas.1} parent=11 // pred_check_branch
          %659 = sbr.rel (%p657) target = $region56
        $region55: #{mamba_forward_pallas.1} parent=11 // pred_region
          _
        $region56: #{mamba_forward_pallas.1} parent=11 // pred_fallthru
          _
        // Predicated region
        $region57: #{mamba_forward_pallas.1} parent=11 // pred_check
          %p660 = pneg %p313
        $region58: #{mamba_forward_pallas.1} parent=11 // pred_check_branch
          %662 = sbr.rel (%p660) target = $region60
        $region59: #{mamba_forward_pallas.1} parent=11 // pred_region
          _
        $region60: #{mamba_forward_pallas.1} parent=11 // pred_fallthru
          _
        // Predicated region
        $region61: #{mamba_forward_pallas.1} parent=11 // pred_check
          %p663 = pneg %p334
        $region62: #{mamba_forward_pallas.1} parent=11 // pred_check_branch
          %665 = sbr.rel (%p663) target = $region64
        $region63: #{mamba_forward_pallas.1} parent=11 // pred_region
          _
        $region64: #{mamba_forward_pallas.1} parent=11 // pred_fallthru
          _
        // Predicated region
        $region65: #{mamba_forward_pallas.1} parent=11 // pred_check
          %p666 = pneg %p355
        $region66: #{mamba_forward_pallas.1} parent=11 // pred_check_branch
          %668 = sbr.rel (%p666) target = $region68
        $region67: #{mamba_forward_pallas.1} parent=11 // pred_region
          _
        $region68: #{mamba_forward_pallas.1} parent=11 // pred_fallthru
          _
        // Predicated region
        $region69: #{mamba_forward_pallas.1} parent=11 // pred_check
          %p669 = pneg %p376
        $region70: #{mamba_forward_pallas.1} parent=11 // pred_check_branch
          %671 = sbr.rel (%p669) target = $region72
        $region71: #{mamba_forward_pallas.1} parent=11 // pred_region
          _
        $region72: #{mamba_forward_pallas.1} parent=11 // pred_fallthru
          _
        // Predicated region
        $region73: #{mamba_forward_pallas.1} parent=11 // pred_check
          %p672 = pneg %p397
        $region74: #{mamba_forward_pallas.1} parent=11 // pred_check_branch
          %674 = sbr.rel (%p672) target = $region76
        $region75: #{mamba_forward_pallas.1} parent=11 // pred_region
          _
        $region76: #{mamba_forward_pallas.1} parent=11 // pred_fallthru
          _
        // Predicated region
        $region77: #{mamba_forward_pallas.1} parent=11 // pred_check
          %p675 = pneg %p418
        $region78: #{mamba_forward_pallas.1} parent=11 // pred_check_branch
          %677 = sbr.rel (%p675) target = $region80
        $region79: #{mamba_forward_pallas.1} parent=11 // pred_region
          _
        $region80: #{mamba_forward_pallas.1} parent=11 // pred_fallthru
          _
        // Predicated region
        $region81: #{mamba_forward_pallas.1} parent=11 // pred_check
          %p678 = pneg %p439
        $region82: #{mamba_forward_pallas.1} parent=11 // pred_check_branch
          %680 = sbr.rel (%p678) target = $region84
        $region83: #{mamba_forward_pallas.1} parent=11 // pred_region
          _
        $region84: #{mamba_forward_pallas.1} parent=11 // pred_fallthru
          _
        // Predicated region
        $region85: #{mamba_forward_pallas.1} parent=11 // pred_check
          %p681 = pneg %p460
        $region86: #{mamba_forward_pallas.1} parent=11 // pred_check_branch
          %683 = sbr.rel (%p681) target = $region88
        $region87: #{mamba_forward_pallas.1} parent=11 // pred_region
          _
        $region88: #{mamba_forward_pallas.1} parent=11 // pred_fallthru
          _
        // Predicated region
        $region89: #{mamba_forward_pallas.1} parent=11 // pred_check
          %p684 = pneg %p481
        $region90: #{mamba_forward_pallas.1} parent=11 // pred_check_branch
          %686 = sbr.rel (%p684) target = $region92
        $region91: #{mamba_forward_pallas.1} parent=11 // pred_region
          _
        $region92: #{mamba_forward_pallas.1} parent=11 // pred_fallthru
          _
        // Predicated region
        $region93: #{mamba_forward_pallas.1} parent=11 // pred_check
          %p687 = pneg %p502
        $region94: #{mamba_forward_pallas.1} parent=11 // pred_check_branch
          %689 = sbr.rel (%p687) target = $region96
        $region95: #{mamba_forward_pallas.1} parent=11 // pred_region
          _
        $region96: #{mamba_forward_pallas.1} parent=11 // pred_fallthru
          _
        // Predicated region
        $region97: #{mamba_forward_pallas.1} parent=11 // pred_check
          %p690 = pneg %p523
        $region98: #{mamba_forward_pallas.1} parent=11 // pred_check_branch
          %692 = sbr.rel (%p690) target = $region100
        $region99: #{mamba_forward_pallas.1} parent=11 // pred_region
          _
        $region100: #{mamba_forward_pallas.1} parent=11 // pred_fallthru
          _
        // Predicated region
        $region101: #{mamba_forward_pallas.1} parent=11 // pred_check
          %p693 = pneg %p544
        $region102: #{mamba_forward_pallas.1} parent=11 // pred_check_branch
          %695 = sbr.rel (%p693) target = $region104
        $region103: #{mamba_forward_pallas.1} parent=11 // pred_region
          _
        $region104: #{mamba_forward_pallas.1} parent=11 // pred_fallthru
          _
        // Predicated region
        $region105: #{mamba_forward_pallas.1} parent=11 // pred_check
          %p696 = pneg %p565
        $region106: #{mamba_forward_pallas.1} parent=11 // pred_check_branch
          %698 = sbr.rel (%p696) target = $region108
        $region107: #{mamba_forward_pallas.1} parent=11 // pred_region
          _
        $region108: #{mamba_forward_pallas.1} parent=11 // pred_fallthru
          _
        // Predicated region
        $region109: #{mamba_forward_pallas.1} parent=11 // pred_check
          %p699 = pneg %p586
        $region110: #{mamba_forward_pallas.1} parent=11 // pred_check_branch
          %701 = sbr.rel (%p699) target = $region112
        $region111: #{mamba_forward_pallas.1} parent=11 // pred_region
          _
        $region112: #{mamba_forward_pallas.1} parent=11 // pred_fallthru
          _
      $region12: #{mamba_forward_pallas.1} parent=5 // pred_fallthru
        _
      %p702 = scmp.lt.s32.totalorder %s35, 2
      // Predicated region
      $region113: #{mamba_forward_pallas.1} parent=5 // pred_check
        %p703 = pneg %p702
      $region114: #{mamba_forward_pallas.1} parent=5 // pred_check_branch
        %705 = sbr.rel (%p703) target = $region116
      $region115: #{mamba_forward_pallas.1} parent=5 // pred_region
        // Predicated region
        $region117: #{mamba_forward_pallas.1} parent=115 // pred_check
          %p706 = pneg %p55
        $region118: #{mamba_forward_pallas.1} parent=115 // pred_check_branch
          %708 = sbr.rel (%p706) target = $region120
        $region119: #{mamba_forward_pallas.1} parent=115 // pred_region
          %p709 = scmp.lt.s32.totalorder %s35, 1
          %s710 = scalar_select %p709, %s35, 1
          %s711 = smul.addr %s710, 8
          %s712 = scalar_lea.vmem %s0, %s711
        $region120: #{mamba_forward_pallas.1} parent=115 // pred_fallthru
          _
      $region116: #{mamba_forward_pallas.1} parent=5 // pred_fallthru
        _
      %p713 = scmp.le.s32.totalorder 1, %s35
      %p714 = scmp.lt.s32.totalorder %s35, 3
      %p715 = pnand %p713, %p714
      %p716 = pneg %p715
      // Predicated region
      $region121: #{mamba_forward_pallas.1} parent=5 // pred_check
        _
      $region122: #{mamba_forward_pallas.1} parent=5 // pred_check_branch
        %718 = sbr.rel (%p715) target = $region124
      $region123: #{mamba_forward_pallas.1} parent=5 // pred_region
        %s719 = ssub.s32 %s35, 1
        %p720 = scmp.lt.s32.totalorder %s40, 1
        %s721 = scalar_select %p720, %s40, 1
        %s722 = smul.addr %s721, 8
        %s723 = scalar_lea.vmem %s0, %s722
        %p724 = pneg %p61
        %p725 = pneg %p58
        %p726 = pneg %p82
        %p727 = pneg %p79
        %p728 = pneg %p103
        %p729 = pneg %p100
        %p730 = pneg %p124
        %p731 = pneg %p121
        %p732 = pneg %p145
        %p733 = pneg %p142
        %p734 = pneg %p166
        %p735 = pneg %p163
        %p736 = pneg %p187
        %p737 = pneg %p184
        %p738 = pneg %p208
        %p739 = pneg %p205
        %p740 = pneg %p229
        %p741 = pneg %p226
        %p742 = pneg %p250
        %p743 = pneg %p247
        %p744 = pneg %p271
        %p745 = pneg %p268
        %p746 = pneg %p292
        %p747 = pneg %p289
        %p748 = pneg %p313
        %p749 = pneg %p310
        %p750 = pneg %p334
        %p751 = pneg %p331
        %p752 = pneg %p355
        %p753 = pneg %p352
        %p754 = pneg %p376
        %p755 = pneg %p373
        %p756 = pneg %p397
        %p757 = pneg %p394
        %p758 = pneg %p418
        %p759 = pneg %p415
        %p760 = pneg %p439
        %p761 = pneg %p436
        %p762 = pneg %p460
        %p763 = pneg %p457
        %p764 = pneg %p481
        %p765 = pneg %p478
        %p766 = pneg %p502
        %p767 = pneg %p499
        %p768 = pneg %p523
        %p769 = pneg %p520
        %p770 = pneg %p544
        %p771 = pneg %p541
        %p772 = pneg %p565
        %p773 = pneg %p562
        %p774 = pneg %p586
        %p775 = pneg %p583
        %p776 = pneg %p612
        %p777 = pneg %p609
        %s778 = sand.u32 %s599, 1
        %s779 = scalar_lea.sflag [#allocation6], %s778
        %s780 = sand.u32 %s599, 1
        %s781 = smul.addr %s780, 8
        %s782 = scalar_lea.vmem [#allocation5], %s781
        %p783 = scmp.lt.s32.totalorder %s40, 1
        %s784 = scalar_select %p783, %s40, 1
        %s785 = smul.addr %s784, 8
        %s786 = scalar_lea.vmem %s0, %s785
        %v788 = vld [vmem:[%s786] sm:$0xff]
        %v789 = vlaneseq
        %v790 = vand.u32 %v789, 127
        %791 = vset.pattern.permute.xlu0 0
        %792 = vperm.xlu0 %791, %v788
        %v793 = vpop.permute.xlu0 %792
        %vm794 = vcmp.eq.s32.totalorder %v793, %v790
        %v795 = vsel %vm794, 1.0, 0.0
        %v796 = vld [vmem:[%s1] sm:$0xf]
        %v797 = vld [vmem:[%s1 + $0x4] sm:$0xf]
        %v798 = vld [vmem:[%s1 + $0x8] sm:$0xf]
        %v799 = vld [vmem:[%s1 + $0xc] sm:$0xf]
        %v800 = vld [vmem:[%s1 + $0x10] sm:$0xf]
        %v801 = vld [vmem:[%s1 + $0x14] sm:$0xf]
        %v802 = vld [vmem:[%s1 + $0x18] sm:$0xf]
        %v803 = vld [vmem:[%s1 + $0x1c] sm:$0xf]
        %v804 = vld [vmem:[%s1 + $0x20] sm:$0xf]
        %v805 = vld [vmem:[%s1 + $0x24] sm:$0xf]
        %v806 = vld [vmem:[%s1 + $0x28] sm:$0xf]
        %v807 = vld [vmem:[%s1 + $0x2c] sm:$0xf]
        %v808 = vld [vmem:[%s1 + $0x30] sm:$0xf]
        %v809 = vld [vmem:[%s1 + $0x34] sm:$0xf]
        %v810 = vld [vmem:[%s1 + $0x38] sm:$0xf]
        %v811 = vld [vmem:[%s1 + $0x3c] sm:$0xf]
        %v812 = vpack.c.bf16 %v795, %v795
        %v829 = vunpack.c.l.b16 %v796
        %v830 = vunpack.c.l.b16 %v797
        %v831 = vunpack.c.l.b16 %v798
        %v832 = vunpack.c.l.b16 %v799
        %v833 = vunpack.c.l.b16 %v800
        %v834 = vunpack.c.l.b16 %v801
        %v835 = vunpack.c.l.b16 %v802
        %v836 = vunpack.c.l.b16 %v803
        %v837 = vunpack.c.l.b16 %v804
        %v838 = vunpack.c.l.b16 %v805
        %v839 = vunpack.c.l.b16 %v806
        %v840 = vunpack.c.l.b16 %v807
        %v841 = vunpack.c.l.b16 %v808
        %v842 = vunpack.c.l.b16 %v809
        %v843 = vunpack.c.l.b16 %v810
        %v844 = vunpack.c.l.b16 %v811
        %v845 = vpack.c.b16 %v830, %v829
        %v846 = vpack.c.b16 %v832, %v831
        %v847 = vpack.c.b16 %v834, %v833
        %v848 = vpack.c.b16 %v836, %v835
        %v849 = vpack.c.b16 %v838, %v837
        %v850 = vpack.c.b16 %v840, %v839
        %v851 = vpack.c.b16 %v842, %v841
        %v852 = vpack.c.b16 %v844, %v843
        %861 = vmatprep.subr.bf16.mxu0 0
        %862 = vmatpush1.bf16.msra.mxu0 %v845
        %863 = vmatprep.subr.bf16.mxu0 0
        %864 = vmatpush1.bf16.msra.mxu0 %v846
        %865 = vmatprep.subr.bf16.mxu0 0
        %866 = vmatpush1.bf16.msra.mxu0 %v847
        %867 = vmatprep.subr.bf16.mxu0 0
        %868 = vmatpush1.bf16.msra.mxu0 %v848
        %869 = vmatprep.subr.bf16.mxu0 0
        %870 = vmatpush1.bf16.msra.mxu0 %v849
        %871 = vmatprep.subr.bf16.mxu0 0
        %872 = vmatpush1.bf16.msra.mxu0 %v850
        %873 = vmatprep.subr.bf16.mxu0 0
        %874 = vmatpush1.bf16.msra.mxu0 %v851
        %875 = vmatprep.subr.bf16.mxu0 0
        %876 = vmatpush1.bf16.msra.mxu0 %v852
        %877 = vmatprep.subr.bf16.mxu0 0
        %878 = vmatpush1.bf16.msra.mxu0 0
        %879 = vmatprep.subr.bf16.mxu0 0
        %880 = vmatpush1.bf16.msra.mxu0 0
        %881 = vmatprep.subr.bf16.mxu0 0
        %882 = vmatpush1.bf16.msra.mxu0 0
        %883 = vmatprep.subr.bf16.mxu0 0
        %884 = vmatpush1.bf16.msra.mxu0 0
        %885 = vmatprep.subr.bf16.mxu0 0
        %886 = vmatpush1.bf16.msra.mxu0 0
        %887 = vmatprep.subr.bf16.mxu0 0
        %888 = vmatpush1.bf16.msra.mxu0 0
        %889 = vmatprep.subr.bf16.mxu0 0
        %890 = vmatpush1.bf16.msra.mxu0 0
        %891 = vmatprep.subr.bf16.mxu0 0
        %892 = vmatpush1.bf16.msra.mxu0 0
        %893 = vmatprep.mubr.bf16.mxu0 0
        %894 = vmatmul.mubr.bf16.gmra.mrb[0].mxu0 %v812
        %v895 = vpop.f32.mrb[0].mxu0
        %v896 = vadd.f32 0.0, %v895
        %v897 = vpop.f32.mrb[0].mxu0
        %v898 = vpop.f32.mrb[0].mxu0
        %v899 = vpop.f32.mrb[0].mxu0
        %900 = vdwg.mxu0
        %v901 = vld [vmem:[%s4] sm:$0xf]
        %v902 = vld [vmem:[%s4 + $0x4] sm:$0xf]
        %v903 = vld [vmem:[%s4 + $0x8] sm:$0xf]
        %v904 = vld [vmem:[%s4 + $0xc] sm:$0xf]
        %v905 = vld [vmem:[%s4 + $0x10] sm:$0xf]
        %v906 = vld [vmem:[%s4 + $0x14] sm:$0xf]
        %v907 = vld [vmem:[%s4 + $0x18] sm:$0xf]
        %v908 = vld [vmem:[%s4 + $0x1c] sm:$0xf]
        %v909 = vld [vmem:[%s4 + $0x20] sm:$0xf]
        %v910 = vld [vmem:[%s4 + $0x24] sm:$0xf]
        %v911 = vld [vmem:[%s4 + $0x28] sm:$0xf]
        %v912 = vld [vmem:[%s4 + $0x2c] sm:$0xf]
        %v913 = vld [vmem:[%s4 + $0x30] sm:$0xf]
        %v914 = vld [vmem:[%s4 + $0x34] sm:$0xf]
        %v915 = vld [vmem:[%s4 + $0x38] sm:$0xf]
        %v916 = vld [vmem:[%s4 + $0x3c] sm:$0xf]
        %v917 = vld [vmem:[%s5] sm:$0xf]
        %v918 = vld [vmem:[%s6] sm:$0xff]
        %v919 = vld [vmem:[%s6 + $0x8] sm:$0xff]
        %v920 = vld [vmem:[%s6 + $0x10] sm:$0xff]
        %v921 = vld [vmem:[%s6 + $0x18] sm:$0xff]
        %v922 = vld [vmem:[%s6 + $0x20] sm:$0xff]
        %v923 = vld [vmem:[%s6 + $0x28] sm:$0xff]
        %v924 = vld [vmem:[%s6 + $0x30] sm:$0xff]
        %v925 = vld [vmem:[%s6 + $0x38] sm:$0xff]
        %v926 = vld [vmem:[%s6 + $0x40] sm:$0xff]
        %v927 = vld [vmem:[%s6 + $0x48] sm:$0xff]
        %v928 = vld [vmem:[%s6 + $0x50] sm:$0xff]
        %v929 = vld [vmem:[%s6 + $0x58] sm:$0xff]
        %v930 = vld [vmem:[%s6 + $0x60] sm:$0xff]
        %v931 = vld [vmem:[%s6 + $0x68] sm:$0xff]
        %v932 = vld [vmem:[%s6 + $0x70] sm:$0xff]
        %v933 = vld [vmem:[%s6 + $0x78] sm:$0xff]
        %v934 = vld [vmem:[%s7] sm:$0xf]
        %v935 = vld [vmem:[%s7 + $0x4] sm:$0xf]
        %v936 = vld [vmem:[%s7 + $0x8] sm:$0xf]
        %v937 = vld [vmem:[%s7 + $0xc] sm:$0xf]
        %v938 = vld [vmem:[%s8] sm:$0x1]
        %v939 = vmul.f32 %v896, %v896
        %vm940 = vcmask 523264
        %v941 = vsel %vm940, %v939, 0.0
        %942 = vadd.xlane.f32.xlu0 %v941
        %v943 = vpop.xlane.xlu0 %942
        %v944 = vrcp.pop 64.0
        %v945 = vmul.f32 %v943, %v944
        %v946 = vadd.f32 %v945, 1e-05
        %v947 = vrsqrt.pop %v946
        %v948 = vmul.f32 %v896, %v947
        %v950 = vlaneseq
        %v951 = vshrl.u32 %v950, 7
        %v952 = vsub.s32 0, %v951
        %v953 = vrot.slane %v938, %v952
        %v955 = vmul.f32 %v948, %v953
        %v956 = vld [vmem:[%s9] sm:$0xff]
        %v957 = vld [vmem:[%s9 + $0x8] sm:$0xff]
        %v958 = vld [vmem:[%s9 + $0x10] sm:$0xff]
        %v959 = vld [vmem:[%s9 + $0x18] sm:$0xff]
        %v960 = vld [vmem:[%s9 + $0x20] sm:$0xff]
        %v961 = vld [vmem:[%s9 + $0x28] sm:$0xff]
        %v962 = vld [vmem:[%s9 + $0x30] sm:$0xff]
        %v963 = vld [vmem:[%s9 + $0x38] sm:$0xff]
        %v964 = vpack.c.bf16 %v955, %v955
        %v973 = vunpack.c.l.b16 %v956
        %v974 = vunpack.c.h.b16 %v956
        %v975 = vunpack.c.l.b16 %v957
        %v976 = vunpack.c.h.b16 %v957
        %v977 = vunpack.c.l.b16 %v958
        %v978 = vunpack.c.h.b16 %v958
        %v979 = vunpack.c.l.b16 %v959
        %v980 = vunpack.c.h.b16 %v959
        %v981 = vunpack.c.l.b16 %v960
        %v982 = vunpack.c.h.b16 %v960
        %v983 = vunpack.c.l.b16 %v961
        %v984 = vunpack.c.h.b16 %v961
        %v985 = vunpack.c.l.b16 %v962
        %v986 = vunpack.c.h.b16 %v962
        %v987 = vunpack.c.l.b16 %v963
        %v988 = vunpack.c.h.b16 %v963
        %v989 = vpack.c.b16 %v975, %v973
        %v990 = vpack.c.b16 %v976, %v974
        %v991 = vpack.c.b16 %v979, %v977
        %v992 = vpack.c.b16 %v980, %v978
        %v993 = vpack.c.b16 %v983, %v981
        %v994 = vpack.c.b16 %v984, %v982
        %v995 = vpack.c.b16 %v987, %v985
        %v996 = vpack.c.b16 %v988, %v986
        %v1006 = vsel %vm940, %v964, 0
        %1008 = vmatprep.subr.bf16.mxu0 %v990
        %1009 = vmatpush1.bf16.msra.mxu0 %v989
        %1010 = vmatprep.subr.bf16.mxu0 %v992
        %1011 = vmatpush1.bf16.msra.mxu0 %v991
        %1012 = vmatprep.subr.bf16.mxu0 %v994
        %1013 = vmatpush1.bf16.msra.mxu0 %v993
        %1014 = vmatprep.subr.bf16.mxu0 %v996
        %1015 = vmatpush1.bf16.msra.mxu0 %v995
        %1016 = vmatprep.subr.bf16.mxu0 0
        %1017 = vmatpush1.bf16.msra.mxu0 0
        %1018 = vmatprep.subr.bf16.mxu0 0
        %1019 = vmatpush1.bf16.msra.mxu0 0
        %1020 = vmatprep.subr.bf16.mxu0 0
        %1021 = vmatpush1.bf16.msra.mxu0 0
        %1022 = vmatprep.subr.bf16.mxu0 0
        %1023 = vmatpush1.bf16.msra.mxu0 0
        %1024 = vmatprep.subr.bf16.mxu0 0
        %1025 = vmatpush1.bf16.msra.mxu0 0
        %1026 = vmatprep.subr.bf16.mxu0 0
        %1027 = vmatpush1.bf16.msra.mxu0 0
        %1028 = vmatprep.subr.bf16.mxu0 0
        %1029 = vmatpush1.bf16.msra.mxu0 0
        %1030 = vmatprep.subr.bf16.mxu0 0
        %1031 = vmatpush1.bf16.msra.mxu0 0
        %1032 = vmatprep.subr.bf16.mxu0 0
        %1033 = vmatpush1.bf16.msra.mxu0 0
        %1034 = vmatprep.subr.bf16.mxu0 0
        %1035 = vmatpush1.bf16.msra.mxu0 0
        %1036 = vmatprep.subr.bf16.mxu0 0
        %1037 = vmatpush1.bf16.msra.mxu0 0
        %1038 = vmatprep.subr.bf16.mxu0 0
        %1039 = vmatpush1.bf16.msra.mxu0 0
        %1040 = vmatprep.mubr.bf16.mxu0 0
        %1041 = vmatmul.mubr.bf16.gmra.mrb[0].mxu0 %v1006
        %v1042 = vpop.f32.mrb[0].mxu0
        %v1043 = vadd.f32 0.0, %v1042
        %v1044 = vpop.f32.mrb[0].mxu0
        %v1045 = vadd.f32 0.0, %v1044
        %v1046 = vpop.f32.mrb[0].mxu0
        %v1047 = vpop.f32.mrb[0].mxu0
        %1048 = vdwg.mxu0
        %v1049 = vpack.c.bf16 %v1043, %v1043
        %v1054 = vunpack.c.l.b16 %v934
        %v1055 = vunpack.c.l.b16 %v935
        %v1056 = vunpack.c.l.b16 %v936
        %v1057 = vunpack.c.l.b16 %v937
        %v1058 = vpack.c.b16 %v1055, %v1054
        %v1059 = vpack.c.b16 %v1057, %v1056
        %vm1060 = vcmask 64512
        %v1062 = vsel %vm1060, %v1058, 0
        %v1065 = vsel %vm1060, %v1059, 0
        %vm1067 = vcmask 1043456
        %v1069 = vsel %vm1067, %v1049, 0
        %1071 = vmatprep.subr.bf16.mxu0 0
        %1072 = vmatpush1.bf16.msra.mxu0 %v1069
        %1073 = vmatprep.subr.bf16.mxu0 0
        %1074 = vmatpush1.bf16.msra.mxu0 0
        %1075 = vmatprep.subr.bf16.mxu0 0
        %1076 = vmatpush1.bf16.msra.mxu0 0
        %1077 = vmatprep.subr.bf16.mxu0 0
        %1078 = vmatpush1.bf16.msra.mxu0 0
        %1079 = vmatprep.subr.bf16.mxu0 0
        %1080 = vmatpush1.bf16.msra.mxu0 0
        %1081 = vmatprep.subr.bf16.mxu0 0
        %1082 = vmatpush1.bf16.msra.mxu0 0
        %1083 = vmatprep.subr.bf16.mxu0 0
        %1084 = vmatpush1.bf16.msra.mxu0 0
        %1085 = vmatprep.subr.bf16.mxu0 0
        %1086 = vmatpush1.bf16.msra.mxu0 0
        %1087 = vmatprep.subr.bf16.mxu0 0
        %1088 = vmatpush1.bf16.msra.mxu0 0
        %1089 = vmatprep.subr.bf16.mxu0 0
        %1090 = vmatpush1.bf16.msra.mxu0 0
        %1091 = vmatprep.subr.bf16.mxu0 0
        %1092 = vmatpush1.bf16.msra.mxu0 0
        %1093 = vmatprep.subr.bf16.mxu0 0
        %1094 = vmatpush1.bf16.msra.mxu0 0
        %1095 = vmatprep.subr.bf16.mxu0 0
        %1096 = vmatpush1.bf16.msra.mxu0 0
        %1097 = vmatprep.subr.bf16.mxu0 0
        %1098 = vmatpush1.bf16.msra.mxu0 0
        %1099 = vmatprep.subr.bf16.mxu0 0
        %1100 = vmatpush1.bf16.msra.mxu0 0
        %1101 = vmatprep.subr.bf16.mxu0 0
        %1102 = vmatpush1.bf16.msra.mxu0 0
        %1103 = vmatprep.mubr.bf16.mxu0 0
        %1104 = vmatmul.mubr.bf16.gmra.mrb[0].mxu0 %v1062
        %v1105 = vpop.f32.mrb[0].mxu0
        %v1106 = vadd.f32 0.0, %v1105
        %v1107 = vpop.f32.mrb[0].mxu0
        %v1108 = vpop.f32.mrb[0].mxu0
        %v1109 = vadd.f32 0.0, %v1108
        %v1110 = vpop.f32.mrb[0].mxu0
        %1111 = vmatprep.mubr.bf16.mxu0 0
        %1112 = vmatmul.mubr.bf16.gmra.mrb[0].mxu0 %v1065
        %v1113 = vpop.f32.mrb[0].mxu0
        %v1114 = vadd.f32 0.0, %v1113
        %v1115 = vpop.f32.mrb[0].mxu0
        %v1116 = vpop.f32.mrb[0].mxu0
        %v1117 = vadd.f32 0.0, %v1116
        %v1118 = vpop.f32.mrb[0].mxu0
        %1119 = vdwg.mxu0
        %v1120 = vld [vmem:[%s10] sm:$0xf]
        %v1121 = vlaneseq
        %v1122 = vshrl.u32 %v1121, 7
        %v1123 = vsub.s32 0, %v1122
        %v1124 = vrot.slane %v1120, %v1123
        %v1125 = vmul.f32 %v1106, %v1124
        %v1126 = vlaneseq
        %v1127 = vshrl.u32 %v1126, 7
        %v1128 = vsub.s32 1, %v1127
        %v1129 = vrot.slane %v1120, %v1128
        %v1130 = vmul.f32 %v1109, %v1129
        %v1131 = vadd.f32 %v1125, %v1130
        %v1132 = vlaneseq
        %v1133 = vshrl.u32 %v1132, 7
        %v1134 = vsub.s32 2, %v1133
        %v1135 = vrot.slane %v1120, %v1134
        %v1136 = vmul.f32 %v1114, %v1135
        %v1137 = vadd.f32 %v1131, %v1136
        %v1138 = vlaneseq
        %v1139 = vshrl.u32 %v1138, 7
        %v1140 = vsub.s32 3, %v1139
        %v1141 = vrot.slane %v1120, %v1140
        %v1142 = vmul.f32 %v1117, %v1141
        %v1143 = vadd.f32 %v1137, %v1142
        %v1144 = vld [vmem:[%s11] sm:$0x1]
        %v1146 = vlaneseq
        %v1147 = vshrl.u32 %v1146, 7
        %v1148 = vsub.s32 0, %v1147
        %v1149 = vrot.slane %v1144, %v1148
        %v1151 = vadd.f32 %v1143, %v1149
        %v1152 = vsub.f32 0.0, %v1151
        %v1153 = vmul.f32 %v1152, 1.442695
        %v1154 = vpow.pop %v1153
        %v1155 = vadd.f32 %v1154, 1.0
        %v1156 = vrcp.pop %v1155
        %v1157 = vmul.f32 %v1151, %v1156
        %v1158 = vld [vmem:[%s12] sm:$0xff]
        %v1159 = vld [vmem:[%s12 + $0x8] sm:$0xff]
        %v1160 = vld [vmem:[%s12 + $0x10] sm:$0xff]
        %v1161 = vld [vmem:[%s12 + $0x18] sm:$0xff]
        %v1162 = vld [vmem:[%s12 + $0x20] sm:$0xff]
        %v1163 = vld [vmem:[%s12 + $0x28] sm:$0xff]
        %v1164 = vld [vmem:[%s12 + $0x30] sm:$0xff]
        %v1165 = vld [vmem:[%s12 + $0x38] sm:$0xff]
        %v1166 = vld [vmem:[%s12 + $0x40] sm:$0xff]
        %v1167 = vld [vmem:[%s12 + $0x48] sm:$0xff]
        %v1168 = vld [vmem:[%s12 + $0x50] sm:$0xff]
        %v1169 = vld [vmem:[%s12 + $0x58] sm:$0xff]
        %v1170 = vld [vmem:[%s12 + $0x60] sm:$0xff]
        %v1171 = vld [vmem:[%s12 + $0x68] sm:$0xff]
        %v1172 = vld [vmem:[%s12 + $0x70] sm:$0xff]
        %v1173 = vld [vmem:[%s12 + $0x78] sm:$0xff]
        %v1174 = vpack.c.bf16 %v1157, %v1157
        %v1191 = vunpack.c.l.b16 %v1158
        %v1192 = vunpack.c.h.b16 %v1158
        %v1193 = vunpack.c.l.b16 %v1159
        %v1194 = vunpack.c.h.b16 %v1159
        %v1195 = vunpack.c.l.b16 %v1160
        %v1196 = vunpack.c.h.b16 %v1160
        %v1197 = vunpack.c.l.b16 %v1161
        %v1198 = vunpack.c.h.b16 %v1161
        %v1199 = vunpack.c.l.b16 %v1162
        %v1200 = vunpack.c.h.b16 %v1162
        %v1201 = vunpack.c.l.b16 %v1163
        %v1202 = vunpack.c.h.b16 %v1163
        %v1203 = vunpack.c.l.b16 %v1164
        %v1204 = vunpack.c.h.b16 %v1164
        %v1205 = vunpack.c.l.b16 %v1165
        %v1206 = vunpack.c.h.b16 %v1165
        %v1207 = vunpack.c.l.b16 %v1166
        %v1208 = vunpack.c.h.b16 %v1166
        %v1209 = vunpack.c.l.b16 %v1167
        %v1210 = vunpack.c.h.b16 %v1167
        %v1211 = vunpack.c.l.b16 %v1168
        %v1212 = vunpack.c.h.b16 %v1168
        %v1213 = vunpack.c.l.b16 %v1169
        %v1214 = vunpack.c.h.b16 %v1169
        %v1215 = vunpack.c.l.b16 %v1170
        %v1216 = vunpack.c.h.b16 %v1170
        %v1217 = vunpack.c.l.b16 %v1171
        %v1218 = vunpack.c.h.b16 %v1171
        %v1219 = vunpack.c.l.b16 %v1172
        %v1220 = vunpack.c.h.b16 %v1172
        %v1221 = vunpack.c.l.b16 %v1173
        %v1222 = vunpack.c.h.b16 %v1173
        %v1223 = vpack.c.b16 %v1193, %v1191
        %v1224 = vpack.c.b16 %v1194, %v1192
        %v1225 = vpack.c.b16 %v1197, %v1195
        %v1226 = vpack.c.b16 %v1198, %v1196
        %v1227 = vpack.c.b16 %v1201, %v1199
        %v1228 = vpack.c.b16 %v1202, %v1200
        %v1229 = vpack.c.b16 %v1205, %v1203
        %v1230 = vpack.c.b16 %v1206, %v1204
        %v1231 = vpack.c.b16 %v1209, %v1207
        %v1232 = vpack.c.b16 %v1210, %v1208
        %v1233 = vpack.c.b16 %v1213, %v1211
        %v1234 = vpack.c.b16 %v1214, %v1212
        %v1235 = vpack.c.b16 %v1217, %v1215
        %v1236 = vpack.c.b16 %v1218, %v1216
        %v1237 = vpack.c.b16 %v1221, %v1219
        %v1238 = vpack.c.b16 %v1222, %v1220
        %1255 = vmatprep.subr.bf16.mxu0 %v1224
        %1256 = vmatpush1.bf16.msra.mxu0 %v1223
        %1257 = vmatprep.subr.bf16.mxu0 %v1226
        %1258 = vmatpush1.bf16.msra.mxu0 %v1225
        %1259 = vmatprep.subr.bf16.mxu0 %v1228
        %1260 = vmatpush1.bf16.msra.mxu0 %v1227
        %1261 = vmatprep.subr.bf16.mxu0 %v1230
        %1262 = vmatpush1.bf16.msra.mxu0 %v1229
        %1263 = vmatprep.subr.bf16.mxu0 %v1232
        %1264 = vmatpush1.bf16.msra.mxu0 %v1231
        %1265 = vmatprep.subr.bf16.mxu0 %v1234
        %1266 = vmatpush1.bf16.msra.mxu0 %v1233
        %1267 = vmatprep.subr.bf16.mxu0 %v1236
        %1268 = vmatpush1.bf16.msra.mxu0 %v1235
        %1269 = vmatprep.subr.bf16.mxu0 %v1238
        %1270 = vmatpush1.bf16.msra.mxu0 %v1237
        %1271 = vmatprep.subr.bf16.mxu0 0
        %1272 = vmatpush1.bf16.msra.mxu0 0
        %1273 = vmatprep.subr.bf16.mxu0 0
        %1274 = vmatpush1.bf16.msra.mxu0 0
        %1275 = vmatprep.subr.bf16.mxu0 0
        %1276 = vmatpush1.bf16.msra.mxu0 0
        %1277 = vmatprep.subr.bf16.mxu0 0
        %1278 = vmatpush1.bf16.msra.mxu0 0
        %1279 = vmatprep.subr.bf16.mxu0 0
        %1280 = vmatpush1.bf16.msra.mxu0 0
        %1281 = vmatprep.subr.bf16.mxu0 0
        %1282 = vmatpush1.bf16.msra.mxu0 0
        %1283 = vmatprep.subr.bf16.mxu0 0
        %1284 = vmatpush1.bf16.msra.mxu0 0
        %1285 = vmatprep.subr.bf16.mxu0 0
        %1286 = vmatpush1.bf16.msra.mxu0 0
        %1287 = vmatprep.mubr.bf16.mxu0 0
        %1288 = vmatmul.mubr.bf16.gmra.mrb[0].mxu0 %v1174
        %v1289 = vpop.f32.mrb[0].mxu0
        %v1290 = vadd.f32 0.0, %v1289
        %v1291 = vpop.f32.mrb[0].mxu0
        %v1292 = vadd.f32 0.0, %v1291
        %v1293 = vpop.f32.mrb[0].mxu0
        %v1294 = vpop.f32.mrb[0].mxu0
        %1295 = vdwg.mxu0
        %v1296 = vld [vmem:[%s13] sm:$0x1]
        %v1298 = vlaneseq
        %v1299 = vshrl.u32 %v1298, 7
        %v1300 = vsub.s32 0, %v1299
        %v1301 = vrot.slane %v1296, %v1300
        %v1303 = vadd.f32 %v1290, %v1301
        %vm1304 = vcmp.gt.f32.partialorder %v1303, 20.0
        %v1305 = vmul.f32 %v1303, 1.442695
        %v1306 = vpow.pop %v1305
        %v1307 = vadd.f32 %v1306, 1.0
        %v1308 = vlog2.pop %v1307
        %v1309 = vmul.f32 %v1308, 0.6931472
        %v1310 = vsel %vm1304, %v1303, %v1309
        %v1311 = vmul.f32 %v1310, %v1157
        %v1312 = vpack.c.bf16 %v1310, %v1310
        %v1313 = vpack.c.bf16 %v1311, %v1311
        %v1330 = vunpack.c.l.b16 %v901
        %v1331 = vunpack.c.l.b16 %v902
        %v1332 = vunpack.c.l.b16 %v903
        %v1333 = vunpack.c.l.b16 %v904
        %v1334 = vunpack.c.l.b16 %v905
        %v1335 = vunpack.c.l.b16 %v906
        %v1336 = vunpack.c.l.b16 %v907
        %v1337 = vunpack.c.l.b16 %v908
        %v1338 = vunpack.c.l.b16 %v909
        %v1339 = vunpack.c.l.b16 %v910
        %v1340 = vunpack.c.l.b16 %v911
        %v1341 = vunpack.c.l.b16 %v912
        %v1342 = vunpack.c.l.b16 %v913
        %v1343 = vunpack.c.l.b16 %v914
        %v1344 = vunpack.c.l.b16 %v915
        %v1345 = vunpack.c.l.b16 %v916
        %v1346 = vpack.c.b16 %v1331, %v1330
        %v1347 = vpack.c.b16 %v1333, %v1332
        %v1348 = vpack.c.b16 %v1335, %v1334
        %v1349 = vpack.c.b16 %v1337, %v1336
        %v1350 = vpack.c.b16 %v1339, %v1338
        %v1351 = vpack.c.b16 %v1341, %v1340
        %v1352 = vpack.c.b16 %v1343, %v1342
        %v1353 = vpack.c.b16 %v1345, %v1344
        %v1355 = vsel %vm1060, %v1346, 0
        %v1358 = vsel %vm1060, %v1347, 0
        %v1361 = vsel %vm1060, %v1348, 0
        %v1364 = vsel %vm1060, %v1349, 0
        %v1367 = vsel %vm1060, %v1350, 0
        %v1370 = vsel %vm1060, %v1351, 0
        %v1373 = vsel %vm1060, %v1352, 0
        %v1376 = vsel %vm1060, %v1353, 0
        %v1379 = vsel %vm1067, %v1312, 0
        %v1382 = vsel %vm1067, %v1313, 0
        %1384 = vmatprep.subr.bf16.mxu0 %v1382
        %1385 = vmatpush1.bf16.msra.mxu0 %v1379
        %1386 = vmatprep.subr.bf16.mxu0 0
        %1387 = vmatpush1.bf16.msra.mxu0 0
        %1388 = vmatprep.subr.bf16.mxu0 0
        %1389 = vmatpush1.bf16.msra.mxu0 0
        %1390 = vmatprep.subr.bf16.mxu0 0
        %1391 = vmatpush1.bf16.msra.mxu0 0
        %1392 = vmatprep.subr.bf16.mxu0 0
        %1393 = vmatpush1.bf16.msra.mxu0 0
        %1394 = vmatprep.subr.bf16.mxu0 0
        %1395 = vmatpush1.bf16.msra.mxu0 0
        %1396 = vmatprep.subr.bf16.mxu0 0
        %1397 = vmatpush1.bf16.msra.mxu0 0
        %1398 = vmatprep.subr.bf16.mxu0 0
        %1399 = vmatpush1.bf16.msra.mxu0 0
        %1400 = vmatprep.subr.bf16.mxu0 0
        %1401 = vmatpush1.bf16.msra.mxu0 0
        %1402 = vmatprep.subr.bf16.mxu0 0
        %1403 = vmatpush1.bf16.msra.mxu0 0
        %1404 = vmatprep.subr.bf16.mxu0 0
        %1405 = vmatpush1.bf16.msra.mxu0 0
        %1406 = vmatprep.subr.bf16.mxu0 0
        %1407 = vmatpush1.bf16.msra.mxu0 0
        %1408 = vmatprep.subr.bf16.mxu0 0
        %1409 = vmatpush1.bf16.msra.mxu0 0
        %1410 = vmatprep.subr.bf16.mxu0 0
        %1411 = vmatpush1.bf16.msra.mxu0 0
        %1412 = vmatprep.subr.bf16.mxu0 0
        %1413 = vmatpush1.bf16.msra.mxu0 0
        %1414 = vmatprep.subr.bf16.mxu0 0
        %1415 = vmatpush1.bf16.msra.mxu0 0
        %1416 = vmatprep.mubr.bf16.mxu0 0
        %1417 = vmatmul.mubr.bf16.gmra.mrb[0].mxu0 %v1355
        %v1418 = vpop.f32.mrb[0].mxu0
        %v1419 = vadd.f32 0.0, %v1418
        %v1420 = vpop.f32.mrb[0].mxu0
        %v1421 = vadd.f32 0.0, %v1420
        %v1422 = vpop.f32.mrb[0].mxu0
        %v1423 = vadd.f32 0.0, %v1422
        %v1424 = vpop.f32.mrb[0].mxu0
        %v1425 = vadd.f32 0.0, %v1424
        %1426 = vmatprep.mubr.bf16.mxu0 0
        %1427 = vmatmul.mubr.bf16.gmra.mrb[0].mxu0 %v1358
        %v1428 = vpop.f32.mrb[0].mxu0
        %v1429 = vadd.f32 0.0, %v1428
        %v1430 = vpop.f32.mrb[0].mxu0
        %v1431 = vadd.f32 0.0, %v1430
        %v1432 = vpop.f32.mrb[0].mxu0
        %v1433 = vadd.f32 0.0, %v1432
        %v1434 = vpop.f32.mrb[0].mxu0
        %v1435 = vadd.f32 0.0, %v1434
        %1436 = vmatprep.mubr.bf16.mxu0 0
        %1437 = vmatmul.mubr.bf16.gmra.mrb[0].mxu0 %v1361
        %v1438 = vpop.f32.mrb[0].mxu0
        %v1439 = vadd.f32 0.0, %v1438
        %v1440 = vpop.f32.mrb[0].mxu0
        %v1441 = vadd.f32 0.0, %v1440
        %v1442 = vpop.f32.mrb[0].mxu0
        %v1443 = vadd.f32 0.0, %v1442
        %v1444 = vpop.f32.mrb[0].mxu0
        %v1445 = vadd.f32 0.0, %v1444
        %1446 = vmatprep.mubr.bf16.mxu0 0
        %1447 = vmatmul.mubr.bf16.gmra.mrb[0].mxu0 %v1364
        %v1448 = vpop.f32.mrb[0].mxu0
        %v1449 = vadd.f32 0.0, %v1448
        %v1450 = vpop.f32.mrb[0].mxu0
        %v1451 = vadd.f32 0.0, %v1450
        %v1452 = vpop.f32.mrb[0].mxu0
        %v1453 = vadd.f32 0.0, %v1452
        %v1454 = vpop.f32.mrb[0].mxu0
        %v1455 = vadd.f32 0.0, %v1454
        %1456 = vmatprep.mubr.bf16.mxu0 0
        %1457 = vmatmul.mubr.bf16.gmra.mrb[0].mxu0 %v1367
        %v1458 = vpop.f32.mrb[0].mxu0
        %v1459 = vadd.f32 0.0, %v1458
        %v1460 = vpop.f32.mrb[0].mxu0
        %v1461 = vadd.f32 0.0, %v1460
        %v1462 = vpop.f32.mrb[0].mxu0
        %v1463 = vadd.f32 0.0, %v1462
        %v1464 = vpop.f32.mrb[0].mxu0
        %v1465 = vadd.f32 0.0, %v1464
        %1466 = vmatprep.mubr.bf16.mxu0 0
        %1467 = vmatmul.mubr.bf16.gmra.mrb[0].mxu0 %v1370
        %v1468 = vpop.f32.mrb[0].mxu0
        %v1469 = vadd.f32 0.0, %v1468
        %v1470 = vpop.f32.mrb[0].mxu0
        %v1471 = vadd.f32 0.0, %v1470
        %v1472 = vpop.f32.mrb[0].mxu0
        %v1473 = vadd.f32 0.0, %v1472
        %v1474 = vpop.f32.mrb[0].mxu0
        %v1475 = vadd.f32 0.0, %v1474
        %1476 = vmatprep.mubr.bf16.mxu0 0
        %1477 = vmatmul.mubr.bf16.gmra.mrb[0].mxu0 %v1373
        %v1478 = vpop.f32.mrb[0].mxu0
        %v1479 = vadd.f32 0.0, %v1478
        %v1480 = vpop.f32.mrb[0].mxu0
        %v1481 = vadd.f32 0.0, %v1480
        %v1482 = vpop.f32.mrb[0].mxu0
        %v1483 = vadd.f32 0.0, %v1482
        %v1484 = vpop.f32.mrb[0].mxu0
        %v1485 = vadd.f32 0.0, %v1484
        %1486 = vmatprep.mubr.bf16.mxu0 0
        %1487 = vmatmul.mubr.bf16.gmra.mrb[0].mxu0 %v1376
        %v1488 = vpop.f32.mrb[0].mxu0
        %v1489 = vadd.f32 0.0, %v1488
        %v1490 = vpop.f32.mrb[0].mxu0
        %v1491 = vadd.f32 0.0, %v1490
        %v1492 = vpop.f32.mrb[0].mxu0
        %v1493 = vadd.f32 0.0, %v1492
        %v1494 = vpop.f32.mrb[0].mxu0
        %v1495 = vadd.f32 0.0, %v1494
        %1496 = vdwg.mxu0
        %v1497 = vpack.c.bf16 %v1292, %v1292
        %v1499 = vsel %vm1067, %v1497, 0
        %1501 = vmatprep.subr.bf16.mxu0 0
        %1502 = vmatpush1.bf16.msra.mxu0 %v1499
        %1503 = vmatprep.subr.bf16.mxu0 0
        %1504 = vmatpush1.bf16.msra.mxu0 0
        %1505 = vmatprep.subr.bf16.mxu0 0
        %1506 = vmatpush1.bf16.msra.mxu0 0
        %1507 = vmatprep.subr.bf16.mxu0 0
        %1508 = vmatpush1.bf16.msra.mxu0 0
        %1509 = vmatprep.subr.bf16.mxu0 0
        %1510 = vmatpush1.bf16.msra.mxu0 0
        %1511 = vmatprep.subr.bf16.mxu0 0
        %1512 = vmatpush1.bf16.msra.mxu0 0
        %1513 = vmatprep.subr.bf16.mxu0 0
        %1514 = vmatpush1.bf16.msra.mxu0 0
        %1515 = vmatprep.subr.bf16.mxu0 0
        %1516 = vmatpush1.bf16.msra.mxu0 0
        %1517 = vmatprep.subr.bf16.mxu0 0
        %1518 = vmatpush1.bf16.msra.mxu0 0
        %1519 = vmatprep.subr.bf16.mxu0 0
        %1520 = vmatpush1.bf16.msra.mxu0 0
        %1521 = vmatprep.subr.bf16.mxu0 0
        %1522 = vmatpush1.bf16.msra.mxu0 0
        %1523 = vmatprep.subr.bf16.mxu0 0
        %1524 = vmatpush1.bf16.msra.mxu0 0
        %1525 = vmatprep.subr.bf16.mxu0 0
        %1526 = vmatpush1.bf16.msra.mxu0 0
        %1527 = vmatprep.subr.bf16.mxu0 0
        %1528 = vmatpush1.bf16.msra.mxu0 0
        %1529 = vmatprep.subr.bf16.mxu0 0
        %1530 = vmatpush1.bf16.msra.mxu0 0
        %1531 = vmatprep.subr.bf16.mxu0 0
        %1532 = vmatpush1.bf16.msra.mxu0 0
        %1533 = vmatprep.mubr.bf16.mxu0 0
        %1534 = vmatmul.mubr.bf16.gmra.mrb[0].mxu0 %v1355
        %v1535 = vpop.f32.mrb[0].mxu0
        %v1536 = vadd.f32 0.0, %v1535
        %v1537 = vpop.f32.mrb[0].mxu0
        %v1538 = vpop.f32.mrb[0].mxu0
        %v1539 = vadd.f32 0.0, %v1538
        %v1540 = vpop.f32.mrb[0].mxu0
        %1541 = vmatprep.mubr.bf16.mxu0 0
        %1542 = vmatmul.mubr.bf16.gmra.mrb[0].mxu0 %v1358
        %v1543 = vpop.f32.mrb[0].mxu0
        %v1544 = vadd.f32 0.0, %v1543
        %v1545 = vpop.f32.mrb[0].mxu0
        %v1546 = vpop.f32.mrb[0].mxu0
        %v1547 = vadd.f32 0.0, %v1546
        %v1548 = vpop.f32.mrb[0].mxu0
        %1549 = vmatprep.mubr.bf16.mxu0 0
        %1550 = vmatmul.mubr.bf16.gmra.mrb[0].mxu0 %v1361
        %v1551 = vpop.f32.mrb[0].mxu0
        %v1552 = vadd.f32 0.0, %v1551
        %v1553 = vpop.f32.mrb[0].mxu0
        %v1554 = vpop.f32.mrb[0].mxu0
        %v1555 = vadd.f32 0.0, %v1554
        %v1556 = vpop.f32.mrb[0].mxu0
        %1557 = vmatprep.mubr.bf16.mxu0 0
        %1558 = vmatmul.mubr.bf16.gmra.mrb[0].mxu0 %v1364
        %v1559 = vpop.f32.mrb[0].mxu0
        %v1560 = vadd.f32 0.0, %v1559
        %v1561 = vpop.f32.mrb[0].mxu0
        %v1562 = vpop.f32.mrb[0].mxu0
        %v1563 = vadd.f32 0.0, %v1562
        %v1564 = vpop.f32.mrb[0].mxu0
        %1565 = vmatprep.mubr.bf16.mxu0 0
        %1566 = vmatmul.mubr.bf16.gmra.mrb[0].mxu0 %v1367
        %v1567 = vpop.f32.mrb[0].mxu0
        %v1568 = vadd.f32 0.0, %v1567
        %v1569 = vpop.f32.mrb[0].mxu0
        %v1570 = vpop.f32.mrb[0].mxu0
        %v1571 = vadd.f32 0.0, %v1570
        %v1572 = vpop.f32.mrb[0].mxu0
        %1573 = vmatprep.mubr.bf16.mxu0 0
        %1574 = vmatmul.mubr.bf16.gmra.mrb[0].mxu0 %v1370
        %v1575 = vpop.f32.mrb[0].mxu0
        %v1576 = vadd.f32 0.0, %v1575
        %v1577 = vpop.f32.mrb[0].mxu0
        %v1578 = vpop.f32.mrb[0].mxu0
        %v1579 = vadd.f32 0.0, %v1578
        %v1580 = vpop.f32.mrb[0].mxu0
        %1581 = vmatprep.mubr.bf16.mxu0 0
        %1582 = vmatmul.mubr.bf16.gmra.mrb[0].mxu0 %v1373
        %v1583 = vpop.f32.mrb[0].mxu0
        %v1584 = vadd.f32 0.0, %v1583
        %v1585 = vpop.f32.mrb[0].mxu0
        %v1586 = vpop.f32.mrb[0].mxu0
        %v1587 = vadd.f32 0.0, %v1586
        %v1588 = vpop.f32.mrb[0].mxu0
        %1589 = vmatprep.mubr.bf16.mxu0 0
        %1590 = vmatmul.mubr.bf16.gmra.mrb[0].mxu0 %v1376
        %v1591 = vpop.f32.mrb[0].mxu0
        %v1592 = vadd.f32 0.0, %v1591
        %v1593 = vpop.f32.mrb[0].mxu0
        %v1594 = vpop.f32.mrb[0].mxu0
        %v1595 = vadd.f32 0.0, %v1594
        %v1596 = vpop.f32.mrb[0].mxu0
        %1597 = vdwg.mxu0
        %v1598 = vmul.f32 %v1536, %v918
        %v1599 = vmul.f32 %v1539, %v919
        %v1600 = vmul.f32 %v1544, %v920
        %v1601 = vmul.f32 %v1547, %v921
        %v1602 = vmul.f32 %v1552, %v922
        %v1603 = vmul.f32 %v1555, %v923
        %v1604 = vmul.f32 %v1560, %v924
        %v1605 = vmul.f32 %v1563, %v925
        %v1606 = vmul.f32 %v1568, %v926
        %v1607 = vmul.f32 %v1571, %v927
        %v1608 = vmul.f32 %v1576, %v928
        %v1609 = vmul.f32 %v1579, %v929
        %v1610 = vmul.f32 %v1584, %v930
        %v1611 = vmul.f32 %v1587, %v931
        %v1612 = vmul.f32 %v1592, %v932
        %v1613 = vmul.f32 %v1595, %v933
        %vm1614 = vcmask 130048
        %v1615 = vsel %vm1614, %v1598, 0.0
        %1616 = vadd.xlane.f32.xlu0 %v1615
        %v1617 = vpop.xlane.xlu0 %1616
        %v1618 = vsel %vm1614, %v1599, 0.0
        %1619 = vadd.xlane.f32.xlu0 %v1618
        %v1620 = vpop.xlane.xlu0 %1619
        %v1621 = vsel %vm1614, %v1600, 0.0
        %1622 = vadd.xlane.f32.xlu0 %v1621
        %v1623 = vpop.xlane.xlu0 %1622
        %v1624 = vsel %vm1614, %v1601, 0.0
        %1625 = vadd.xlane.f32.xlu0 %v1624
        %v1626 = vpop.xlane.xlu0 %1625
        %v1627 = vsel %vm1614, %v1602, 0.0
        %1628 = vadd.xlane.f32.xlu0 %v1627
        %v1629 = vpop.xlane.xlu0 %1628
        %v1630 = vsel %vm1614, %v1603, 0.0
        %1631 = vadd.xlane.f32.xlu0 %v1630
        %v1632 = vpop.xlane.xlu0 %1631
        %v1633 = vsel %vm1614, %v1604, 0.0
        %1634 = vadd.xlane.f32.xlu0 %v1633
        %v1635 = vpop.xlane.xlu0 %1634
        %v1636 = vsel %vm1614, %v1605, 0.0
        %1637 = vadd.xlane.f32.xlu0 %v1636
        %v1638 = vpop.xlane.xlu0 %1637
        %v1639 = vsel %vm1614, %v1606, 0.0
        %1640 = vadd.xlane.f32.xlu0 %v1639
        %v1641 = vpop.xlane.xlu0 %1640
        %v1642 = vsel %vm1614, %v1607, 0.0
        %1643 = vadd.xlane.f32.xlu0 %v1642
        %v1644 = vpop.xlane.xlu0 %1643
        %v1645 = vsel %vm1614, %v1608, 0.0
        %1646 = vadd.xlane.f32.xlu0 %v1645
        %v1647 = vpop.xlane.xlu0 %1646
        %v1648 = vsel %vm1614, %v1609, 0.0
        %1649 = vadd.xlane.f32.xlu0 %v1648
        %v1650 = vpop.xlane.xlu0 %1649
        %v1651 = vsel %vm1614, %v1610, 0.0
        %1652 = vadd.xlane.f32.xlu0 %v1651
        %v1653 = vpop.xlane.xlu0 %1652
        %v1654 = vsel %vm1614, %v1611, 0.0
        %1655 = vadd.xlane.f32.xlu0 %v1654
        %v1656 = vpop.xlane.xlu0 %1655
        %v1657 = vsel %vm1614, %v1612, 0.0
        %1658 = vadd.xlane.f32.xlu0 %v1657
        %v1659 = vpop.xlane.xlu0 %1658
        %v1660 = vsel %vm1614, %v1613, 0.0
        %1661 = vadd.xlane.f32.xlu0 %v1660
        %v1662 = vpop.xlane.xlu0 %1661
        %1679 = vrot.lane.b32.xlu0 %v1598, 112
        %v1680 = vpop.permute.xlu0 %1679
        %1681 = vrot.lane.b32.xlu0 %v1599, 112
        %v1682 = vpop.permute.xlu0 %1681
        %1683 = vrot.lane.b32.xlu0 %v1600, 112
        %v1684 = vpop.permute.xlu0 %1683
        %1685 = vrot.lane.b32.xlu0 %v1601, 112
        %v1686 = vpop.permute.xlu0 %1685
        %1687 = vrot.lane.b32.xlu0 %v1602, 112
        %v1688 = vpop.permute.xlu0 %1687
        %1689 = vrot.lane.b32.xlu0 %v1603, 112
        %v1690 = vpop.permute.xlu0 %1689
        %1691 = vrot.lane.b32.xlu0 %v1604, 112
        %v1692 = vpop.permute.xlu0 %1691
        %1693 = vrot.lane.b32.xlu0 %v1605, 112
        %v1694 = vpop.permute.xlu0 %1693
        %1695 = vrot.lane.b32.xlu0 %v1606, 112
        %v1696 = vpop.permute.xlu0 %1695
        %1697 = vrot.lane.b32.xlu0 %v1607, 112
        %v1698 = vpop.permute.xlu0 %1697
        %1699 = vrot.lane.b32.xlu0 %v1608, 112
        %v1700 = vpop.permute.xlu0 %1699
        %1701 = vrot.lane.b32.xlu0 %v1609, 112
        %v1702 = vpop.permute.xlu0 %1701
        %1703 = vrot.lane.b32.xlu0 %v1610, 112
        %v1704 = vpop.permute.xlu0 %1703
        %1705 = vrot.lane.b32.xlu0 %v1611, 112
        %v1706 = vpop.permute.xlu0 %1705
        %1707 = vrot.lane.b32.xlu0 %v1612, 112
        %v1708 = vpop.permute.xlu0 %1707
        %1709 = vrot.lane.b32.xlu0 %v1613, 112
        %v1710 = vpop.permute.xlu0 %1709
        %v1727 = vsel %vm1614, %v1680, 0.0
        %1728 = vadd.xlane.f32.xlu0 %v1727
        %v1729 = vpop.xlane.xlu0 %1728
        %v1730 = vsel %vm1614, %v1682, 0.0
        %1731 = vadd.xlane.f32.xlu0 %v1730
        %v1732 = vpop.xlane.xlu0 %1731
        %v1733 = vsel %vm1614, %v1684, 0.0
        %1734 = vadd.xlane.f32.xlu0 %v1733
        %v1735 = vpop.xlane.xlu0 %1734
        %v1736 = vsel %vm1614, %v1686, 0.0
        %1737 = vadd.xlane.f32.xlu0 %v1736
        %v1738 = vpop.xlane.xlu0 %1737
        %v1739 = vsel %vm1614, %v1688, 0.0
        %1740 = vadd.xlane.f32.xlu0 %v1739
        %v1741 = vpop.xlane.xlu0 %1740
        %v1742 = vsel %vm1614, %v1690, 0.0
        %1743 = vadd.xlane.f32.xlu0 %v1742
        %v1744 = vpop.xlane.xlu0 %1743
        %v1745 = vsel %vm1614, %v1692, 0.0
        %1746 = vadd.xlane.f32.xlu0 %v1745
        %v1747 = vpop.xlane.xlu0 %1746
        %v1748 = vsel %vm1614, %v1694, 0.0
        %1749 = vadd.xlane.f32.xlu0 %v1748
        %v1750 = vpop.xlane.xlu0 %1749
        %v1751 = vsel %vm1614, %v1696, 0.0
        %1752 = vadd.xlane.f32.xlu0 %v1751
        %v1753 = vpop.xlane.xlu0 %1752
        %v1754 = vsel %vm1614, %v1698, 0.0
        %1755 = vadd.xlane.f32.xlu0 %v1754
        %v1756 = vpop.xlane.xlu0 %1755
        %v1757 = vsel %vm1614, %v1700, 0.0
        %1758 = vadd.xlane.f32.xlu0 %v1757
        %v1759 = vpop.xlane.xlu0 %1758
        %v1760 = vsel %vm1614, %v1702, 0.0
        %1761 = vadd.xlane.f32.xlu0 %v1760
        %v1762 = vpop.xlane.xlu0 %1761
        %v1763 = vsel %vm1614, %v1704, 0.0
        %1764 = vadd.xlane.f32.xlu0 %v1763
        %v1765 = vpop.xlane.xlu0 %1764
        %v1766 = vsel %vm1614, %v1706, 0.0
        %1767 = vadd.xlane.f32.xlu0 %v1766
        %v1768 = vpop.xlane.xlu0 %1767
        %v1769 = vsel %vm1614, %v1708, 0.0
        %1770 = vadd.xlane.f32.xlu0 %v1769
        %v1771 = vpop.xlane.xlu0 %1770
        %v1772 = vsel %vm1614, %v1710, 0.0
        %1773 = vadd.xlane.f32.xlu0 %v1772
        %v1774 = vpop.xlane.xlu0 %1773
        %v1775 = vld [vmem:[%s14] sm:$0xff]
        %v1776 = vld [vmem:[%s14 + $0x8] sm:$0xff]
        %v1777 = vmul.f32 %v1419, %v1775
        %v1778 = vmul.f32 %v1423, %v1776
        %v1779 = vmul.f32 %v1429, %v1775
        %v1780 = vmul.f32 %v1433, %v1776
        %v1781 = vmul.f32 %v1439, %v1775
        %v1782 = vmul.f32 %v1443, %v1776
        %v1783 = vmul.f32 %v1449, %v1775
        %v1784 = vmul.f32 %v1453, %v1776
        %v1785 = vmul.f32 %v1459, %v1775
        %v1786 = vmul.f32 %v1463, %v1776
        %v1787 = vmul.f32 %v1469, %v1775
        %v1788 = vmul.f32 %v1473, %v1776
        %v1789 = vmul.f32 %v1479, %v1775
        %v1790 = vmul.f32 %v1483, %v1776
        %v1791 = vmul.f32 %v1489, %v1775
        %v1792 = vmul.f32 %v1493, %v1776
        %v1793 = vmul.f32 %v1777, 1.442695
        %v1794 = vpow.pop %v1793
        %v1795 = vmul.f32 %v1778, 1.442695
        %v1796 = vpow.pop %v1795
        %v1797 = vmul.f32 %v1779, 1.442695
        %v1798 = vpow.pop %v1797
        %v1799 = vmul.f32 %v1780, 1.442695
        %v1800 = vpow.pop %v1799
        %v1801 = vmul.f32 %v1781, 1.442695
        %v1802 = vpow.pop %v1801
        %v1803 = vmul.f32 %v1782, 1.442695
        %v1804 = vpow.pop %v1803
        %v1805 = vmul.f32 %v1783, 1.442695
        %v1806 = vpow.pop %v1805
        %v1807 = vmul.f32 %v1784, 1.442695
        %v1808 = vpow.pop %v1807
        %v1809 = vmul.f32 %v1785, 1.442695
        %v1810 = vpow.pop %v1809
        %v1811 = vmul.f32 %v1786, 1.442695
        %v1812 = vpow.pop %v1811
        %v1813 = vmul.f32 %v1787, 1.442695
        %v1814 = vpow.pop %v1813
        %v1815 = vmul.f32 %v1788, 1.442695
        %v1816 = vpow.pop %v1815
        %v1817 = vmul.f32 %v1789, 1.442695
        %v1818 = vpow.pop %v1817
        %v1819 = vmul.f32 %v1790, 1.442695
        %v1820 = vpow.pop %v1819
        %v1821 = vmul.f32 %v1791, 1.442695
        %v1822 = vpow.pop %v1821
        %v1823 = vmul.f32 %v1792, 1.442695
        %v1824 = vpow.pop %v1823
        %1825 = vst [vmem:[#allocation2] sm:$0xff] %v1794
        %1826 = vst [vmem:[#allocation2 + $0x8] sm:$0xff] %v1796
        %1827 = vst [vmem:[#allocation2 + $0x10] sm:$0xff] %v1798
        %1828 = vst [vmem:[#allocation2 + $0x18] sm:$0xff] %v1800
        %1829 = vst [vmem:[#allocation2 + $0x20] sm:$0xff] %v1802
        %1830 = vst [vmem:[#allocation2 + $0x28] sm:$0xff] %v1804
        %1831 = vst [vmem:[#allocation2 + $0x30] sm:$0xff] %v1806
        %1832 = vst [vmem:[#allocation2 + $0x38] sm:$0xff] %v1808
        %1833 = vst [vmem:[#allocation2 + $0x40] sm:$0xff] %v1810
        %1834 = vst [vmem:[#allocation2 + $0x48] sm:$0xff] %v1812
        %1835 = vst [vmem:[#allocation2 + $0x50] sm:$0xff] %v1814
        %1836 = vst [vmem:[#allocation2 + $0x58] sm:$0xff] %v1816
        %1837 = vst [vmem:[#allocation2 + $0x60] sm:$0xff] %v1818
        %1838 = vst [vmem:[#allocation2 + $0x68] sm:$0xff] %v1820
        %1839 = vst [vmem:[#allocation2 + $0x70] sm:$0xff] %v1822
        %1840 = vst [vmem:[#allocation2 + $0x78] sm:$0xff] %v1824
        %v1841 = vmul.f32 %v1421, %v1617
        %v1842 = vmul.f32 %v1425, %v1620
        %v1843 = vmul.f32 %v1431, %v1623
        %v1844 = vmul.f32 %v1435, %v1626
        %v1845 = vmul.f32 %v1441, %v1629
        %v1846 = vmul.f32 %v1445, %v1632
        %v1847 = vmul.f32 %v1451, %v1635
        %v1848 = vmul.f32 %v1455, %v1638
        %v1849 = vmul.f32 %v1461, %v1641
        %v1850 = vmul.f32 %v1465, %v1644
        %v1851 = vmul.f32 %v1471, %v1647
        %v1852 = vmul.f32 %v1475, %v1650
        %v1853 = vmul.f32 %v1481, %v1653
        %v1854 = vmul.f32 %v1485, %v1656
        %v1855 = vmul.f32 %v1491, %v1659
        %v1856 = vmul.f32 %v1495, %v1662
        %1857 = vst [vmem:[#allocation3] sm:$0xff] %v1841
        %1858 = vst [vmem:[#allocation3 + $0x8] sm:$0xff] %v1842
        %1859 = vst [vmem:[#allocation3 + $0x10] sm:$0xff] %v1843
        %1860 = vst [vmem:[#allocation3 + $0x18] sm:$0xff] %v1844
        %1861 = vst [vmem:[#allocation3 + $0x20] sm:$0xff] %v1845
        %1862 = vst [vmem:[#allocation3 + $0x28] sm:$0xff] %v1846
        %1863 = vst [vmem:[#allocation3 + $0x30] sm:$0xff] %v1847
        %1864 = vst [vmem:[#allocation3 + $0x38] sm:$0xff] %v1848
        %1865 = vst [vmem:[#allocation3 + $0x40] sm:$0xff] %v1849
        %1866 = vst [vmem:[#allocation3 + $0x48] sm:$0xff] %v1850
        %1867 = vst [vmem:[#allocation3 + $0x50] sm:$0xff] %v1851
        %1868 = vst [vmem:[#allocation3 + $0x58] sm:$0xff] %v1852
        %1869 = vst [vmem:[#allocation3 + $0x60] sm:$0xff] %v1853
        %1870 = vst [vmem:[#allocation3 + $0x68] sm:$0xff] %v1854
        %1871 = vst [vmem:[#allocation3 + $0x70] sm:$0xff] %v1855
        %1872 = vst [vmem:[#allocation3 + $0x78] sm:$0xff] %v1856
        %v1873 = vld [vmem:[#allocation2] sm:$0xff]
        %v1874 = vld [vmem:[#allocation2 + $0x8] sm:$0xff]
        %v1875 = vmul.f32 %v1873, 0.0
        %v1876 = vmul.f32 %v1874, 0.0
        %v1877 = vld [vmem:[#allocation3] sm:$0xff]
        %v1878 = vld [vmem:[#allocation3 + $0x8] sm:$0xff]
        %v1879 = vadd.f32 %v1875, %v1877
        %v1880 = vadd.f32 %v1876, %v1878
        %1881 = vst [vmem:[#allocation4] sm:$0xff] %v1879
        %1882 = vst [vmem:[#allocation4 + $0x8] sm:$0xff] %v1880
        %s1883 = scalar_lea.vmem [#allocation2], 16
        %v1884 = vld [vmem:[%s1883] sm:$0xff]
        %v1885 = vld [vmem:[%s1883 + $0x8] sm:$0xff]
        %v1886 = vmul.f32 %v1884, %v1879
        %v1887 = vmul.f32 %v1885, %v1880
        %s1888 = scalar_lea.vmem [#allocation3], 16
        %v1889 = vld [vmem:[%s1888] sm:$0xff]
        %v1890 = vld [vmem:[%s1888 + $0x8] sm:$0xff]
        %v1891 = vadd.f32 %v1886, %v1889
        %v1892 = vadd.f32 %v1887, %v1890
        %s1893 = scalar_lea.vmem [#allocation4], 16
        %1894 = vst [vmem:[%s1893] sm:$0xff] %v1891
        %1895 = vst [vmem:[%s1893 + $0x8] sm:$0xff] %v1892
        %s1896 = scalar_lea.vmem [#allocation2], 32
        %v1897 = vld [vmem:[%s1896] sm:$0xff]
        %v1898 = vld [vmem:[%s1896 + $0x8] sm:$0xff]
        %v1899 = vmul.f32 %v1897, %v1891
        %v1900 = vmul.f32 %v1898, %v1892
        %s1901 = scalar_lea.vmem [#allocation3], 32
        %v1902 = vld [vmem:[%s1901] sm:$0xff]
        %v1903 = vld [vmem:[%s1901 + $0x8] sm:$0xff]
        %v1904 = vadd.f32 %v1899, %v1902
        %v1905 = vadd.f32 %v1900, %v1903
        %s1906 = scalar_lea.vmem [#allocation4], 32
        %1907 = vst [vmem:[%s1906] sm:$0xff] %v1904
        %1908 = vst [vmem:[%s1906 + $0x8] sm:$0xff] %v1905
        %s1909 = scalar_lea.vmem [#allocation2], 48
        %v1910 = vld [vmem:[%s1909] sm:$0xff]
        %v1911 = vld [vmem:[%s1909 + $0x8] sm:$0xff]
        %v1912 = vmul.f32 %v1910, %v1904
        %v1913 = vmul.f32 %v1911, %v1905
        %s1914 = scalar_lea.vmem [#allocation3], 48
        %v1915 = vld [vmem:[%s1914] sm:$0xff]
        %v1916 = vld [vmem:[%s1914 + $0x8] sm:$0xff]
        %v1917 = vadd.f32 %v1912, %v1915
        %v1918 = vadd.f32 %v1913, %v1916
        %s1919 = scalar_lea.vmem [#allocation4], 48
        %1920 = vst [vmem:[%s1919] sm:$0xff] %v1917
        %1921 = vst [vmem:[%s1919 + $0x8] sm:$0xff] %v1918
        %s1922 = scalar_lea.vmem [#allocation2], 64
        %v1923 = vld [vmem:[%s1922] sm:$0xff]
        %v1924 = vld [vmem:[%s1922 + $0x8] sm:$0xff]
        %v1925 = vmul.f32 %v1923, %v1917
        %v1926 = vmul.f32 %v1924, %v1918
        %s1927 = scalar_lea.vmem [#allocation3], 64
        %v1928 = vld [vmem:[%s1927] sm:$0xff]
        %v1929 = vld [vmem:[%s1927 + $0x8] sm:$0xff]
        %v1930 = vadd.f32 %v1925, %v1928
        %v1931 = vadd.f32 %v1926, %v1929
        %s1932 = scalar_lea.vmem [#allocation4], 64
        %1933 = vst [vmem:[%s1932] sm:$0xff] %v1930
        %1934 = vst [vmem:[%s1932 + $0x8] sm:$0xff] %v1931
        %s1935 = scalar_lea.vmem [#allocation2], 80
        %v1936 = vld [vmem:[%s1935] sm:$0xff]
        %v1937 = vld [vmem:[%s1935 + $0x8] sm:$0xff]
        %v1938 = vmul.f32 %v1936, %v1930
        %v1939 = vmul.f32 %v1937, %v1931
        %s1940 = scalar_lea.vmem [#allocation3], 80
        %v1941 = vld [vmem:[%s1940] sm:$0xff]
        %v1942 = vld [vmem:[%s1940 + $0x8] sm:$0xff]
        %v1943 = vadd.f32 %v1938, %v1941
        %v1944 = vadd.f32 %v1939, %v1942
        %s1945 = scalar_lea.vmem [#allocation4], 80
        %1946 = vst [vmem:[%s1945] sm:$0xff] %v1943
        %1947 = vst [vmem:[%s1945 + $0x8] sm:$0xff] %v1944
        %s1948 = scalar_lea.vmem [#allocation2], 96
        %v1949 = vld [vmem:[%s1948] sm:$0xff]
        %v1950 = vld [vmem:[%s1948 + $0x8] sm:$0xff]
        %v1951 = vmul.f32 %v1949, %v1943
        %v1952 = vmul.f32 %v1950, %v1944
        %s1953 = scalar_lea.vmem [#allocation3], 96
        %v1954 = vld [vmem:[%s1953] sm:$0xff]
        %v1955 = vld [vmem:[%s1953 + $0x8] sm:$0xff]
        %v1956 = vadd.f32 %v1951, %v1954
        %v1957 = vadd.f32 %v1952, %v1955
        %s1958 = scalar_lea.vmem [#allocation4], 96
        %1959 = vst [vmem:[%s1958] sm:$0xff] %v1956
        %1960 = vst [vmem:[%s1958 + $0x8] sm:$0xff] %v1957
        %s1961 = scalar_lea.vmem [#allocation2], 112
        %v1962 = vld [vmem:[%s1961] sm:$0xff]
        %v1963 = vld [vmem:[%s1961 + $0x8] sm:$0xff]
        %v1964 = vmul.f32 %v1962, %v1956
        %v1965 = vmul.f32 %v1963, %v1957
        %s1966 = scalar_lea.vmem [#allocation3], 112
        %v1967 = vld [vmem:[%s1966] sm:$0xff]
        %v1968 = vld [vmem:[%s1966 + $0x8] sm:$0xff]
        %v1969 = vadd.f32 %v1964, %v1967
        %v1970 = vadd.f32 %v1965, %v1968
        %s1971 = scalar_lea.vmem [#allocation4], 112
        %1972 = vst [vmem:[%s1971] sm:$0xff] %v1969
        %1973 = vst [vmem:[%s1971 + $0x8] sm:$0xff] %v1970
        %v1974 = vld [vmem:[#allocation4] sm:$0xff]
        %v1975 = vld [vmem:[#allocation4 + $0x8] sm:$0xff]
        %v1976 = vld [vmem:[#allocation4 + $0x10] sm:$0xff]
        %v1977 = vld [vmem:[#allocation4 + $0x18] sm:$0xff]
        %v1978 = vld [vmem:[#allocation4 + $0x20] sm:$0xff]
        %v1979 = vld [vmem:[#allocation4 + $0x28] sm:$0xff]
        %v1980 = vld [vmem:[#allocation4 + $0x30] sm:$0xff]
        %v1981 = vld [vmem:[#allocation4 + $0x38] sm:$0xff]
        %v1982 = vld [vmem:[#allocation4 + $0x40] sm:$0xff]
        %v1983 = vld [vmem:[#allocation4 + $0x48] sm:$0xff]
        %v1984 = vld [vmem:[#allocation4 + $0x50] sm:$0xff]
        %v1985 = vld [vmem:[#allocation4 + $0x58] sm:$0xff]
        %v1986 = vld [vmem:[#allocation4 + $0x60] sm:$0xff]
        %v1987 = vld [vmem:[#allocation4 + $0x68] sm:$0xff]
        %v1988 = vld [vmem:[#allocation4 + $0x70] sm:$0xff]
        %v1989 = vld [vmem:[#allocation4 + $0x78] sm:$0xff]
        %v1990 = vmul.f32 %v1974, %v1729
        %v1991 = vmul.f32 %v1975, %v1732
        %v1992 = vmul.f32 %v1976, %v1735
        %v1993 = vmul.f32 %v1977, %v1738
        %v1994 = vmul.f32 %v1978, %v1741
        %v1995 = vmul.f32 %v1979, %v1744
        %v1996 = vmul.f32 %v1980, %v1747
        %v1997 = vmul.f32 %v1981, %v1750
        %v1998 = vmul.f32 %v1982, %v1753
        %v1999 = vmul.f32 %v1983, %v1756
        %v2000 = vmul.f32 %v1984, %v1759
        %v2001 = vmul.f32 %v1985, %v1762
        %v2002 = vmul.f32 %v1986, %v1765
        %v2003 = vmul.f32 %v1987, %v1768
        %v2004 = vmul.f32 %v1988, %v1771
        %v2005 = vmul.f32 %v1989, %v1774
        %v2006 = vpack.c.bf16 %v1991, %v1990
        %v2007 = vpack.c.bf16 %v1993, %v1992
        %v2008 = vpack.c.bf16 %v1995, %v1994
        %v2009 = vpack.c.bf16 %v1997, %v1996
        %v2010 = vpack.c.bf16 %v1999, %v1998
        %v2011 = vpack.c.bf16 %v2001, %v2000
        %v2012 = vpack.c.bf16 %v2003, %v2002
        %v2013 = vpack.c.bf16 %v2005, %v2004
        %v2014 = vld [vmem:[%s15] sm:$0x1]
        %v2016 = vlaneseq
        %v2017 = vshrl.u32 %v2016, 7
        %v2018 = vsub.s32 0, %v2017
        %v2019 = vrot.slane %v2014, %v2018
        %v2021 = vmul.f32 %v1157, %v2019
        %2022 = vmatprep.subr.bf16.mxu0 0
        %2023 = vmatpush1.bf16.msra.mxu0 %v2006
        %2024 = vmatprep.subr.bf16.mxu0 0
        %2025 = vmatpush1.bf16.msra.mxu0 %v2007
        %2026 = vmatprep.subr.bf16.mxu0 0
        %2027 = vmatpush1.bf16.msra.mxu0 %v2008
        %2028 = vmatprep.subr.bf16.mxu0 0
        %2029 = vmatpush1.bf16.msra.mxu0 %v2009
        %2030 = vmatprep.subr.bf16.mxu0 0
        %2031 = vmatpush1.bf16.msra.mxu0 %v2010
        %2032 = vmatprep.subr.bf16.mxu0 0
        %2033 = vmatpush1.bf16.msra.mxu0 %v2011
        %2034 = vmatprep.subr.bf16.mxu0 0
        %2035 = vmatpush1.bf16.msra.mxu0 %v2012
        %2036 = vmatprep.subr.bf16.mxu0 0
        %2037 = vmatpush1.bf16.msra.mxu0 %v2013
        %2038 = vmatprep.subr.bf16.mxu0 0
        %2039 = vmatpush1.bf16.msra.mxu0 0
        %2040 = vmatprep.subr.bf16.mxu0 0
        %2041 = vmatpush1.bf16.msra.mxu0 0
        %2042 = vmatprep.subr.bf16.mxu0 0
        %2043 = vmatpush1.bf16.msra.mxu0 0
        %2044 = vmatprep.subr.bf16.mxu0 0
        %2045 = vmatpush1.bf16.msra.mxu0 0
        %2046 = vmatprep.subr.bf16.mxu0 0
        %2047 = vmatpush1.bf16.msra.mxu0 0
        %2048 = vmatprep.subr.bf16.mxu0 0
        %2049 = vmatpush1.bf16.msra.mxu0 0
        %2050 = vmatprep.subr.bf16.mxu0 0
        %2051 = vmatpush1.bf16.msra.mxu0 0
        %2052 = vmatprep.subr.bf16.mxu0 0
        %2053 = vmatpush1.bf16.msra.mxu0 0
        %2054 = vmatprep.mubr.bf16.mxu0 0
        %2055 = vmatmul.mubr.bf16.gmra.mrb[0].mxu0 %v917
        %v2056 = vpop.f32.mrb[0].mxu0
        %v2057 = vadd.f32 %v2021, %v2056
        %v2058 = vpop.f32.mrb[0].mxu0
        %v2059 = vpop.f32.mrb[0].mxu0
        %v2060 = vpop.f32.mrb[0].mxu0
        %2061 = vdwg.mxu0
        %v2062 = vsub.f32 0.0, %v1045
        %v2063 = vmul.f32 %v2062, 1.442695
        %v2064 = vpow.pop %v2063
        %v2065 = vadd.f32 %v2064, 1.0
        %v2066 = vrcp.pop %v2065
        %v2067 = vmul.f32 %v1045, %v2066
        %v2068 = vmul.f32 %v2057, %v2067
        %v2069 = vld [vmem:[%s16] sm:$0xf]
        %v2070 = vld [vmem:[%s16 + $0x4] sm:$0xf]
        %v2071 = vld [vmem:[%s16 + $0x8] sm:$0xf]
        %v2072 = vld [vmem:[%s16 + $0xc] sm:$0xf]
        %v2073 = vld [vmem:[%s16 + $0x10] sm:$0xf]
        %v2074 = vld [vmem:[%s16 + $0x14] sm:$0xf]
        %v2075 = vld [vmem:[%s16 + $0x18] sm:$0xf]
        %v2076 = vld [vmem:[%s16 + $0x1c] sm:$0xf]
        %v2077 = vld [vmem:[%s16 + $0x20] sm:$0xf]
        %v2078 = vld [vmem:[%s16 + $0x24] sm:$0xf]
        %v2079 = vld [vmem:[%s16 + $0x28] sm:$0xf]
        %v2080 = vld [vmem:[%s16 + $0x2c] sm:$0xf]
        %v2081 = vld [vmem:[%s16 + $0x30] sm:$0xf]
        %v2082 = vld [vmem:[%s16 + $0x34] sm:$0xf]
        %v2083 = vld [vmem:[%s16 + $0x38] sm:$0xf]
        %v2084 = vld [vmem:[%s16 + $0x3c] sm:$0xf]
        %v2085 = vpack.c.bf16 %v2068, %v2068
        %v2102 = vunpack.c.l.b16 %v2069
        %v2103 = vunpack.c.l.b16 %v2070
        %v2104 = vunpack.c.l.b16 %v2071
        %v2105 = vunpack.c.l.b16 %v2072
        %v2106 = vunpack.c.l.b16 %v2073
        %v2107 = vunpack.c.l.b16 %v2074
        %v2108 = vunpack.c.l.b16 %v2075
        %v2109 = vunpack.c.l.b16 %v2076
        %v2110 = vunpack.c.l.b16 %v2077
        %v2111 = vunpack.c.l.b16 %v2078
        %v2112 = vunpack.c.l.b16 %v2079
        %v2113 = vunpack.c.l.b16 %v2080
        %v2114 = vunpack.c.l.b16 %v2081
        %v2115 = vunpack.c.l.b16 %v2082
        %v2116 = vunpack.c.l.b16 %v2083
        %v2117 = vunpack.c.l.b16 %v2084
        %v2118 = vpack.c.b16 %v2103, %v2102
        %v2119 = vpack.c.b16 %v2105, %v2104
        %v2120 = vpack.c.b16 %v2107, %v2106
        %v2121 = vpack.c.b16 %v2109, %v2108
        %v2122 = vpack.c.b16 %v2111, %v2110
        %v2123 = vpack.c.b16 %v2113, %v2112
        %v2124 = vpack.c.b16 %v2115, %v2114
        %v2125 = vpack.c.b16 %v2117, %v2116
        %2134 = vmatprep.subr.bf16.mxu0 0
        %2135 = vmatpush1.bf16.msra.mxu0 %v2118
        %2136 = vmatprep.subr.bf16.mxu0 0
        %2137 = vmatpush1.bf16.msra.mxu0 %v2119
        %2138 = vmatprep.subr.bf16.mxu0 0
        %2139 = vmatpush1.bf16.msra.mxu0 %v2120
        %2140 = vmatprep.subr.bf16.mxu0 0
        %2141 = vmatpush1.bf16.msra.mxu0 %v2121
        %2142 = vmatprep.subr.bf16.mxu0 0
        %2143 = vmatpush1.bf16.msra.mxu0 %v2122
        %2144 = vmatprep.subr.bf16.mxu0 0
        %2145 = vmatpush1.bf16.msra.mxu0 %v2123
        %2146 = vmatprep.subr.bf16.mxu0 0
        %2147 = vmatpush1.bf16.msra.mxu0 %v2124
        %2148 = vmatprep.subr.bf16.mxu0 0
        %2149 = vmatpush1.bf16.msra.mxu0 %v2125
        %2150 = vmatprep.subr.bf16.mxu0 0
        %2151 = vmatpush1.bf16.msra.mxu0 0
        %2152 = vmatprep.subr.bf16.mxu0 0
        %2153 = vmatpush1.bf16.msra.mxu0 0
        %2154 = vmatprep.subr.bf16.mxu0 0
        %2155 = vmatpush1.bf16.msra.mxu0 0
        %2156 = vmatprep.subr.bf16.mxu0 0
        %2157 = vmatpush1.bf16.msra.mxu0 0
        %2158 = vmatprep.subr.bf16.mxu0 0
        %2159 = vmatpush1.bf16.msra.mxu0 0
        %2160 = vmatprep.subr.bf16.mxu0 0
        %2161 = vmatpush1.bf16.msra.mxu0 0
        %2162 = vmatprep.subr.bf16.mxu0 0
        %2163 = vmatpush1.bf16.msra.mxu0 0
        %2164 = vmatprep.subr.bf16.mxu0 0
        %2165 = vmatpush1.bf16.msra.mxu0 0
        %2166 = vmatprep.mubr.bf16.mxu0 0
        %2167 = vmatmul.mubr.bf16.gmra.mrb[0].mxu0 %v2085
        %v2168 = vpop.f32.mrb[0].mxu0
        %v2169 = vadd.f32 %v896, %v2168
        %v2170 = vpop.f32.mrb[0].mxu0
        %v2171 = vpop.f32.mrb[0].mxu0
        %v2172 = vpop.f32.mrb[0].mxu0
        %2173 = vdwg.mxu0
        %v2174 = vld [vmem:[%s17] sm:$0x1]
        %v2175 = vmul.f32 %v2169, %v2169
        %v2176 = vsel %vm940, %v2175, 0.0
        %2177 = vadd.xlane.f32.xlu0 %v2176
        %v2178 = vpop.xlane.xlu0 %2177
        %v2179 = vmul.f32 %v2178, %v944
        %v2180 = vadd.f32 %v2179, 1e-05
        %v2181 = vrsqrt.pop %v2180
        %v2182 = vmul.f32 %v2169, %v2181
        %v2184 = vlaneseq
        %v2185 = vshrl.u32 %v2184, 7
        %v2186 = vsub.s32 0, %v2185
        %v2187 = vrot.slane %v2174, %v2186
        %v2189 = vmul.f32 %v2182, %v2187
        %v2190 = vld [vmem:[%s18] sm:$0xff]
        %v2191 = vld [vmem:[%s18 + $0x8] sm:$0xff]
        %v2192 = vld [vmem:[%s18 + $0x10] sm:$0xff]
        %v2193 = vld [vmem:[%s18 + $0x18] sm:$0xff]
        %v2194 = vld [vmem:[%s18 + $0x20] sm:$0xff]
        %v2195 = vld [vmem:[%s18 + $0x28] sm:$0xff]
        %v2196 = vld [vmem:[%s18 + $0x30] sm:$0xff]
        %v2197 = vld [vmem:[%s18 + $0x38] sm:$0xff]
        %v2198 = vpack.c.bf16 %v2189, %v2189
        %v2207 = vunpack.c.l.b16 %v2190
        %v2208 = vunpack.c.h.b16 %v2190
        %v2209 = vunpack.c.l.b16 %v2191
        %v2210 = vunpack.c.h.b16 %v2191
        %v2211 = vunpack.c.l.b16 %v2192
        %v2212 = vunpack.c.h.b16 %v2192
        %v2213 = vunpack.c.l.b16 %v2193
        %v2214 = vunpack.c.h.b16 %v2193
        %v2215 = vunpack.c.l.b16 %v2194
        %v2216 = vunpack.c.h.b16 %v2194
        %v2217 = vunpack.c.l.b16 %v2195
        %v2218 = vunpack.c.h.b16 %v2195
        %v2219 = vunpack.c.l.b16 %v2196
        %v2220 = vunpack.c.h.b16 %v2196
        %v2221 = vunpack.c.l.b16 %v2197
        %v2222 = vunpack.c.h.b16 %v2197
        %v2223 = vpack.c.b16 %v2209, %v2207
        %v2224 = vpack.c.b16 %v2210, %v2208
        %v2225 = vpack.c.b16 %v2213, %v2211
        %v2226 = vpack.c.b16 %v2214, %v2212
        %v2227 = vpack.c.b16 %v2217, %v2215
        %v2228 = vpack.c.b16 %v2218, %v2216
        %v2229 = vpack.c.b16 %v2221, %v2219
        %v2230 = vpack.c.b16 %v2222, %v2220
        %v2240 = vsel %vm940, %v2198, 0
        %2242 = vmatprep.subr.bf16.mxu0 %v2224
        %2243 = vmatpush1.bf16.msra.mxu0 %v2223
        %2244 = vmatprep.subr.bf16.mxu0 %v2226
        %2245 = vmatpush1.bf16.msra.mxu0 %v2225
        %2246 = vmatprep.subr.bf16.mxu0 %v2228
        %2247 = vmatpush1.bf16.msra.mxu0 %v2227
        %2248 = vmatprep.subr.bf16.mxu0 %v2230
        %2249 = vmatpush1.bf16.msra.mxu0 %v2229
        %2250 = vmatprep.subr.bf16.mxu0 0
        %2251 = vmatpush1.bf16.msra.mxu0 0
        %2252 = vmatprep.subr.bf16.mxu0 0
        %2253 = vmatpush1.bf16.msra.mxu0 0
        %2254 = vmatprep.subr.bf16.mxu0 0
        %2255 = vmatpush1.bf16.msra.mxu0 0
        %2256 = vmatprep.subr.bf16.mxu0 0
        %2257 = vmatpush1.bf16.msra.mxu0 0
        %2258 = vmatprep.subr.bf16.mxu0 0
        %2259 = vmatpush1.bf16.msra.mxu0 0
        %2260 = vmatprep.subr.bf16.mxu0 0
        %2261 = vmatpush1.bf16.msra.mxu0 0
        %2262 = vmatprep.subr.bf16.mxu0 0
        %2263 = vmatpush1.bf16.msra.mxu0 0
        %2264 = vmatprep.subr.bf16.mxu0 0
        %2265 = vmatpush1.bf16.msra.mxu0 0
        %2266 = vmatprep.subr.bf16.mxu0 0
        %2267 = vmatpush1.bf16.msra.mxu0 0
        %2268 = vmatprep.subr.bf16.mxu0 0
        %2269 = vmatpush1.bf16.msra.mxu0 0
        %2270 = vmatprep.subr.bf16.mxu0 0
        %2271 = vmatpush1.bf16.msra.mxu0 0
        %2272 = vmatprep.subr.bf16.mxu0 0
        %2273 = vmatpush1.bf16.msra.mxu0 0
        %2274 = vmatprep.mubr.bf16.mxu0 0
        %2275 = vmatmul.mubr.bf16.gmra.mrb[0].mxu0 %v2240
        %v2276 = vpop.f32.mrb[0].mxu0
        %v2277 = vadd.f32 0.0, %v2276
        %v2278 = vpop.f32.mrb[0].mxu0
        %v2279 = vadd.f32 0.0, %v2278
        %v2280 = vpop.f32.mrb[0].mxu0
        %v2281 = vpop.f32.mrb[0].mxu0
        %2282 = vdwg.mxu0
        %v2283 = vpack.c.bf16 %v2277, %v2277
        %v2285 = vsel %vm1067, %v2283, 0
        %2287 = vmatprep.subr.bf16.mxu0 0
        %2288 = vmatpush1.bf16.msra.mxu0 %v2285
        %2289 = vmatprep.subr.bf16.mxu0 0
        %2290 = vmatpush1.bf16.msra.mxu0 0
        %2291 = vmatprep.subr.bf16.mxu0 0
        %2292 = vmatpush1.bf16.msra.mxu0 0
        %2293 = vmatprep.subr.bf16.mxu0 0
        %2294 = vmatpush1.bf16.msra.mxu0 0
        %2295 = vmatprep.subr.bf16.mxu0 0
        %2296 = vmatpush1.bf16.msra.mxu0 0
        %2297 = vmatprep.subr.bf16.mxu0 0
        %2298 = vmatpush1.bf16.msra.mxu0 0
        %2299 = vmatprep.subr.bf16.mxu0 0
        %2300 = vmatpush1.bf16.msra.mxu0 0
        %2301 = vmatprep.subr.bf16.mxu0 0
        %2302 = vmatpush1.bf16.msra.mxu0 0
        %2303 = vmatprep.subr.bf16.mxu0 0
        %2304 = vmatpush1.bf16.msra.mxu0 0
        %2305 = vmatprep.subr.bf16.mxu0 0
        %2306 = vmatpush1.bf16.msra.mxu0 0
        %2307 = vmatprep.subr.bf16.mxu0 0
        %2308 = vmatpush1.bf16.msra.mxu0 0
        %2309 = vmatprep.subr.bf16.mxu0 0
        %2310 = vmatpush1.bf16.msra.mxu0 0
        %2311 = vmatprep.subr.bf16.mxu0 0
        %2312 = vmatpush1.bf16.msra.mxu0 0
        %2313 = vmatprep.subr.bf16.mxu0 0
        %2314 = vmatpush1.bf16.msra.mxu0 0
        %2315 = vmatprep.subr.bf16.mxu0 0
        %2316 = vmatpush1.bf16.msra.mxu0 0
        %2317 = vmatprep.subr.bf16.mxu0 0
        %2318 = vmatpush1.bf16.msra.mxu0 0
        %2319 = vmatprep.mubr.bf16.mxu0 0
        %2320 = vmatmul.mubr.bf16.gmra.mrb[0].mxu0 %v1062
        %v2321 = vpop.f32.mrb[0].mxu0
        %v2322 = vadd.f32 0.0, %v2321
        %v2323 = vpop.f32.mrb[0].mxu0
        %v2324 = vpop.f32.mrb[0].mxu0
        %v2325 = vadd.f32 0.0, %v2324
        %v2326 = vpop.f32.mrb[0].mxu0
        %2327 = vmatprep.mubr.bf16.mxu0 0
        %2328 = vmatmul.mubr.bf16.gmra.mrb[0].mxu0 %v1065
        %v2329 = vpop.f32.mrb[0].mxu0
        %v2330 = vadd.f32 0.0, %v2329
        %v2331 = vpop.f32.mrb[0].mxu0
        %v2332 = vpop.f32.mrb[0].mxu0
        %v2333 = vadd.f32 0.0, %v2332
        %v2334 = vpop.f32.mrb[0].mxu0
        %2335 = vdwg.mxu0
        %v2336 = vld [vmem:[%s19] sm:$0xf]
        %v2337 = vlaneseq
        %v2338 = vshrl.u32 %v2337, 7
        %v2339 = vsub.s32 0, %v2338
        %v2340 = vrot.slane %v2336, %v2339
        %v2341 = vmul.f32 %v2322, %v2340
        %v2342 = vlaneseq
        %v2343 = vshrl.u32 %v2342, 7
        %v2344 = vsub.s32 1, %v2343
        %v2345 = vrot.slane %v2336, %v2344
        %v2346 = vmul.f32 %v2325, %v2345
        %v2347 = vadd.f32 %v2341, %v2346
        %v2348 = vlaneseq
        %v2349 = vshrl.u32 %v2348, 7
        %v2350 = vsub.s32 2, %v2349
        %v2351 = vrot.slane %v2336, %v2350
        %v2352 = vmul.f32 %v2330, %v2351
        %v2353 = vadd.f32 %v2347, %v2352
        %v2354 = vlaneseq
        %v2355 = vshrl.u32 %v2354, 7
        %v2356 = vsub.s32 3, %v2355
        %v2357 = vrot.slane %v2336, %v2356
        %v2358 = vmul.f32 %v2333, %v2357
        %v2359 = vadd.f32 %v2353, %v2358
        %v2360 = vld [vmem:[%s20] sm:$0x1]
        %v2362 = vlaneseq
        %v2363 = vshrl.u32 %v2362, 7
        %v2364 = vsub.s32 0, %v2363
        %v2365 = vrot.slane %v2360, %v2364
        %v2367 = vadd.f32 %v2359, %v2365
        %v2368 = vsub.f32 0.0, %v2367
        %v2369 = vmul.f32 %v2368, 1.442695
        %v2370 = vpow.pop %v2369
        %v2371 = vadd.f32 %v2370, 1.0
        %v2372 = vrcp.pop %v2371
        %v2373 = vmul.f32 %v2367, %v2372
        %v2374 = vld [vmem:[%s21] sm:$0xff]
        %v2375 = vld [vmem:[%s21 + $0x8] sm:$0xff]
        %v2376 = vld [vmem:[%s21 + $0x10] sm:$0xff]
        %v2377 = vld [vmem:[%s21 + $0x18] sm:$0xff]
        %v2378 = vld [vmem:[%s21 + $0x20] sm:$0xff]
        %v2379 = vld [vmem:[%s21 + $0x28] sm:$0xff]
        %v2380 = vld [vmem:[%s21 + $0x30] sm:$0xff]
        %v2381 = vld [vmem:[%s21 + $0x38] sm:$0xff]
        %v2382 = vld [vmem:[%s21 + $0x40] sm:$0xff]
        %v2383 = vld [vmem:[%s21 + $0x48] sm:$0xff]
        %v2384 = vld [vmem:[%s21 + $0x50] sm:$0xff]
        %v2385 = vld [vmem:[%s21 + $0x58] sm:$0xff]
        %v2386 = vld [vmem:[%s21 + $0x60] sm:$0xff]
        %v2387 = vld [vmem:[%s21 + $0x68] sm:$0xff]
        %v2388 = vld [vmem:[%s21 + $0x70] sm:$0xff]
        %v2389 = vld [vmem:[%s21 + $0x78] sm:$0xff]
        %v2390 = vpack.c.bf16 %v2373, %v2373
        %v2407 = vunpack.c.l.b16 %v2374
        %v2408 = vunpack.c.h.b16 %v2374
        %v2409 = vunpack.c.l.b16 %v2375
        %v2410 = vunpack.c.h.b16 %v2375
        %v2411 = vunpack.c.l.b16 %v2376
        %v2412 = vunpack.c.h.b16 %v2376
        %v2413 = vunpack.c.l.b16 %v2377
        %v2414 = vunpack.c.h.b16 %v2377
        %v2415 = vunpack.c.l.b16 %v2378
        %v2416 = vunpack.c.h.b16 %v2378
        %v2417 = vunpack.c.l.b16 %v2379
        %v2418 = vunpack.c.h.b16 %v2379
        %v2419 = vunpack.c.l.b16 %v2380
        %v2420 = vunpack.c.h.b16 %v2380
        %v2421 = vunpack.c.l.b16 %v2381
        %v2422 = vunpack.c.h.b16 %v2381
        %v2423 = vunpack.c.l.b16 %v2382
        %v2424 = vunpack.c.h.b16 %v2382
        %v2425 = vunpack.c.l.b16 %v2383
        %v2426 = vunpack.c.h.b16 %v2383
        %v2427 = vunpack.c.l.b16 %v2384
        %v2428 = vunpack.c.h.b16 %v2384
        %v2429 = vunpack.c.l.b16 %v2385
        %v2430 = vunpack.c.h.b16 %v2385
        %v2431 = vunpack.c.l.b16 %v2386
        %v2432 = vunpack.c.h.b16 %v2386
        %v2433 = vunpack.c.l.b16 %v2387
        %v2434 = vunpack.c.h.b16 %v2387
        %v2435 = vunpack.c.l.b16 %v2388
        %v2436 = vunpack.c.h.b16 %v2388
        %v2437 = vunpack.c.l.b16 %v2389
        %v2438 = vunpack.c.h.b16 %v2389
        %v2439 = vpack.c.b16 %v2409, %v2407
        %v2440 = vpack.c.b16 %v2410, %v2408
        %v2441 = vpack.c.b16 %v2413, %v2411
        %v2442 = vpack.c.b16 %v2414, %v2412
        %v2443 = vpack.c.b16 %v2417, %v2415
        %v2444 = vpack.c.b16 %v2418, %v2416
        %v2445 = vpack.c.b16 %v2421, %v2419
        %v2446 = vpack.c.b16 %v2422, %v2420
        %v2447 = vpack.c.b16 %v2425, %v2423
        %v2448 = vpack.c.b16 %v2426, %v2424
        %v2449 = vpack.c.b16 %v2429, %v2427
        %v2450 = vpack.c.b16 %v2430, %v2428
        %v2451 = vpack.c.b16 %v2433, %v2431
        %v2452 = vpack.c.b16 %v2434, %v2432
        %v2453 = vpack.c.b16 %v2437, %v2435
        %v2454 = vpack.c.b16 %v2438, %v2436
        %2471 = vmatprep.subr.bf16.mxu0 %v2440
        %2472 = vmatpush1.bf16.msra.mxu0 %v2439
        %2473 = vmatprep.subr.bf16.mxu0 %v2442
        %2474 = vmatpush1.bf16.msra.mxu0 %v2441
        %2475 = vmatprep.subr.bf16.mxu0 %v2444
        %2476 = vmatpush1.bf16.msra.mxu0 %v2443
        %2477 = vmatprep.subr.bf16.mxu0 %v2446
        %2478 = vmatpush1.bf16.msra.mxu0 %v2445
        %2479 = vmatprep.subr.bf16.mxu0 %v2448
        %2480 = vmatpush1.bf16.msra.mxu0 %v2447
        %2481 = vmatprep.subr.bf16.mxu0 %v2450
        %2482 = vmatpush1.bf16.msra.mxu0 %v2449
        %2483 = vmatprep.subr.bf16.mxu0 %v2452
        %2484 = vmatpush1.bf16.msra.mxu0 %v2451
        %2485 = vmatprep.subr.bf16.mxu0 %v2454
        %2486 = vmatpush1.bf16.msra.mxu0 %v2453
        %2487 = vmatprep.subr.bf16.mxu0 0
        %2488 = vmatpush1.bf16.msra.mxu0 0
        %2489 = vmatprep.subr.bf16.mxu0 0
        %2490 = vmatpush1.bf16.msra.mxu0 0
        %2491 = vmatprep.subr.bf16.mxu0 0
        %2492 = vmatpush1.bf16.msra.mxu0 0
        %2493 = vmatprep.subr.bf16.mxu0 0
        %2494 = vmatpush1.bf16.msra.mxu0 0
        %2495 = vmatprep.subr.bf16.mxu0 0
        %2496 = vmatpush1.bf16.msra.mxu0 0
        %2497 = vmatprep.subr.bf16.mxu0 0
        %2498 = vmatpush1.bf16.msra.mxu0 0
        %2499 = vmatprep.subr.bf16.mxu0 0
        %2500 = vmatpush1.bf16.msra.mxu0 0
        %2501 = vmatprep.subr.bf16.mxu0 0
        %2502 = vmatpush1.bf16.msra.mxu0 0
        %2503 = vmatprep.mubr.bf16.mxu0 0
        %2504 = vmatmul.mubr.bf16.gmra.mrb[0].mxu0 %v2390
        %v2505 = vpop.f32.mrb[0].mxu0
        %v2506 = vadd.f32 0.0, %v2505
        %v2507 = vpop.f32.mrb[0].mxu0
        %v2508 = vadd.f32 0.0, %v2507
        %v2509 = vpop.f32.mrb[0].mxu0
        %v2510 = vpop.f32.mrb[0].mxu0
        %2511 = vdwg.mxu0
        %v2512 = vld [vmem:[%s22] sm:$0x1]
        %v2514 = vlaneseq
        %v2515 = vshrl.u32 %v2514, 7
        %v2516 = vsub.s32 0, %v2515
        %v2517 = vrot.slane %v2512, %v2516
        %v2519 = vadd.f32 %v2506, %v2517
        %vm2520 = vcmp.gt.f32.partialorder %v2519, 20.0
        %v2521 = vmul.f32 %v2519, 1.442695
        %v2522 = vpow.pop %v2521
        %v2523 = vadd.f32 %v2522, 1.0
        %v2524 = vlog2.pop %v2523
        %v2525 = vmul.f32 %v2524, 0.6931472
        %v2526 = vsel %vm2520, %v2519, %v2525
        %v2527 = vmul.f32 %v2526, %v2373
        %v2528 = vpack.c.bf16 %v2526, %v2526
        %v2529 = vpack.c.bf16 %v2527, %v2527
        %v2531 = vsel %vm1067, %v2528, 0
        %v2534 = vsel %vm1067, %v2529, 0
        %2536 = vmatprep.subr.bf16.mxu0 %v2534
        %2537 = vmatpush1.bf16.msra.mxu0 %v2531
        %2538 = vmatprep.subr.bf16.mxu0 0
        %2539 = vmatpush1.bf16.msra.mxu0 0
        %2540 = vmatprep.subr.bf16.mxu0 0
        %2541 = vmatpush1.bf16.msra.mxu0 0
        %2542 = vmatprep.subr.bf16.mxu0 0
        %2543 = vmatpush1.bf16.msra.mxu0 0
        %2544 = vmatprep.subr.bf16.mxu0 0
        %2545 = vmatpush1.bf16.msra.mxu0 0
        %2546 = vmatprep.subr.bf16.mxu0 0
        %2547 = vmatpush1.bf16.msra.mxu0 0
        %2548 = vmatprep.subr.bf16.mxu0 0
        %2549 = vmatpush1.bf16.msra.mxu0 0
        %2550 = vmatprep.subr.bf16.mxu0 0
        %2551 = vmatpush1.bf16.msra.mxu0 0
        %2552 = vmatprep.subr.bf16.mxu0 0
        %2553 = vmatpush1.bf16.msra.mxu0 0
        %2554 = vmatprep.subr.bf16.mxu0 0
        %2555 = vmatpush1.bf16.msra.mxu0 0
        %2556 = vmatprep.subr.bf16.mxu0 0
        %2557 = vmatpush1.bf16.msra.mxu0 0
        %2558 = vmatprep.subr.bf16.mxu0 0
        %2559 = vmatpush1.bf16.msra.mxu0 0
        %2560 = vmatprep.subr.bf16.mxu0 0
        %2561 = vmatpush1.bf16.msra.mxu0 0
        %2562 = vmatprep.subr.bf16.mxu0 0
        %2563 = vmatpush1.bf16.msra.mxu0 0
        %2564 = vmatprep.subr.bf16.mxu0 0
        %2565 = vmatpush1.bf16.msra.mxu0 0
        %2566 = vmatprep.subr.bf16.mxu0 0
        %2567 = vmatpush1.bf16.msra.mxu0 0
        %2568 = vmatprep.mubr.bf16.mxu0 0
        %2569 = vmatmul.mubr.bf16.gmra.mrb[0].mxu0 %v1355
        %v2570 = vpop.f32.mrb[0].mxu0
        %v2571 = vadd.f32 0.0, %v2570
        %v2572 = vpop.f32.mrb[0].mxu0
        %v2573 = vadd.f32 0.0, %v2572
        %v2574 = vpop.f32.mrb[0].mxu0
        %v2575 = vadd.f32 0.0, %v2574
        %v2576 = vpop.f32.mrb[0].mxu0
        %v2577 = vadd.f32 0.0, %v2576
        %2578 = vmatprep.mubr.bf16.mxu0 0
        %2579 = vmatmul.mubr.bf16.gmra.mrb[0].mxu0 %v1358
        %v2580 = vpop.f32.mrb[0].mxu0
        %v2581 = vadd.f32 0.0, %v2580
        %v2582 = vpop.f32.mrb[0].mxu0
        %v2583 = vadd.f32 0.0, %v2582
        %v2584 = vpop.f32.mrb[0].mxu0
        %v2585 = vadd.f32 0.0, %v2584
        %v2586 = vpop.f32.mrb[0].mxu0
        %v2587 = vadd.f32 0.0, %v2586
        %2588 = vmatprep.mubr.bf16.mxu0 0
        %2589 = vmatmul.mubr.bf16.gmra.mrb[0].mxu0 %v1361
        %v2590 = vpop.f32.mrb[0].mxu0
        %v2591 = vadd.f32 0.0, %v2590
        %v2592 = vpop.f32.mrb[0].mxu0
        %v2593 = vadd.f32 0.0, %v2592
        %v2594 = vpop.f32.mrb[0].mxu0
        %v2595 = vadd.f32 0.0, %v2594
        %v2596 = vpop.f32.mrb[0].mxu0
        %v2597 = vadd.f32 0.0, %v2596
        %2598 = vmatprep.mubr.bf16.mxu0 0
        %2599 = vmatmul.mubr.bf16.gmra.mrb[0].mxu0 %v1364
        %v2600 = vpop.f32.mrb[0].mxu0
        %v2601 = vadd.f32 0.0, %v2600
        %v2602 = vpop.f32.mrb[0].mxu0
        %v2603 = vadd.f32 0.0, %v2602
        %v2604 = vpop.f32.mrb[0].mxu0
        %v2605 = vadd.f32 0.0, %v2604
        %v2606 = vpop.f32.mrb[0].mxu0
        %v2607 = vadd.f32 0.0, %v2606
        %2608 = vmatprep.mubr.bf16.mxu0 0
        %2609 = vmatmul.mubr.bf16.gmra.mrb[0].mxu0 %v1367
        %v2610 = vpop.f32.mrb[0].mxu0
        %v2611 = vadd.f32 0.0, %v2610
        %v2612 = vpop.f32.mrb[0].mxu0
        %v2613 = vadd.f32 0.0, %v2612
        %v2614 = vpop.f32.mrb[0].mxu0
        %v2615 = vadd.f32 0.0, %v2614
        %v2616 = vpop.f32.mrb[0].mxu0
        %v2617 = vadd.f32 0.0, %v2616
        %2618 = vmatprep.mubr.bf16.mxu0 0
        %2619 = vmatmul.mubr.bf16.gmra.mrb[0].mxu0 %v1370
        %v2620 = vpop.f32.mrb[0].mxu0
        %v2621 = vadd.f32 0.0, %v2620
        %v2622 = vpop.f32.mrb[0].mxu0
        %v2623 = vadd.f32 0.0, %v2622
        %v2624 = vpop.f32.mrb[0].mxu0
        %v2625 = vadd.f32 0.0, %v2624
        %v2626 = vpop.f32.mrb[0].mxu0
        %v2627 = vadd.f32 0.0, %v2626
        %2628 = vmatprep.mubr.bf16.mxu0 0
        %2629 = vmatmul.mubr.bf16.gmra.mrb[0].mxu0 %v1373
        %v2630 = vpop.f32.mrb[0].mxu0
        %v2631 = vadd.f32 0.0, %v2630
        %v2632 = vpop.f32.mrb[0].mxu0
        %v2633 = vadd.f32 0.0, %v2632
        %v2634 = vpop.f32.mrb[0].mxu0
        %v2635 = vadd.f32 0.0, %v2634
        %v2636 = vpop.f32.mrb[0].mxu0
        %v2637 = vadd.f32 0.0, %v2636
        %2638 = vmatprep.mubr.bf16.mxu0 0
        %2639 = vmatmul.mubr.bf16.gmra.mrb[0].mxu0 %v1376
        %v2640 = vpop.f32.mrb[0].mxu0
        %v2641 = vadd.f32 0.0, %v2640
        %v2642 = vpop.f32.mrb[0].mxu0
        %v2643 = vadd.f32 0.0, %v2642
        %v2644 = vpop.f32.mrb[0].mxu0
        %v2645 = vadd.f32 0.0, %v2644
        %v2646 = vpop.f32.mrb[0].mxu0
        %v2647 = vadd.f32 0.0, %v2646
        %2648 = vdwg.mxu0
        %v2649 = vpack.c.bf16 %v2508, %v2508
        %v2651 = vsel %vm1067, %v2649, 0
        %2653 = vmatprep.subr.bf16.mxu0 0
        %2654 = vmatpush1.bf16.msra.mxu0 %v2651
        %2655 = vmatprep.subr.bf16.mxu0 0
        %2656 = vmatpush1.bf16.msra.mxu0 0
        %2657 = vmatprep.subr.bf16.mxu0 0
        %2658 = vmatpush1.bf16.msra.mxu0 0
        %2659 = vmatprep.subr.bf16.mxu0 0
        %2660 = vmatpush1.bf16.msra.mxu0 0
        %2661 = vmatprep.subr.bf16.mxu0 0
        %2662 = vmatpush1.bf16.msra.mxu0 0
        %2663 = vmatprep.subr.bf16.mxu0 0
        %2664 = vmatpush1.bf16.msra.mxu0 0
        %2665 = vmatprep.subr.bf16.mxu0 0
        %2666 = vmatpush1.bf16.msra.mxu0 0
        %2667 = vmatprep.subr.bf16.mxu0 0
        %2668 = vmatpush1.bf16.msra.mxu0 0
        %2669 = vmatprep.subr.bf16.mxu0 0
        %2670 = vmatpush1.bf16.msra.mxu0 0
        %2671 = vmatprep.subr.bf16.mxu0 0
        %2672 = vmatpush1.bf16.msra.mxu0 0
        %2673 = vmatprep.subr.bf16.mxu0 0
        %2674 = vmatpush1.bf16.msra.mxu0 0
        %2675 = vmatprep.subr.bf16.mxu0 0
        %2676 = vmatpush1.bf16.msra.mxu0 0
        %2677 = vmatprep.subr.bf16.mxu0 0
        %2678 = vmatpush1.bf16.msra.mxu0 0
        %2679 = vmatprep.subr.bf16.mxu0 0
        %2680 = vmatpush1.bf16.msra.mxu0 0
        %2681 = vmatprep.subr.bf16.mxu0 0
        %2682 = vmatpush1.bf16.msra.mxu0 0
        %2683 = vmatprep.subr.bf16.mxu0 0
        %2684 = vmatpush1.bf16.msra.mxu0 0
        %2685 = vmatprep.mubr.bf16.mxu0 0
        %2686 = vmatmul.mubr.bf16.gmra.mrb[0].mxu0 %v1355
        %v2687 = vpop.f32.mrb[0].mxu0
        %v2688 = vadd.f32 0.0, %v2687
        %v2689 = vpop.f32.mrb[0].mxu0
        %v2690 = vpop.f32.mrb[0].mxu0
        %v2691 = vadd.f32 0.0, %v2690
        %v2692 = vpop.f32.mrb[0].mxu0
        %2693 = vmatprep.mubr.bf16.mxu0 0
        %2694 = vmatmul.mubr.bf16.gmra.mrb[0].mxu0 %v1358
        %v2695 = vpop.f32.mrb[0].mxu0
        %v2696 = vadd.f32 0.0, %v2695
        %v2697 = vpop.f32.mrb[0].mxu0
        %v2698 = vpop.f32.mrb[0].mxu0
        %v2699 = vadd.f32 0.0, %v2698
        %v2700 = vpop.f32.mrb[0].mxu0
        %2701 = vmatprep.mubr.bf16.mxu0 0
        %2702 = vmatmul.mubr.bf16.gmra.mrb[0].mxu0 %v1361
        %v2703 = vpop.f32.mrb[0].mxu0
        %v2704 = vadd.f32 0.0, %v2703
        %v2705 = vpop.f32.mrb[0].mxu0
        %v2706 = vpop.f32.mrb[0].mxu0
        %v2707 = vadd.f32 0.0, %v2706
        %v2708 = vpop.f32.mrb[0].mxu0
        %2709 = vmatprep.mubr.bf16.mxu0 0
        %2710 = vmatmul.mubr.bf16.gmra.mrb[0].mxu0 %v1364
        %v2711 = vpop.f32.mrb[0].mxu0
        %v2712 = vadd.f32 0.0, %v2711
        %v2713 = vpop.f32.mrb[0].mxu0
        %v2714 = vpop.f32.mrb[0].mxu0
        %v2715 = vadd.f32 0.0, %v2714
        %v2716 = vpop.f32.mrb[0].mxu0
        %2717 = vmatprep.mubr.bf16.mxu0 0
        %2718 = vmatmul.mubr.bf16.gmra.mrb[0].mxu0 %v1367
        %v2719 = vpop.f32.mrb[0].mxu0
        %v2720 = vadd.f32 0.0, %v2719
        %v2721 = vpop.f32.mrb[0].mxu0
        %v2722 = vpop.f32.mrb[0].mxu0
        %v2723 = vadd.f32 0.0, %v2722
        %v2724 = vpop.f32.mrb[0].mxu0
        %2725 = vmatprep.mubr.bf16.mxu0 0
        %2726 = vmatmul.mubr.bf16.gmra.mrb[0].mxu0 %v1370
        %v2727 = vpop.f32.mrb[0].mxu0
        %v2728 = vadd.f32 0.0, %v2727
        %v2729 = vpop.f32.mrb[0].mxu0
        %v2730 = vpop.f32.mrb[0].mxu0
        %v2731 = vadd.f32 0.0, %v2730
        %v2732 = vpop.f32.mrb[0].mxu0
        %2733 = vmatprep.mubr.bf16.mxu0 0
        %2734 = vmatmul.mubr.bf16.gmra.mrb[0].mxu0 %v1373
        %v2735 = vpop.f32.mrb[0].mxu0
        %v2736 = vadd.f32 0.0, %v2735
        %v2737 = vpop.f32.mrb[0].mxu0
        %v2738 = vpop.f32.mrb[0].mxu0
        %v2739 = vadd.f32 0.0, %v2738
        %v2740 = vpop.f32.mrb[0].mxu0
        %2741 = vmatprep.mubr.bf16.mxu0 0
        %2742 = vmatmul.mubr.bf16.gmra.mrb[0].mxu0 %v1376
        %v2743 = vpop.f32.mrb[0].mxu0
        %v2744 = vadd.f32 0.0, %v2743
        %v2745 = vpop.f32.mrb[0].mxu0
        %v2746 = vpop.f32.mrb[0].mxu0
        %v2747 = vadd.f32 0.0, %v2746
        %v2748 = vpop.f32.mrb[0].mxu0
        %2749 = vdwg.mxu0
        %v2750 = vmul.f32 %v2688, %v918
        %v2751 = vmul.f32 %v2691, %v919
        %v2752 = vmul.f32 %v2696, %v920
        %v2753 = vmul.f32 %v2699, %v921
        %v2754 = vmul.f32 %v2704, %v922
        %v2755 = vmul.f32 %v2707, %v923
        %v2756 = vmul.f32 %v2712, %v924
        %v2757 = vmul.f32 %v2715, %v925
        %v2758 = vmul.f32 %v2720, %v926
        %v2759 = vmul.f32 %v2723, %v927
        %v2760 = vmul.f32 %v2728, %v928
        %v2761 = vmul.f32 %v2731, %v929
        %v2762 = vmul.f32 %v2736, %v930
        %v2763 = vmul.f32 %v2739, %v931
        %v2764 = vmul.f32 %v2744, %v932
        %v2765 = vmul.f32 %v2747, %v933
        %v2766 = vsel %vm1614, %v2750, 0.0
        %2767 = vadd.xlane.f32.xlu0 %v2766
        %v2768 = vpop.xlane.xlu0 %2767
        %v2769 = vsel %vm1614, %v2751, 0.0
        %2770 = vadd.xlane.f32.xlu0 %v2769
        %v2771 = vpop.xlane.xlu0 %2770
        %v2772 = vsel %vm1614, %v2752, 0.0
        %2773 = vadd.xlane.f32.xlu0 %v2772
        %v2774 = vpop.xlane.xlu0 %2773
        %v2775 = vsel %vm1614, %v2753, 0.0
        %2776 = vadd.xlane.f32.xlu0 %v2775
        %v2777 = vpop.xlane.xlu0 %2776
        %v2778 = vsel %vm1614, %v2754, 0.0
        %2779 = vadd.xlane.f32.xlu0 %v2778
        %v2780 = vpop.xlane.xlu0 %2779
        %v2781 = vsel %vm1614, %v2755, 0.0
        %2782 = vadd.xlane.f32.xlu0 %v2781
        %v2783 = vpop.xlane.xlu0 %2782
        %v2784 = vsel %vm1614, %v2756, 0.0
        %2785 = vadd.xlane.f32.xlu0 %v2784
        %v2786 = vpop.xlane.xlu0 %2785
        %v2787 = vsel %vm1614, %v2757, 0.0
        %2788 = vadd.xlane.f32.xlu0 %v2787
        %v2789 = vpop.xlane.xlu0 %2788
        %v2790 = vsel %vm1614, %v2758, 0.0
        %2791 = vadd.xlane.f32.xlu0 %v2790
        %v2792 = vpop.xlane.xlu0 %2791
        %v2793 = vsel %vm1614, %v2759, 0.0
        %2794 = vadd.xlane.f32.xlu0 %v2793
        %v2795 = vpop.xlane.xlu0 %2794
        %v2796 = vsel %vm1614, %v2760, 0.0
        %2797 = vadd.xlane.f32.xlu0 %v2796
        %v2798 = vpop.xlane.xlu0 %2797
        %v2799 = vsel %vm1614, %v2761, 0.0
        %2800 = vadd.xlane.f32.xlu0 %v2799
        %v2801 = vpop.xlane.xlu0 %2800
        %v2802 = vsel %vm1614, %v2762, 0.0
        %2803 = vadd.xlane.f32.xlu0 %v2802
        %v2804 = vpop.xlane.xlu0 %2803
        %v2805 = vsel %vm1614, %v2763, 0.0
        %2806 = vadd.xlane.f32.xlu0 %v2805
        %v2807 = vpop.xlane.xlu0 %2806
        %v2808 = vsel %vm1614, %v2764, 0.0
        %2809 = vadd.xlane.f32.xlu0 %v2808
        %v2810 = vpop.xlane.xlu0 %2809
        %v2811 = vsel %vm1614, %v2765, 0.0
        %2812 = vadd.xlane.f32.xlu0 %v2811
        %v2813 = vpop.xlane.xlu0 %2812
        %2830 = vrot.lane.b32.xlu0 %v2750, 112
        %v2831 = vpop.permute.xlu0 %2830
        %2832 = vrot.lane.b32.xlu0 %v2751, 112
        %v2833 = vpop.permute.xlu0 %2832
        %2834 = vrot.lane.b32.xlu0 %v2752, 112
        %v2835 = vpop.permute.xlu0 %2834
        %2836 = vrot.lane.b32.xlu0 %v2753, 112
        %v2837 = vpop.permute.xlu0 %2836
        %2838 = vrot.lane.b32.xlu0 %v2754, 112
        %v2839 = vpop.permute.xlu0 %2838
        %2840 = vrot.lane.b32.xlu0 %v2755, 112
        %v2841 = vpop.permute.xlu0 %2840
        %2842 = vrot.lane.b32.xlu0 %v2756, 112
        %v2843 = vpop.permute.xlu0 %2842
        %2844 = vrot.lane.b32.xlu0 %v2757, 112
        %v2845 = vpop.permute.xlu0 %2844
        %2846 = vrot.lane.b32.xlu0 %v2758, 112
        %v2847 = vpop.permute.xlu0 %2846
        %2848 = vrot.lane.b32.xlu0 %v2759, 112
        %v2849 = vpop.permute.xlu0 %2848
        %2850 = vrot.lane.b32.xlu0 %v2760, 112
        %v2851 = vpop.permute.xlu0 %2850
        %2852 = vrot.lane.b32.xlu0 %v2761, 112
        %v2853 = vpop.permute.xlu0 %2852
        %2854 = vrot.lane.b32.xlu0 %v2762, 112
        %v2855 = vpop.permute.xlu0 %2854
        %2856 = vrot.lane.b32.xlu0 %v2763, 112
        %v2857 = vpop.permute.xlu0 %2856
        %2858 = vrot.lane.b32.xlu0 %v2764, 112
        %v2859 = vpop.permute.xlu0 %2858
        %2860 = vrot.lane.b32.xlu0 %v2765, 112
        %v2861 = vpop.permute.xlu0 %2860
        %v2878 = vsel %vm1614, %v2831, 0.0
        %2879 = vadd.xlane.f32.xlu0 %v2878
        %v2880 = vpop.xlane.xlu0 %2879
        %v2881 = vsel %vm1614, %v2833, 0.0
        %2882 = vadd.xlane.f32.xlu0 %v2881
        %v2883 = vpop.xlane.xlu0 %2882
        %v2884 = vsel %vm1614, %v2835, 0.0
        %2885 = vadd.xlane.f32.xlu0 %v2884
        %v2886 = vpop.xlane.xlu0 %2885
        %v2887 = vsel %vm1614, %v2837, 0.0
        %2888 = vadd.xlane.f32.xlu0 %v2887
        %v2889 = vpop.xlane.xlu0 %2888
        %v2890 = vsel %vm1614, %v2839, 0.0
        %2891 = vadd.xlane.f32.xlu0 %v2890
        %v2892 = vpop.xlane.xlu0 %2891
        %v2893 = vsel %vm1614, %v2841, 0.0
        %2894 = vadd.xlane.f32.xlu0 %v2893
        %v2895 = vpop.xlane.xlu0 %2894
        %v2896 = vsel %vm1614, %v2843, 0.0
        %2897 = vadd.xlane.f32.xlu0 %v2896
        %v2898 = vpop.xlane.xlu0 %2897
        %v2899 = vsel %vm1614, %v2845, 0.0
        %2900 = vadd.xlane.f32.xlu0 %v2899
        %v2901 = vpop.xlane.xlu0 %2900
        %v2902 = vsel %vm1614, %v2847, 0.0
        %2903 = vadd.xlane.f32.xlu0 %v2902
        %v2904 = vpop.xlane.xlu0 %2903
        %v2905 = vsel %vm1614, %v2849, 0.0
        %2906 = vadd.xlane.f32.xlu0 %v2905
        %v2907 = vpop.xlane.xlu0 %2906
        %v2908 = vsel %vm1614, %v2851, 0.0
        %2909 = vadd.xlane.f32.xlu0 %v2908
        %v2910 = vpop.xlane.xlu0 %2909
        %v2911 = vsel %vm1614, %v2853, 0.0
        %2912 = vadd.xlane.f32.xlu0 %v2911
        %v2913 = vpop.xlane.xlu0 %2912
        %v2914 = vsel %vm1614, %v2855, 0.0
        %2915 = vadd.xlane.f32.xlu0 %v2914
        %v2916 = vpop.xlane.xlu0 %2915
        %v2917 = vsel %vm1614, %v2857, 0.0
        %2918 = vadd.xlane.f32.xlu0 %v2917
        %v2919 = vpop.xlane.xlu0 %2918
        %v2920 = vsel %vm1614, %v2859, 0.0
        %2921 = vadd.xlane.f32.xlu0 %v2920
        %v2922 = vpop.xlane.xlu0 %2921
        %v2923 = vsel %vm1614, %v2861, 0.0
        %2924 = vadd.xlane.f32.xlu0 %v2923
        %v2925 = vpop.xlane.xlu0 %2924
        %v2926 = vld [vmem:[%s23] sm:$0xff]
        %v2927 = vld [vmem:[%s23 + $0x8] sm:$0xff]
        %v2928 = vmul.f32 %v2571, %v2926
        %v2929 = vmul.f32 %v2575, %v2927
        %v2930 = vmul.f32 %v2581, %v2926
        %v2931 = vmul.f32 %v2585, %v2927
        %v2932 = vmul.f32 %v2591, %v2926
        %v2933 = vmul.f32 %v2595, %v2927
        %v2934 = vmul.f32 %v2601, %v2926
        %v2935 = vmul.f32 %v2605, %v2927
        %v2936 = vmul.f32 %v2611, %v2926
        %v2937 = vmul.f32 %v2615, %v2927
        %v2938 = vmul.f32 %v2621, %v2926
        %v2939 = vmul.f32 %v2625, %v2927
        %v2940 = vmul.f32 %v2631, %v2926
        %v2941 = vmul.f32 %v2635, %v2927
        %v2942 = vmul.f32 %v2641, %v2926
        %v2943 = vmul.f32 %v2645, %v2927
        %v2944 = vmul.f32 %v2928, 1.442695
        %v2945 = vpow.pop %v2944
        %v2946 = vmul.f32 %v2929, 1.442695
        %v2947 = vpow.pop %v2946
        %v2948 = vmul.f32 %v2930, 1.442695
        %v2949 = vpow.pop %v2948
        %v2950 = vmul.f32 %v2931, 1.442695
        %v2951 = vpow.pop %v2950
        %v2952 = vmul.f32 %v2932, 1.442695
        %v2953 = vpow.pop %v2952
        %v2954 = vmul.f32 %v2933, 1.442695
        %v2955 = vpow.pop %v2954
        %v2956 = vmul.f32 %v2934, 1.442695
        %v2957 = vpow.pop %v2956
        %v2958 = vmul.f32 %v2935, 1.442695
        %v2959 = vpow.pop %v2958
        %v2960 = vmul.f32 %v2936, 1.442695
        %v2961 = vpow.pop %v2960
        %v2962 = vmul.f32 %v2937, 1.442695
        %v2963 = vpow.pop %v2962
        %v2964 = vmul.f32 %v2938, 1.442695
        %v2965 = vpow.pop %v2964
        %v2966 = vmul.f32 %v2939, 1.442695
        %v2967 = vpow.pop %v2966
        %v2968 = vmul.f32 %v2940, 1.442695
        %v2969 = vpow.pop %v2968
        %v2970 = vmul.f32 %v2941, 1.442695
        %v2971 = vpow.pop %v2970
        %v2972 = vmul.f32 %v2942, 1.442695
        %v2973 = vpow.pop %v2972
        %v2974 = vmul.f32 %v2943, 1.442695
        %v2975 = vpow.pop %v2974
        %2976 = vst [vmem:[#allocation2] sm:$0xff] %v2945
        %2977 = vst [vmem:[#allocation2 + $0x8] sm:$0xff] %v2947
        %2978 = vst [vmem:[#allocation2 + $0x10] sm:$0xff] %v2949
        %2979 = vst [vmem:[#allocation2 + $0x18] sm:$0xff] %v2951
        %2980 = vst [vmem:[#allocation2 + $0x20] sm:$0xff] %v2953
        %2981 = vst [vmem:[#allocation2 + $0x28] sm:$0xff] %v2955
        %2982 = vst [vmem:[#allocation2 + $0x30] sm:$0xff] %v2957
        %2983 = vst [vmem:[#allocation2 + $0x38] sm:$0xff] %v2959
        %2984 = vst [vmem:[#allocation2 + $0x40] sm:$0xff] %v2961
        %2985 = vst [vmem:[#allocation2 + $0x48] sm:$0xff] %v2963
        %2986 = vst [vmem:[#allocation2 + $0x50] sm:$0xff] %v2965
        %2987 = vst [vmem:[#allocation2 + $0x58] sm:$0xff] %v2967
        %2988 = vst [vmem:[#allocation2 + $0x60] sm:$0xff] %v2969
        %2989 = vst [vmem:[#allocation2 + $0x68] sm:$0xff] %v2971
        %2990 = vst [vmem:[#allocation2 + $0x70] sm:$0xff] %v2973
        %2991 = vst [vmem:[#allocation2 + $0x78] sm:$0xff] %v2975
        %v2992 = vmul.f32 %v2573, %v2768
        %v2993 = vmul.f32 %v2577, %v2771
        %v2994 = vmul.f32 %v2583, %v2774
        %v2995 = vmul.f32 %v2587, %v2777
        %v2996 = vmul.f32 %v2593, %v2780
        %v2997 = vmul.f32 %v2597, %v2783
        %v2998 = vmul.f32 %v2603, %v2786
        %v2999 = vmul.f32 %v2607, %v2789
        %v3000 = vmul.f32 %v2613, %v2792
        %v3001 = vmul.f32 %v2617, %v2795
        %v3002 = vmul.f32 %v2623, %v2798
        %v3003 = vmul.f32 %v2627, %v2801
        %v3004 = vmul.f32 %v2633, %v2804
        %v3005 = vmul.f32 %v2637, %v2807
        %v3006 = vmul.f32 %v2643, %v2810
        %v3007 = vmul.f32 %v2647, %v2813
        %3008 = vst [vmem:[#allocation3] sm:$0xff] %v2992
        %3009 = vst [vmem:[#allocation3 + $0x8] sm:$0xff] %v2993
        %3010 = vst [vmem:[#allocation3 + $0x10] sm:$0xff] %v2994
        %3011 = vst [vmem:[#allocation3 + $0x18] sm:$0xff] %v2995
        %3012 = vst [vmem:[#allocation3 + $0x20] sm:$0xff] %v2996
        %3013 = vst [vmem:[#allocation3 + $0x28] sm:$0xff] %v2997
        %3014 = vst [vmem:[#allocation3 + $0x30] sm:$0xff] %v2998
        %3015 = vst [vmem:[#allocation3 + $0x38] sm:$0xff] %v2999
        %3016 = vst [vmem:[#allocation3 + $0x40] sm:$0xff] %v3000
        %3017 = vst [vmem:[#allocation3 + $0x48] sm:$0xff] %v3001
        %3018 = vst [vmem:[#allocation3 + $0x50] sm:$0xff] %v3002
        %3019 = vst [vmem:[#allocation3 + $0x58] sm:$0xff] %v3003
        %3020 = vst [vmem:[#allocation3 + $0x60] sm:$0xff] %v3004
        %3021 = vst [vmem:[#allocation3 + $0x68] sm:$0xff] %v3005
        %3022 = vst [vmem:[#allocation3 + $0x70] sm:$0xff] %v3006
        %3023 = vst [vmem:[#allocation3 + $0x78] sm:$0xff] %v3007
        %v3024 = vld [vmem:[#allocation2] sm:$0xff]
        %v3025 = vld [vmem:[#allocation2 + $0x8] sm:$0xff]
        %v3026 = vmul.f32 %v3024, 0.0
        %v3027 = vmul.f32 %v3025, 0.0
        %v3028 = vld [vmem:[#allocation3] sm:$0xff]
        %v3029 = vld [vmem:[#allocation3 + $0x8] sm:$0xff]
        %v3030 = vadd.f32 %v3026, %v3028
        %v3031 = vadd.f32 %v3027, %v3029
        %3032 = vst [vmem:[#allocation4] sm:$0xff] %v3030
        %3033 = vst [vmem:[#allocation4 + $0x8] sm:$0xff] %v3031
        %v3034 = vld [vmem:[%s1883] sm:$0xff]
        %v3035 = vld [vmem:[%s1883 + $0x8] sm:$0xff]
        %v3036 = vmul.f32 %v3034, %v3030
        %v3037 = vmul.f32 %v3035, %v3031
        %v3038 = vld [vmem:[%s1888] sm:$0xff]
        %v3039 = vld [vmem:[%s1888 + $0x8] sm:$0xff]
        %v3040 = vadd.f32 %v3036, %v3038
        %v3041 = vadd.f32 %v3037, %v3039
        %3042 = vst [vmem:[%s1893] sm:$0xff] %v3040
        %3043 = vst [vmem:[%s1893 + $0x8] sm:$0xff] %v3041
        %v3044 = vld [vmem:[%s1896] sm:$0xff]
        %v3045 = vld [vmem:[%s1896 + $0x8] sm:$0xff]
        %v3046 = vmul.f32 %v3044, %v3040
        %v3047 = vmul.f32 %v3045, %v3041
        %v3048 = vld [vmem:[%s1901] sm:$0xff]
        %v3049 = vld [vmem:[%s1901 + $0x8] sm:$0xff]
        %v3050 = vadd.f32 %v3046, %v3048
        %v3051 = vadd.f32 %v3047, %v3049
        %3052 = vst [vmem:[%s1906] sm:$0xff] %v3050
        %3053 = vst [vmem:[%s1906 + $0x8] sm:$0xff] %v3051
        %v3054 = vld [vmem:[%s1909] sm:$0xff]
        %v3055 = vld [vmem:[%s1909 + $0x8] sm:$0xff]
        %v3056 = vmul.f32 %v3054, %v3050
        %v3057 = vmul.f32 %v3055, %v3051
        %v3058 = vld [vmem:[%s1914] sm:$0xff]
        %v3059 = vld [vmem:[%s1914 + $0x8] sm:$0xff]
        %v3060 = vadd.f32 %v3056, %v3058
        %v3061 = vadd.f32 %v3057, %v3059
        %3062 = vst [vmem:[%s1919] sm:$0xff] %v3060
        %3063 = vst [vmem:[%s1919 + $0x8] sm:$0xff] %v3061
        %v3064 = vld [vmem:[%s1922] sm:$0xff]
        %v3065 = vld [vmem:[%s1922 + $0x8] sm:$0xff]
        %v3066 = vmul.f32 %v3064, %v3060
        %v3067 = vmul.f32 %v3065, %v3061
        %v3068 = vld [vmem:[%s1927] sm:$0xff]
        %v3069 = vld [vmem:[%s1927 + $0x8] sm:$0xff]
        %v3070 = vadd.f32 %v3066, %v3068
        %v3071 = vadd.f32 %v3067, %v3069
        %3072 = vst [vmem:[%s1932] sm:$0xff] %v3070
        %3073 = vst [vmem:[%s1932 + $0x8] sm:$0xff] %v3071
        %v3074 = vld [vmem:[%s1935] sm:$0xff]
        %v3075 = vld [vmem:[%s1935 + $0x8] sm:$0xff]
        %v3076 = vmul.f32 %v3074, %v3070
        %v3077 = vmul.f32 %v3075, %v3071
        %v3078 = vld [vmem:[%s1940] sm:$0xff]
        %v3079 = vld [vmem:[%s1940 + $0x8] sm:$0xff]
        %v3080 = vadd.f32 %v3076, %v3078
        %v3081 = vadd.f32 %v3077, %v3079
        %3082 = vst [vmem:[%s1945] sm:$0xff] %v3080
        %3083 = vst [vmem:[%s1945 + $0x8] sm:$0xff] %v3081
        %v3084 = vld [vmem:[%s1948] sm:$0xff]
        %v3085 = vld [vmem:[%s1948 + $0x8] sm:$0xff]
        %v3086 = vmul.f32 %v3084, %v3080
        %v3087 = vmul.f32 %v3085, %v3081
        %v3088 = vld [vmem:[%s1953] sm:$0xff]
        %v3089 = vld [vmem:[%s1953 + $0x8] sm:$0xff]
        %v3090 = vadd.f32 %v3086, %v3088
        %v3091 = vadd.f32 %v3087, %v3089
        %3092 = vst [vmem:[%s1958] sm:$0xff] %v3090
        %3093 = vst [vmem:[%s1958 + $0x8] sm:$0xff] %v3091
        %v3094 = vld [vmem:[%s1961] sm:$0xff]
        %v3095 = vld [vmem:[%s1961 + $0x8] sm:$0xff]
        %v3096 = vmul.f32 %v3094, %v3090
        %v3097 = vmul.f32 %v3095, %v3091
        %v3098 = vld [vmem:[%s1966] sm:$0xff]
        %v3099 = vld [vmem:[%s1966 + $0x8] sm:$0xff]
        %v3100 = vadd.f32 %v3096, %v3098
        %v3101 = vadd.f32 %v3097, %v3099
        %3102 = vst [vmem:[%s1971] sm:$0xff] %v3100
        %3103 = vst [vmem:[%s1971 + $0x8] sm:$0xff] %v3101
        %v3104 = vld [vmem:[#allocation4] sm:$0xff]
        %v3105 = vld [vmem:[#allocation4 + $0x8] sm:$0xff]
        %v3106 = vld [vmem:[#allocation4 + $0x10] sm:$0xff]
        %v3107 = vld [vmem:[#allocation4 + $0x18] sm:$0xff]
        %v3108 = vld [vmem:[#allocation4 + $0x20] sm:$0xff]
        %v3109 = vld [vmem:[#allocation4 + $0x28] sm:$0xff]
        %v3110 = vld [vmem:[#allocation4 + $0x30] sm:$0xff]
        %v3111 = vld [vmem:[#allocation4 + $0x38] sm:$0xff]
        %v3112 = vld [vmem:[#allocation4 + $0x40] sm:$0xff]
        %v3113 = vld [vmem:[#allocation4 + $0x48] sm:$0xff]
        %v3114 = vld [vmem:[#allocation4 + $0x50] sm:$0xff]
        %v3115 = vld [vmem:[#allocation4 + $0x58] sm:$0xff]
        %v3116 = vld [vmem:[#allocation4 + $0x60] sm:$0xff]
        %v3117 = vld [vmem:[#allocation4 + $0x68] sm:$0xff]
        %v3118 = vld [vmem:[#allocation4 + $0x70] sm:$0xff]
        %v3119 = vld [vmem:[#allocation4 + $0x78] sm:$0xff]
        %v3120 = vmul.f32 %v3104, %v2880
        %v3121 = vmul.f32 %v3105, %v2883
        %v3122 = vmul.f32 %v3106, %v2886
        %v3123 = vmul.f32 %v3107, %v2889
        %v3124 = vmul.f32 %v3108, %v2892
        %v3125 = vmul.f32 %v3109, %v2895
        %v3126 = vmul.f32 %v3110, %v2898
        %v3127 = vmul.f32 %v3111, %v2901
        %v3128 = vmul.f32 %v3112, %v2904
        %v3129 = vmul.f32 %v3113, %v2907
        %v3130 = vmul.f32 %v3114, %v2910
        %v3131 = vmul.f32 %v3115, %v2913
        %v3132 = vmul.f32 %v3116, %v2916
        %v3133 = vmul.f32 %v3117, %v2919
        %v3134 = vmul.f32 %v3118, %v2922
        %v3135 = vmul.f32 %v3119, %v2925
        %v3136 = vpack.c.bf16 %v3121, %v3120
        %v3137 = vpack.c.bf16 %v3123, %v3122
        %v3138 = vpack.c.bf16 %v3125, %v3124
        %v3139 = vpack.c.bf16 %v3127, %v3126
        %v3140 = vpack.c.bf16 %v3129, %v3128
        %v3141 = vpack.c.bf16 %v3131, %v3130
        %v3142 = vpack.c.bf16 %v3133, %v3132
        %v3143 = vpack.c.bf16 %v3135, %v3134
        %v3144 = vld [vmem:[%s24] sm:$0x1]
        %v3146 = vlaneseq
        %v3147 = vshrl.u32 %v3146, 7
        %v3148 = vsub.s32 0, %v3147
        %v3149 = vrot.slane %v3144, %v3148
        %v3151 = vmul.f32 %v2373, %v3149
        %3152 = vmatprep.subr.bf16.mxu0 0
        %3153 = vmatpush1.bf16.msra.mxu0 %v3136
        %3154 = vmatprep.subr.bf16.mxu0 0
        %3155 = vmatpush1.bf16.msra.mxu0 %v3137
        %3156 = vmatprep.subr.bf16.mxu0 0
        %3157 = vmatpush1.bf16.msra.mxu0 %v3138
        %3158 = vmatprep.subr.bf16.mxu0 0
        %3159 = vmatpush1.bf16.msra.mxu0 %v3139
        %3160 = vmatprep.subr.bf16.mxu0 0
        %3161 = vmatpush1.bf16.msra.mxu0 %v3140
        %3162 = vmatprep.subr.bf16.mxu0 0
        %3163 = vmatpush1.bf16.msra.mxu0 %v3141
        %3164 = vmatprep.subr.bf16.mxu0 0
        %3165 = vmatpush1.bf16.msra.mxu0 %v3142
        %3166 = vmatprep.subr.bf16.mxu0 0
        %3167 = vmatpush1.bf16.msra.mxu0 %v3143
        %3168 = vmatprep.subr.bf16.mxu0 0
        %3169 = vmatpush1.bf16.msra.mxu0 0
        %3170 = vmatprep.subr.bf16.mxu0 0
        %3171 = vmatpush1.bf16.msra.mxu0 0
        %3172 = vmatprep.subr.bf16.mxu0 0
        %3173 = vmatpush1.bf16.msra.mxu0 0
        %3174 = vmatprep.subr.bf16.mxu0 0
        %3175 = vmatpush1.bf16.msra.mxu0 0
        %3176 = vmatprep.subr.bf16.mxu0 0
        %3177 = vmatpush1.bf16.msra.mxu0 0
        %3178 = vmatprep.subr.bf16.mxu0 0
        %3179 = vmatpush1.bf16.msra.mxu0 0
        %3180 = vmatprep.subr.bf16.mxu0 0
        %3181 = vmatpush1.bf16.msra.mxu0 0
        %3182 = vmatprep.subr.bf16.mxu0 0
        %3183 = vmatpush1.bf16.msra.mxu0 0
        %3184 = vmatprep.mubr.bf16.mxu0 0
        %3185 = vmatmul.mubr.bf16.gmra.mrb[0].mxu0 %v917
        %v3186 = vpop.f32.mrb[0].mxu0
        %v3187 = vadd.f32 %v3151, %v3186
        %v3188 = vpop.f32.mrb[0].mxu0
        %v3189 = vpop.f32.mrb[0].mxu0
        %v3190 = vpop.f32.mrb[0].mxu0
        %3191 = vdwg.mxu0
        %v3192 = vsub.f32 0.0, %v2279
        %v3193 = vmul.f32 %v3192, 1.442695
        %v3194 = vpow.pop %v3193
        %v3195 = vadd.f32 %v3194, 1.0
        %v3196 = vrcp.pop %v3195
        %v3197 = vmul.f32 %v2279, %v3196
        %v3198 = vmul.f32 %v3187, %v3197
        %v3199 = vld [vmem:[%s25] sm:$0xf]
        %v3200 = vld [vmem:[%s25 + $0x4] sm:$0xf]
        %v3201 = vld [vmem:[%s25 + $0x8] sm:$0xf]
        %v3202 = vld [vmem:[%s25 + $0xc] sm:$0xf]
        %v3203 = vld [vmem:[%s25 + $0x10] sm:$0xf]
        %v3204 = vld [vmem:[%s25 + $0x14] sm:$0xf]
        %v3205 = vld [vmem:[%s25 + $0x18] sm:$0xf]
        %v3206 = vld [vmem:[%s25 + $0x1c] sm:$0xf]
        %v3207 = vld [vmem:[%s25 + $0x20] sm:$0xf]
        %v3208 = vld [vmem:[%s25 + $0x24] sm:$0xf]
        %v3209 = vld [vmem:[%s25 + $0x28] sm:$0xf]
        %v3210 = vld [vmem:[%s25 + $0x2c] sm:$0xf]
        %v3211 = vld [vmem:[%s25 + $0x30] sm:$0xf]
        %v3212 = vld [vmem:[%s25 + $0x34] sm:$0xf]
        %v3213 = vld [vmem:[%s25 + $0x38] sm:$0xf]
        %v3214 = vld [vmem:[%s25 + $0x3c] sm:$0xf]
        %v3215 = vpack.c.bf16 %v3198, %v3198
        %v3232 = vunpack.c.l.b16 %v3199
        %v3233 = vunpack.c.l.b16 %v3200
        %v3234 = vunpack.c.l.b16 %v3201
        %v3235 = vunpack.c.l.b16 %v3202
        %v3236 = vunpack.c.l.b16 %v3203
        %v3237 = vunpack.c.l.b16 %v3204
        %v3238 = vunpack.c.l.b16 %v3205
        %v3239 = vunpack.c.l.b16 %v3206
        %v3240 = vunpack.c.l.b16 %v3207
        %v3241 = vunpack.c.l.b16 %v3208
        %v3242 = vunpack.c.l.b16 %v3209
        %v3243 = vunpack.c.l.b16 %v3210
        %v3244 = vunpack.c.l.b16 %v3211
        %v3245 = vunpack.c.l.b16 %v3212
        %v3246 = vunpack.c.l.b16 %v3213
        %v3247 = vunpack.c.l.b16 %v3214
        %v3248 = vpack.c.b16 %v3233, %v3232
        %v3249 = vpack.c.b16 %v3235, %v3234
        %v3250 = vpack.c.b16 %v3237, %v3236
        %v3251 = vpack.c.b16 %v3239, %v3238
        %v3252 = vpack.c.b16 %v3241, %v3240
        %v3253 = vpack.c.b16 %v3243, %v3242
        %v3254 = vpack.c.b16 %v3245, %v3244
        %v3255 = vpack.c.b16 %v3247, %v3246
        %3264 = vmatprep.subr.bf16.mxu0 0
        %3265 = vmatpush1.bf16.msra.mxu0 %v3248
        %3266 = vmatprep.subr.bf16.mxu0 0
        %3267 = vmatpush1.bf16.msra.mxu0 %v3249
        %3268 = vmatprep.subr.bf16.mxu0 0
        %3269 = vmatpush1.bf16.msra.mxu0 %v3250
        %3270 = vmatprep.subr.bf16.mxu0 0
        %3271 = vmatpush1.bf16.msra.mxu0 %v3251
        %3272 = vmatprep.subr.bf16.mxu0 0
        %3273 = vmatpush1.bf16.msra.mxu0 %v3252
        %3274 = vmatprep.subr.bf16.mxu0 0
        %3275 = vmatpush1.bf16.msra.mxu0 %v3253
        %3276 = vmatprep.subr.bf16.mxu0 0
        %3277 = vmatpush1.bf16.msra.mxu0 %v3254
        %3278 = vmatprep.subr.bf16.mxu0 0
        %3279 = vmatpush1.bf16.msra.mxu0 %v3255
        %3280 = vmatprep.subr.bf16.mxu0 0
        %3281 = vmatpush1.bf16.msra.mxu0 0
        %3282 = vmatprep.subr.bf16.mxu0 0
        %3283 = vmatpush1.bf16.msra.mxu0 0
        %3284 = vmatprep.subr.bf16.mxu0 0
        %3285 = vmatpush1.bf16.msra.mxu0 0
        %3286 = vmatprep.subr.bf16.mxu0 0
        %3287 = vmatpush1.bf16.msra.mxu0 0
        %3288 = vmatprep.subr.bf16.mxu0 0
        %3289 = vmatpush1.bf16.msra.mxu0 0
        %3290 = vmatprep.subr.bf16.mxu0 0
        %3291 = vmatpush1.bf16.msra.mxu0 0
        %3292 = vmatprep.subr.bf16.mxu0 0
        %3293 = vmatpush1.bf16.msra.mxu0 0
        %3294 = vmatprep.subr.bf16.mxu0 0
        %3295 = vmatpush1.bf16.msra.mxu0 0
        %3296 = vmatprep.mubr.bf16.mxu0 0
        %3297 = vmatmul.mubr.bf16.gmra.mrb[0].mxu0 %v3215
        %v3298 = vpop.f32.mrb[0].mxu0
        %v3299 = vadd.f32 %v2169, %v3298
        %v3300 = vpop.f32.mrb[0].mxu0
        %v3301 = vpop.f32.mrb[0].mxu0
        %v3302 = vpop.f32.mrb[0].mxu0
        %3303 = vdwg.mxu0
        %v3304 = vld [vmem:[%s3] sm:$0x1]
        %v3305 = vmul.f32 %v3299, %v3299
        %v3306 = vsel %vm940, %v3305, 0.0
        %3307 = vadd.xlane.f32.xlu0 %v3306
        %v3308 = vpop.xlane.xlu0 %3307
        %v3309 = vmul.f32 %v3308, %v944
        %v3310 = vadd.f32 %v3309, 1e-05
        %v3311 = vrsqrt.pop %v3310
        %v3312 = vmul.f32 %v3299, %v3311
        %v3314 = vlaneseq
        %v3315 = vshrl.u32 %v3314, 7
        %v3316 = vsub.s32 0, %v3315
        %v3317 = vrot.slane %v3304, %v3316
        %v3319 = vmul.f32 %v3312, %v3317
        %v3320 = vld [vmem:[%s2] sm:$0xf]
        %v3321 = vld [vmem:[%s2 + $0x4] sm:$0xf]
        %v3322 = vld [vmem:[%s2 + $0x8] sm:$0xf]
        %v3323 = vld [vmem:[%s2 + $0xc] sm:$0xf]
        %v3324 = vld [vmem:[%s2 + $0x10] sm:$0xf]
        %v3325 = vld [vmem:[%s2 + $0x14] sm:$0xf]
        %v3326 = vld [vmem:[%s2 + $0x18] sm:$0xf]
        %v3327 = vld [vmem:[%s2 + $0x1c] sm:$0xf]
        %v3328 = vpack.c.bf16 %v3319, %v3319
        %v3337 = vunpack.c.l.b16 %v3320
        %v3338 = vunpack.c.l.b16 %v3321
        %v3339 = vunpack.c.l.b16 %v3322
        %v3340 = vunpack.c.l.b16 %v3323
        %v3341 = vunpack.c.l.b16 %v3324
        %v3342 = vunpack.c.l.b16 %v3325
        %v3343 = vunpack.c.l.b16 %v3326
        %v3344 = vunpack.c.l.b16 %v3327
        %v3345 = vpack.c.b16 %v3338, %v3337
        %v3346 = vpack.c.b16 %v3340, %v3339
        %v3347 = vpack.c.b16 %v3342, %v3341
        %v3348 = vpack.c.b16 %v3344, %v3343
        %v3354 = vsel %vm940, %v3328, 0
        %3356 = vmatprep.subr.bf16.mxu0 0
        %3357 = vmatpush1.bf16.msra.mxu0 %v3345
        %3358 = vmatprep.subr.bf16.mxu0 0
        %3359 = vmatpush1.bf16.msra.mxu0 %v3346
        %3360 = vmatprep.subr.bf16.mxu0 0
        %3361 = vmatpush1.bf16.msra.mxu0 %v3347
        %3362 = vmatprep.subr.bf16.mxu0 0
        %3363 = vmatpush1.bf16.msra.mxu0 %v3348
        %3364 = vmatprep.subr.bf16.mxu0 0
        %3365 = vmatpush1.bf16.msra.mxu0 0
        %3366 = vmatprep.subr.bf16.mxu0 0
        %3367 = vmatpush1.bf16.msra.mxu0 0
        %3368 = vmatprep.subr.bf16.mxu0 0
        %3369 = vmatpush1.bf16.msra.mxu0 0
        %3370 = vmatprep.subr.bf16.mxu0 0
        %3371 = vmatpush1.bf16.msra.mxu0 0
        %3372 = vmatprep.subr.bf16.mxu0 0
        %3373 = vmatpush1.bf16.msra.mxu0 0
        %3374 = vmatprep.subr.bf16.mxu0 0
        %3375 = vmatpush1.bf16.msra.mxu0 0
        %3376 = vmatprep.subr.bf16.mxu0 0
        %3377 = vmatpush1.bf16.msra.mxu0 0
        %3378 = vmatprep.subr.bf16.mxu0 0
        %3379 = vmatpush1.bf16.msra.mxu0 0
        %3380 = vmatprep.subr.bf16.mxu0 0
        %3381 = vmatpush1.bf16.msra.mxu0 0
        %3382 = vmatprep.subr.bf16.mxu0 0
        %3383 = vmatpush1.bf16.msra.mxu0 0
        %3384 = vmatprep.subr.bf16.mxu0 0
        %3385 = vmatpush1.bf16.msra.mxu0 0
        %3386 = vmatprep.subr.bf16.mxu0 0
        %3387 = vmatpush1.bf16.msra.mxu0 0
        %3388 = vmatprep.mubr.bf16.mxu0 0
        %3389 = vmatmul.mubr.bf16.gmra.mrb[0].mxu0 %v3354
        %v3390 = vpop.f32.mrb[0].mxu0
        %v3391 = vadd.f32 0.0, %v3390
        %v3392 = vpop.f32.mrb[0].mxu0
        %v3393 = vpop.f32.mrb[0].mxu0
        %v3394 = vpop.f32.mrb[0].mxu0
        %3395 = vdwg.mxu0
        %3396 = vst [vmem:[%s782] sm:$0xff] %v3391
        %s3397 = sand.u32 %s599, 1
        %s3398 = scalar_lea.sflag [#allocation6], %s3397
        %s3399 = sand.u32 %s599, 1
        %s3400 = smul.addr %s3399, 8
        %s3401 = scalar_lea.vmem [#allocation5], %s3400
        // Predicated region
        $region125: #{mamba_forward_pallas.1} parent=123 // pred_check
          %p3402 = pneg %p609
        $region126: #{mamba_forward_pallas.1} parent=123 // pred_check_branch
          %3404 = sbr.rel (%p3402) target = $region128
        $region127: #{mamba_forward_pallas.1} parent=123 // pred_region
          %s3406 = ssub.s32 128, 128
          %3407 = vsyncadd %s3398, %s3406
          %s3408 = smul.addr %s40, 128
          %s3409 = scalar_lea.hbm %s26, %s3408
          %s3411 = sshll.u32 %s3401, 4
          %s3412 = int_to_ptr.vmem [resolvable:$true] %s3411
          %3414 = dma.vmem_to_hbm [thread:$0]  %s3412, 128, %s3409, %s3398
        $region128: #{mamba_forward_pallas.1} parent=123 // pred_fallthru
          _
      $region124: #{mamba_forward_pallas.1} parent=5 // pred_fallthru
        _
      %p3415 = scmp.le.s32.totalorder 2, %s35
      // Predicated region
      $region129: #{mamba_forward_pallas.1} parent=5 // pred_check
        %p3416 = pneg %p3415
      $region130: #{mamba_forward_pallas.1} parent=5 // pred_check_branch
        %3418 = sbr.rel (%p3416) target = $region132
      $region131: #{mamba_forward_pallas.1} parent=5 // pred_region
        %s3419 = ssub.s32 %s35, 2
        // Predicated region
        $region133: #{mamba_forward_pallas.1} parent=131 // pred_check
          %p3420 = pneg %p615
        $region134: #{mamba_forward_pallas.1} parent=131 // pred_check_branch
          %3422 = sbr.rel (%p3420) target = $region136
        $region135: #{mamba_forward_pallas.1} parent=131 // pred_region
          %s3423 = sand.u32 %s600, 1
          %s3424 = scalar_lea.sflag [#allocation6], %s3423
          %s3425 = sand.u32 %s600, 1
          %s3426 = smul.addr %s3425, 8
          %s3427 = scalar_lea.vmem [#allocation5], %s3426
          %3428 = dma.done %s3424, 128
        $region136: #{mamba_forward_pallas.1} parent=131 // pred_fallthru
          _
      $region132: #{mamba_forward_pallas.1} parent=5 // pred_fallthru
        _
    $region6: #{mamba_forward_pallas.1} parent=1 // loop_footer
      %s39 = sadd.s32 1, %s35
    $region7: #{mamba_forward_pallas.1} parent=1 // loop_footer_branch
      %34 = sbr.rel target = $region3
    $region8: #{mamba_forward_pallas.1} parent=1 // loop_exit
      _
    %3429 = vsyncpa [#allocation6], 1
    %s3430 = scalar_lea.sflag [#allocation6], 1
    %3431 = vsyncpa %s3430, 1

</llo_original>
